<compile_context>
chip_gen: v7x
topology: tpu7x:2x2x1
jax: 0.10.0
libtpu: 0.0.40
codegen_flags: <defaults>
</compile_context>

<pallas_src>
import jax
import jax.numpy as jnp
from jax.experimental import pallas as pl
from jax.experimental.pallas import tpu as pltpu

IN_DIM = 2 * 4 * 3   # 24
HID_DIM = 2 * 4 * 3  # 24
OUT_DIM = 2 * 2 * 3  # 12

_SUBLANE = 8                      # f32 sublane granularity for block shapes
_DEFAULT_TILE = 8192              # target rows per grid step (amortizes ~0.35us/step)
_MIN_KERNEL_BATCH = 1024          # below this, plain XLA wins (kernel = pure overhead)
_VMEM_LIMIT = 48 * 1024 * 1024    # covers worst-case TB=8192 blocks on v5e/v6e/v7x


def _mlp_kernel(x_ref, w1_ref, b1_ref, w2_ref, b2_ref, w3_ref, b3_ref, o_ref):
    """One batch tile of the 3-layer MLP in natural [rows, feat] layout.

    x_ref : [TB, 24] f32   (streamed tile)
    wN_ref: [in, out] bf16 (VMEM-resident), bN_ref: [1, out] f32
    o_ref : [TB, 12] f32   (stored directly, no epilogue transpose)
    """
    x = x_ref[...].astype(jnp.bfloat16)

    # layer 1: Linear(24 -> 24) + ReLU
    h1 = jnp.dot(x, w1_ref[...], preferred_element_type=jnp.float32) + b1_ref[...]
    h1 = jnp.maximum(h1, 0.0).astype(jnp.bfloat16)

    # layer 2: Linear(24 -> 24) + ReLU
    h2 = jnp.dot(h1, w2_ref[...], preferred_element_type=jnp.float32) + b2_ref[...]
    h2 = jnp.maximum(h2, 0.0).astype(jnp.bfloat16)

    # output layer: Linear(24 -> 12), no activation
    out = jnp.dot(h2, w3_ref[...], preferred_element_type=jnp.float32) + b3_ref[...]
    o_ref[...] = out.astype(o_ref.dtype)


def prepare_params(params):
    """One-time conversion from torch-style params (w [out,in] f32, b [out] f32).

    Weights become [in, out] bf16 (used directly by X @ W, no per-call transpose);
    biases become [1, out] f32 rows (sublane-broadcast in-kernel).
    """
    def prep(w, b):
        return (jnp.asarray(w, jnp.bfloat16).T,
                jnp.asarray(b, jnp.float32).reshape(1, -1))

    return {k: prep(*params[k]) for k in ("input_layer", "fc1", "output_layer")}


def _xla_forward(x, prepared):
    """Plain-XLA fallback for small batches (same bf16-operand / f32-accum numerics)."""
    w1, b1 = prepared["input_layer"]
    w2, b2 = prepared["fc1"]
    w3, b3 = prepared["output_layer"]
    bf = jnp.bfloat16
    h1 = jnp.maximum(jnp.dot(x.astype(bf), w1, preferred_element_type=jnp.float32) + b1, 0.0)
    h2 = jnp.maximum(jnp.dot(h1.astype(bf), w2, preferred_element_type=jnp.float32) + b2, 0.0)
    return jnp.dot(h2.astype(bf), w3, preferred_element_type=jnp.float32) + b3


def _choose_tiling(batch, tb_target):
    """Returns (rows_per_tile, n_tiles, padded_batch)."""
    n = pl.cdiv(batch, tb_target)
    if n == 1 and batch >= 2 * _MIN_KERNEL_BATCH:
        n = 2                       # give both v7x TensorCores a tile
    if n > 2 and n % 2:
        n += 1                      # even tile count -> balanced megacore split
    tile = pl.cdiv(pl.cdiv(batch, n), _SUBLANE) * _SUBLANE   # sublane-aligned
    return tile, n, n * tile


def neural_net_state_transition_forward(x, prepared_params, *, tb=_DEFAULT_TILE,
                                        min_kernel_batch=_MIN_KERNEL_BATCH):
    """x: [B, 24] f32.  prepared_params: output of prepare_params.  Returns [B, 12] f32."""
    batch = x.shape[0]
    if batch < min_kernel_batch:
        return _xla_forward(x, prepared_params)   # overhead-bound regime -> plain XLA

    w1, b1 = prepared_params["input_layer"]
    w2, b2 = prepared_params["fc1"]
    w3, b3 = prepared_params["output_layer"]

    tile, n_tiles, b_pad = _choose_tiling(batch, tb)
    x_in = x if b_pad == batch else jnp.pad(x, ((0, b_pad - batch), (0, 0)))

    resident = lambda shape: pl.BlockSpec(shape, lambda i: (0, 0))

    param_bytes = sum(int(a.size) * a.dtype.itemsize for a in (w1, b1, w2, b2, w3, b3))
    cost = pl.CostEstimate(
        flops=2 * b_pad * (IN_DIM * HID_DIM + HID_DIM * HID_DIM + HID_DIM * OUT_DIM),
        transcendentals=0,
        bytes_accessed=int(x_in.size) * x_in.dtype.itemsize
        + b_pad * OUT_DIM * 4
        + param_bytes,
    )

    out = pl.pallas_call(
        _mlp_kernel,
        out_shape=jax.ShapeDtypeStruct((b_pad, OUT_DIM), jnp.float32),
        grid=(n_tiles,),
        in_specs=[
            pl.BlockSpec((tile, IN_DIM), lambda i: (i, 0)),   # x tile streams
            resident((IN_DIM, HID_DIM)),                      # w1 (VMEM resident)
            resident((1, HID_DIM)),                           # b1
            resident((HID_DIM, HID_DIM)),                     # w2
            resident((1, HID_DIM)),                           # b2
            resident((HID_DIM, OUT_DIM)),                     # w3
            resident((1, OUT_DIM)),                           # b3
        ],
        out_specs=pl.BlockSpec((tile, OUT_DIM), lambda i: (i, 0)),
        compiler_params=pltpu.CompilerParams(
            dimension_semantics=("parallel",),                # independent batch tiles
            vmem_limit_bytes=_VMEM_LIMIT,
        ),
        cost_estimate=cost,
    )(x_in, w1, b1, w2, b2, w3, b3)

    return out if b_pad == batch else out[:batch]


def init_params(key):
    """Deterministic init mimicking torch.nn.Linear default (uniform +/- 1/sqrt(fan_in))."""
    def linear(k, out_dim, in_dim):
        kw, kb = jax.random.split(k)
        bound = 1.0 / jnp.sqrt(in_dim)
        w = jax.random.uniform(kw, (out_dim, in_dim), jnp.float32, -bound, bound)
        b = jax.random.uniform(kb, (out_dim,), jnp.float32, -bound, bound)
        return w, b

    k1, k2, k3 = jax.random.split(key, 3)
    return {
        "input_layer": linear(k1, HID_DIM, IN_DIM),
        "fc1": linear(k2, HID_DIM, HID_DIM),
        "output_layer": linear(k3, OUT_DIM, HID_DIM),
    }


def _reference(x, params):
    """Pure-JAX reference from raw torch-layout params (bf16 operands, f32 accum)."""
    w1, b1 = params["input_layer"]
    w2, b2 = params["fc1"]
    w3, b3 = params["output_layer"]
    bf = jnp.bfloat16
    h1 = jnp.maximum(
        jnp.dot(x.astype(bf), w1.astype(bf).T, preferred_element_type=jnp.float32) + b1, 0.0)
    h2 = jnp.maximum(
        jnp.dot(h1.astype(bf), w2.astype(bf).T, preferred_element_type=jnp.float32) + b2, 0.0)
    return jnp.dot(h2.astype(bf), w3.astype(bf).T, preferred_element_type=jnp.float32) + b3


if __name__ == "__main__":
    key = jax.random.PRNGKey(0)
    kx1, kx2, kx3, kp = jax.random.split(key, 4)

    params = init_params(kp)
    prepared = prepare_params(params)   # one-time layout/dtype conversion

    # 1) Tiny batch -> plain-XLA fallback path (kernel would be pure overhead).
    x_small = jax.random.normal(kx1, (8, IN_DIM), jnp.float32)
    out_small = jax.block_until_ready(
        neural_net_state_transition_forward(x_small, prepared))
    ref_small = _reference(x_small, params)
    assert out_small.shape == (8, OUT_DIM), out_small.shape
    assert jnp.allclose(out_small, ref_small, atol=1e-3, rtol=1e-3), \
        float(jnp.max(jnp.abs(out_small - ref_small)))

    # 2) Pallas kernel path: 2048 rows -> 2 parallel tiles of 1024.
    x_mid = jax.random.normal(kx2, (2048, IN_DIM), jnp.float32)
    out_mid = jax.block_until_ready(
        neural_net_state_transition_forward(x_mid, prepared))
    ref_mid = _reference(x_mid, params)
    assert out_mid.shape == (2048, OUT_DIM), out_mid.shape
    assert jnp.allclose(out_mid, ref_mid, atol=1e-3, rtol=1e-3), \
        float(jnp.max(jnp.abs(out_mid - ref_mid)))

    # 3) Pallas kernel path with a ragged batch: 3000 rows -> 2 tiles of 1504
    #    (8 padded rows computed then sliced off).
    x_rag = jax.random.normal(kx3, (3000, IN_DIM), jnp.float32)
    out_rag = jax.block_until_ready(
        neural_net_state_transition_forward(x_rag, prepared))
    ref_rag = _reference(x_rag, params)
    assert out_rag.shape == (3000, OUT_DIM), out_rag.shape
    assert jnp.allclose(out_rag, ref_rag, atol=1e-3, rtol=1e-3), \
        float(jnp.max(jnp.abs(out_rag - ref_rag)))

    print("KERNEL_OK")
</pallas_src>

<mosaic_0001>
module attributes {stable_mosaic.version = 11 : i64} {
  func.func @_mlp_kernel(%arg0: i32, %arg1: memref<1024x24xf32, #tpu.memory_space<vmem>>, %arg2: memref<24x24xbf16, #tpu.memory_space<vmem>>, %arg3: memref<1x24xf32, #tpu.memory_space<vmem>>, %arg4: memref<24x24xbf16, #tpu.memory_space<vmem>>, %arg5: memref<1x24xf32, #tpu.memory_space<vmem>>, %arg6: memref<24x12xbf16, #tpu.memory_space<vmem>>, %arg7: memref<1x12xf32, #tpu.memory_space<vmem>>, %arg8: memref<1024x12xf32, #tpu.memory_space<vmem>>) attributes {dimension_semantics = [#tpu.dimension_semantics<parallel>], iteration_bounds = array<i64: 2>, scalar_prefetch = 0 : i64, scratch_operands = 0 : i64, tpu.core_type = #tpu.core_type<tc>, window_params = [{transform_indices = @transform_0, window_bounds = array<i64: 1024, 24>}, {pipeline_mode = #tpu.pipeline_mode<synchronous>, transform_indices = @transform_1, window_bounds = array<i64: 24, 24>}, {pipeline_mode = #tpu.pipeline_mode<synchronous>, transform_indices = @transform_2, window_bounds = array<i64: 1, 24>}, {pipeline_mode = #tpu.pipeline_mode<synchronous>, transform_indices = @transform_3, window_bounds = array<i64: 24, 24>}, {pipeline_mode = #tpu.pipeline_mode<synchronous>, transform_indices = @transform_4, window_bounds = array<i64: 1, 24>}, {pipeline_mode = #tpu.pipeline_mode<synchronous>, transform_indices = @transform_5, window_bounds = array<i64: 24, 12>}, {pipeline_mode = #tpu.pipeline_mode<synchronous>, transform_indices = @transform_6, window_bounds = array<i64: 1, 12>}, {transform_indices = @transform_7, window_bounds = array<i64: 1024, 12>}]} {
    %c0 = arith.constant 0 : index
    %c0_0 = arith.constant 0 : index
    %0 = vector.load %arg1[%c0, %c0_0] : memref<1024x24xf32, #tpu.memory_space<vmem>>, vector<1024x24xf32>
    %1 = arith.truncf %0 : vector<1024x24xf32> to vector<1024x24xbf16>
    %c0_1 = arith.constant 0 : index
    %c0_2 = arith.constant 0 : index
    %2 = vector.load %arg2[%c0_1, %c0_2] : memref<24x24xbf16, #tpu.memory_space<vmem>>, vector<24x24xbf16>
    %cst = arith.constant dense<0.000000e+00> : vector<1024x24xf32>
    %3 = tpu.matmul %1, %2, %cst {dimension_numbers = #tpu.dot_dimension_numbers<[1], [0], [0], [1], [0, 0, 1, 1], [], []>} : vector<1024x24xbf16>, vector<24x24xbf16>, vector<1024x24xf32> -> vector<1024x24xf32>
    %c0_3 = arith.constant 0 : index
    %c0_4 = arith.constant 0 : index
    %4 = vector.load %arg3[%c0_3, %c0_4] : memref<1x24xf32, #tpu.memory_space<vmem>>, vector<1x24xf32>
    %5 = vector.broadcast %4 : vector<1x24xf32> to vector<1024x24xf32>
    %6 = arith.addf %3, %5 : vector<1024x24xf32>
    %cst_5 = arith.constant 0.000000e+00 : f32
    %7 = vector.broadcast %cst_5 : f32 to vector<1024x24xf32>
    %8 = arith.maximumf %6, %7 : vector<1024x24xf32>
    %9 = arith.truncf %8 : vector<1024x24xf32> to vector<1024x24xbf16>
    %c0_6 = arith.constant 0 : index
    %c0_7 = arith.constant 0 : index
    %10 = vector.load %arg4[%c0_6, %c0_7] : memref<24x24xbf16, #tpu.memory_space<vmem>>, vector<24x24xbf16>
    %cst_8 = arith.constant dense<0.000000e+00> : vector<1024x24xf32>
    %11 = tpu.matmul %9, %10, %cst_8 {dimension_numbers = #tpu.dot_dimension_numbers<[1], [0], [0], [1], [0, 0, 1, 1], [], []>} : vector<1024x24xbf16>, vector<24x24xbf16>, vector<1024x24xf32> -> vector<1024x24xf32>
    %c0_9 = arith.constant 0 : index
    %c0_10 = arith.constant 0 : index
    %12 = vector.load %arg5[%c0_9, %c0_10] : memref<1x24xf32, #tpu.memory_space<vmem>>, vector<1x24xf32>
    %13 = vector.broadcast %12 : vector<1x24xf32> to vector<1024x24xf32>
    %14 = arith.addf %11, %13 : vector<1024x24xf32>
    %cst_11 = arith.constant 0.000000e+00 : f32
    %15 = vector.broadcast %cst_11 : f32 to vector<1024x24xf32>
    %16 = arith.maximumf %14, %15 : vector<1024x24xf32>
    %17 = arith.truncf %16 : vector<1024x24xf32> to vector<1024x24xbf16>
    %c0_12 = arith.constant 0 : index
    %c0_13 = arith.constant 0 : index
    %18 = vector.load %arg6[%c0_12, %c0_13] : memref<24x12xbf16, #tpu.memory_space<vmem>>, vector<24x12xbf16>
    %cst_14 = arith.constant dense<0.000000e+00> : vector<1024x12xf32>
    %19 = tpu.matmul %17, %18, %cst_14 {dimension_numbers = #tpu.dot_dimension_numbers<[1], [0], [0], [1], [0, 0, 1, 1], [], []>} : vector<1024x24xbf16>, vector<24x12xbf16>, vector<1024x12xf32> -> vector<1024x12xf32>
    %c0_15 = arith.constant 0 : index
    %c0_16 = arith.constant 0 : index
    %20 = vector.load %arg7[%c0_15, %c0_16] : memref<1x12xf32, #tpu.memory_space<vmem>>, vector<1x12xf32>
    %21 = vector.broadcast %20 : vector<1x12xf32> to vector<1024x12xf32>
    %22 = arith.addf %19, %21 : vector<1024x12xf32>
    %c0_17 = arith.constant 0 : index
    %c0_18 = arith.constant 0 : index
    %23 = vector.load %arg8[%c0_17, %c0_18] : memref<1024x12xf32, #tpu.memory_space<vmem>>, vector<1024x12xf32>
    tpu.vector_store %arg8[%c0_17, %c0_18], %22 {strides = array<i32>} : memref<1024x12xf32, #tpu.memory_space<vmem>>, vector<1024x12xf32>,
    return
  }
  func.func @transform_0(%arg0: i32) -> (i32, i32) {
    %c0_i32 = arith.constant 0 : i32
    %c0_i32_0 = arith.constant 0 : i32
    return %arg0, %c0_i32 : i32, i32
  }
  func.func @transform_1(%arg0: i32) -> (i32, i32) {
    %c0_i32 = arith.constant 0 : i32
    %c0_i32_0 = arith.constant 0 : i32
    %c0_i32_1 = arith.constant 0 : i32
    return %c0_i32, %c0_i32_0 : i32, i32
  }
  func.func @transform_2(%arg0: i32) -> (i32, i32) {
    %c0_i32 = arith.constant 0 : i32
    %c0_i32_0 = arith.constant 0 : i32
    %c0_i32_1 = arith.constant 0 : i32
    return %c0_i32, %c0_i32_0 : i32, i32
  }
  func.func @transform_3(%arg0: i32) -> (i32, i32) {
    %c0_i32 = arith.constant 0 : i32
    %c0_i32_0 = arith.constant 0 : i32
    %c0_i32_1 = arith.constant 0 : i32
    return %c0_i32, %c0_i32_0 : i32, i32
  }
  func.func @transform_4(%arg0: i32) -> (i32, i32) {
    %c0_i32 = arith.constant 0 : i32
    %c0_i32_0 = arith.constant 0 : i32
    %c0_i32_1 = arith.constant 0 : i32
    return %c0_i32, %c0_i32_0 : i32, i32
  }
  func.func @transform_5(%arg0: i32) -> (i32, i32) {
    %c0_i32 = arith.constant 0 : i32
    %c0_i32_0 = arith.constant 0 : i32
    %c0_i32_1 = arith.constant 0 : i32
    return %c0_i32, %c0_i32_0 : i32, i32
  }
  func.func @transform_6(%arg0: i32) -> (i32, i32) {
    %c0_i32 = arith.constant 0 : i32
    %c0_i32_0 = arith.constant 0 : i32
    %c0_i32_1 = arith.constant 0 : i32
    return %c0_i32, %c0_i32_0 : i32, i32
  }
  func.func @transform_7(%arg0: i32) -> (i32, i32) {
    %c0_i32 = arith.constant 0 : i32
    %c0_i32_0 = arith.constant 0 : i32
    return %arg0, %c0_i32 : i32, i32
  }
}

</mosaic_0001>

<llo_original>
// kernel: tpu_custom_call.1
$region0: #{tpu_custom_call.1}
  #allocation0 [shape = 'u32[]', space=smem, size = 0x4, offset = 0x4, fixed_abs, tag = 'smem constant byte address 0x4 - core index']
  #allocation1 [shape = 'u32[144,128]{1,0:T(1,128)}', space=vmem, size = 0x12000, scoped, tag = 'internal scratch']
  %s0 = inlined_call_operand.vmem [shape: f32[2048,24], index: 0, kind: input, shape index: {}]
  %s1 = inlined_call_operand.vmem [shape: bf16[24,24], index: 1, kind: input, shape index: {}]
  %s2 = inlined_call_operand.vmem [shape: f32[1,24], index: 2, kind: input, shape index: {}]
  %s3 = inlined_call_operand.vmem [shape: bf16[24,24], index: 3, kind: input, shape index: {}]
  %s4 = inlined_call_operand.vmem [shape: f32[1,24], index: 4, kind: input, shape index: {}]
  %s5 = inlined_call_operand.vmem [shape: bf16[24,12], index: 5, kind: input, shape index: {}]
  %s6 = inlined_call_operand.vmem [shape: f32[1,12], index: 6, kind: input, shape index: {}]
  %s7 = inlined_call_operand.vmem [shape: f32[2048,12], index: 7, kind: output, shape index: {}]
  %s8 = sld [smem:[#allocation0]]
  $region61: #{tpu_custom_call.1} parent=0
    _
  %s10 = ssub.s32 1, %s8
  %s11 = scalar_select 0, %s10, %s8
  loop: start=0, step=1, limit=4
  $region2: #{tpu_custom_call.1} parent=0 // loop_pre_header
    _
  $region3: #{tpu_custom_call.1} parent=0 // loop_header
    %s13 = sphi 0, %s17
    %p14 = scmp.ge.s32.totalorder %s13, 4
    %s23 = sphi 0, %s25
    %s26 = sphi 0, %s23
    %s27 = sphi 0, %s26
    %s43 = sphi 0, %s27
    %s47 = sphi 0, %s47
    %s49 = sphi 0, %s47
    %s50 = sphi 0, %s49
    %s64 = sphi 0, %s50
    %s68 = sphi 0, %s68
    %s70 = sphi 0, %s68
    %s71 = sphi 0, %s70
    %s85 = sphi 0, %s71
    %s89 = sphi 0, %s89
    %s91 = sphi 0, %s89
    %s92 = sphi 0, %s91
    %s106 = sphi 0, %s92
    %s110 = sphi 0, %s110
    %s112 = sphi 0, %s110
    %s113 = sphi 0, %s112
    %s127 = sphi 0, %s113
    %s131 = sphi 0, %s131
    %s133 = sphi 0, %s131
    %s134 = sphi 0, %s133
    %s148 = sphi 0, %s134
    %s152 = sphi 0, %s152
    %s154 = sphi 0, %s152
    %s155 = sphi 0, %s154
    %s169 = sphi 0, %s155
    %s175 = sphi 0, %s177
    %s178 = sphi 0, %s175
    %s179 = sphi 0, %s178
    %s195 = sphi 0, %s179
  $region4: #{tpu_custom_call.1} parent=0 // loop_header_branch
    %16 = sbr.rel (%p14) target = $region8
  $region5: #{tpu_custom_call.1} parent=0 // loop_body
    %s18 = ssub.s32 %s13, 1
    %s19 = ssub.s32 %s13, 2
    %s20 = sadd.s32 %s13, 1
    %s21 = ssub.s32 %s13, %s20
    %p22 = scmp.eq.s32.totalorder %s21, 0
    %s24 = sadd.s32 %s23, 1
    %s25 = scalar_select %p22, %s23, %s24
    %p28 = pneg %p22
    %p29 = scmp.eq.s32.totalorder %s13, 1
    %p30 = por %p28, %p29
    %p31 = scmp.ne.s32.totalorder %s23, %s26
    %p32 = scmp.eq.s32.totalorder %s13, 0
    %p33 = por %p31, %p32
    %p34 = scmp.ne.s32.totalorder %s23, %s26
    %p35 = scmp.eq.s32.totalorder %s18, 1
    %p36 = por %p34, %p35
    %p37 = scmp.ne.s32.totalorder %s26, %s27
    %p38 = scmp.eq.s32.totalorder %s18, 0
    %p39 = por %p37, %p38
    %p40 = scmp.ne.s32.totalorder %s26, %s27
    %p41 = scmp.eq.s32.totalorder %s19, 1
    %p42 = por %p40, %p41
    %p44 = scmp.ne.s32.totalorder %s27, %s43
    %p45 = scmp.eq.s32.totalorder %s19, 0
    %p46 = por %p44, %p45
    %s48 = sadd.s32 %s47, 1
    %p51 = scmp.eq.s32.totalorder %s13, 1
    %p52 = scmp.ne.s32.totalorder %s47, %s49
    %p53 = scmp.eq.s32.totalorder %s13, 0
    %p54 = por %p52, %p53
    %p55 = scmp.ne.s32.totalorder %s47, %s49
    %p56 = scmp.eq.s32.totalorder %s18, 1
    %p57 = por %p55, %p56
    %p58 = scmp.ne.s32.totalorder %s49, %s50
    %p59 = scmp.eq.s32.totalorder %s18, 0
    %p60 = por %p58, %p59
    %p61 = scmp.ne.s32.totalorder %s49, %s50
    %p62 = scmp.eq.s32.totalorder %s19, 1
    %p63 = por %p61, %p62
    %p65 = scmp.ne.s32.totalorder %s50, %s64
    %p66 = scmp.eq.s32.totalorder %s19, 0
    %p67 = por %p65, %p66
    %s69 = sadd.s32 %s68, 1
    %p72 = scmp.eq.s32.totalorder %s13, 1
    %p73 = scmp.ne.s32.totalorder %s68, %s70
    %p74 = scmp.eq.s32.totalorder %s13, 0
    %p75 = por %p73, %p74
    %p76 = scmp.ne.s32.totalorder %s68, %s70
    %p77 = scmp.eq.s32.totalorder %s18, 1
    %p78 = por %p76, %p77
    %p79 = scmp.ne.s32.totalorder %s70, %s71
    %p80 = scmp.eq.s32.totalorder %s18, 0
    %p81 = por %p79, %p80
    %p82 = scmp.ne.s32.totalorder %s70, %s71
    %p83 = scmp.eq.s32.totalorder %s19, 1
    %p84 = por %p82, %p83
    %p86 = scmp.ne.s32.totalorder %s71, %s85
    %p87 = scmp.eq.s32.totalorder %s19, 0
    %p88 = por %p86, %p87
    %s90 = sadd.s32 %s89, 1
    %p93 = scmp.eq.s32.totalorder %s13, 1
    %p94 = scmp.ne.s32.totalorder %s89, %s91
    %p95 = scmp.eq.s32.totalorder %s13, 0
    %p96 = por %p94, %p95
    %p97 = scmp.ne.s32.totalorder %s89, %s91
    %p98 = scmp.eq.s32.totalorder %s18, 1
    %p99 = por %p97, %p98
    %p100 = scmp.ne.s32.totalorder %s91, %s92
    %p101 = scmp.eq.s32.totalorder %s18, 0
    %p102 = por %p100, %p101
    %p103 = scmp.ne.s32.totalorder %s91, %s92
    %p104 = scmp.eq.s32.totalorder %s19, 1
    %p105 = por %p103, %p104
    %p107 = scmp.ne.s32.totalorder %s92, %s106
    %p108 = scmp.eq.s32.totalorder %s19, 0
    %p109 = por %p107, %p108
    %s111 = sadd.s32 %s110, 1
    %p114 = scmp.eq.s32.totalorder %s13, 1
    %p115 = scmp.ne.s32.totalorder %s110, %s112
    %p116 = scmp.eq.s32.totalorder %s13, 0
    %p117 = por %p115, %p116
    %p118 = scmp.ne.s32.totalorder %s110, %s112
    %p119 = scmp.eq.s32.totalorder %s18, 1
    %p120 = por %p118, %p119
    %p121 = scmp.ne.s32.totalorder %s112, %s113
    %p122 = scmp.eq.s32.totalorder %s18, 0
    %p123 = por %p121, %p122
    %p124 = scmp.ne.s32.totalorder %s112, %s113
    %p125 = scmp.eq.s32.totalorder %s19, 1
    %p126 = por %p124, %p125
    %p128 = scmp.ne.s32.totalorder %s113, %s127
    %p129 = scmp.eq.s32.totalorder %s19, 0
    %p130 = por %p128, %p129
    %s132 = sadd.s32 %s131, 1
    %p135 = scmp.eq.s32.totalorder %s13, 1
    %p136 = scmp.ne.s32.totalorder %s131, %s133
    %p137 = scmp.eq.s32.totalorder %s13, 0
    %p138 = por %p136, %p137
    %p139 = scmp.ne.s32.totalorder %s131, %s133
    %p140 = scmp.eq.s32.totalorder %s18, 1
    %p141 = por %p139, %p140
    %p142 = scmp.ne.s32.totalorder %s133, %s134
    %p143 = scmp.eq.s32.totalorder %s18, 0
    %p144 = por %p142, %p143
    %p145 = scmp.ne.s32.totalorder %s133, %s134
    %p146 = scmp.eq.s32.totalorder %s19, 1
    %p147 = por %p145, %p146
    %p149 = scmp.ne.s32.totalorder %s134, %s148
    %p150 = scmp.eq.s32.totalorder %s19, 0
    %p151 = por %p149, %p150
    %s153 = sadd.s32 %s152, 1
    %p156 = scmp.eq.s32.totalorder %s13, 1
    %p157 = scmp.ne.s32.totalorder %s152, %s154
    %p158 = scmp.eq.s32.totalorder %s13, 0
    %p159 = por %p157, %p158
    %p160 = scmp.ne.s32.totalorder %s152, %s154
    %p161 = scmp.eq.s32.totalorder %s18, 1
    %p162 = por %p160, %p161
    %p163 = scmp.ne.s32.totalorder %s154, %s155
    %p164 = scmp.eq.s32.totalorder %s18, 0
    %p165 = por %p163, %p164
    %p166 = scmp.ne.s32.totalorder %s154, %s155
    %p167 = scmp.eq.s32.totalorder %s19, 1
    %p168 = por %p166, %p167
    %p170 = scmp.ne.s32.totalorder %s155, %s169
    %p171 = scmp.eq.s32.totalorder %s19, 0
    %p172 = por %p170, %p171
    %s173 = ssub.s32 %s13, %s20
    %p174 = scmp.eq.s32.totalorder %s173, 0
    %s176 = sadd.s32 %s175, 1
    %s177 = scalar_select %p174, %s175, %s176
    %p180 = pneg %p174
    %p181 = scmp.eq.s32.totalorder %s13, 1
    %p182 = por %p180, %p181
    %p183 = scmp.ne.s32.totalorder %s175, %s178
    %p184 = scmp.eq.s32.totalorder %s13, 0
    %p185 = por %p183, %p184
    %p186 = scmp.ne.s32.totalorder %s175, %s178
    %p187 = scmp.eq.s32.totalorder %s18, 1
    %p188 = por %p186, %p187
    %p189 = scmp.ne.s32.totalorder %s178, %s179
    %p190 = scmp.eq.s32.totalorder %s18, 0
    %p191 = por %p189, %p190
    %p192 = scmp.ne.s32.totalorder %s178, %s179
    %p193 = scmp.eq.s32.totalorder %s19, 1
    %p194 = por %p192, %p193
    %p196 = scmp.ne.s32.totalorder %s179, %s195
    %p197 = scmp.eq.s32.totalorder %s19, 0
    %p198 = por %p196, %p197
    %p199 = scmp.le.s32.totalorder 1, %s13
    %p200 = scmp.lt.s32.totalorder %s13, 3
    %p201 = pnand %p199, %p200
    %p202 = pneg %p201
    // Predicated region
    $region9: #{tpu_custom_call.1} parent=5 // pred_check
      _
    $region10: #{tpu_custom_call.1} parent=5 // pred_check_branch
      %204 = sbr.rel (%p201) target = $region12
    $region11: #{tpu_custom_call.1} parent=5 // pred_region
      %s205 = ssub.s32 %s13, 1
      // Predicated region
      $region13: #{tpu_custom_call.1} parent=11 // pred_check
        %p206 = pneg %p60
      $region14: #{tpu_custom_call.1} parent=11 // pred_check_branch
        %208 = sbr.rel (%p206) target = $region16
      $region15: #{tpu_custom_call.1} parent=11 // pred_region
        _
      $region16: #{tpu_custom_call.1} parent=11 // pred_fallthru
        _
      // Predicated region
      $region17: #{tpu_custom_call.1} parent=11 // pred_check
        %p209 = pneg %p81
      $region18: #{tpu_custom_call.1} parent=11 // pred_check_branch
        %211 = sbr.rel (%p209) target = $region20
      $region19: #{tpu_custom_call.1} parent=11 // pred_region
        _
      $region20: #{tpu_custom_call.1} parent=11 // pred_fallthru
        _
      // Predicated region
      $region21: #{tpu_custom_call.1} parent=11 // pred_check
        %p212 = pneg %p102
      $region22: #{tpu_custom_call.1} parent=11 // pred_check_branch
        %214 = sbr.rel (%p212) target = $region24
      $region23: #{tpu_custom_call.1} parent=11 // pred_region
        _
      $region24: #{tpu_custom_call.1} parent=11 // pred_fallthru
        _
      // Predicated region
      $region25: #{tpu_custom_call.1} parent=11 // pred_check
        %p215 = pneg %p123
      $region26: #{tpu_custom_call.1} parent=11 // pred_check_branch
        %217 = sbr.rel (%p215) target = $region28
      $region27: #{tpu_custom_call.1} parent=11 // pred_region
        _
      $region28: #{tpu_custom_call.1} parent=11 // pred_fallthru
        _
      // Predicated region
      $region29: #{tpu_custom_call.1} parent=11 // pred_check
        %p218 = pneg %p144
      $region30: #{tpu_custom_call.1} parent=11 // pred_check_branch
        %220 = sbr.rel (%p218) target = $region32
      $region31: #{tpu_custom_call.1} parent=11 // pred_region
        _
      $region32: #{tpu_custom_call.1} parent=11 // pred_fallthru
        _
      // Predicated region
      $region33: #{tpu_custom_call.1} parent=11 // pred_check
        %p221 = pneg %p165
      $region34: #{tpu_custom_call.1} parent=11 // pred_check_branch
        %223 = sbr.rel (%p221) target = $region36
      $region35: #{tpu_custom_call.1} parent=11 // pred_region
        _
      $region36: #{tpu_custom_call.1} parent=11 // pred_fallthru
        _
    $region12: #{tpu_custom_call.1} parent=5 // pred_fallthru
      _
    %p224 = scmp.lt.s32.totalorder %s13, 2
    // Predicated region
    $region37: #{tpu_custom_call.1} parent=5 // pred_check
      %p225 = pneg %p224
    $region38: #{tpu_custom_call.1} parent=5 // pred_check_branch
      %227 = sbr.rel (%p225) target = $region40
    $region39: #{tpu_custom_call.1} parent=5 // pred_region
      // Predicated region
      $region41: #{tpu_custom_call.1} parent=39 // pred_check
        %p228 = pneg %p33
      $region42: #{tpu_custom_call.1} parent=39 // pred_check_branch
        %230 = sbr.rel (%p228) target = $region44
      $region43: #{tpu_custom_call.1} parent=39 // pred_region
        %s231 = smul.u32 128, %s13
        %p232 = scmp.lt.s32.totalorder %s231, 255
        %s233 = scalar_select %p232, %s231, 255
        %s234 = smul.addr %s233, 8
        %s235 = scalar_lea.vmem %s0, %s234
        %s236 = smul.u32 128, %s13
      $region44: #{tpu_custom_call.1} parent=39 // pred_fallthru
        _
    $region40: #{tpu_custom_call.1} parent=5 // pred_fallthru
      _
    %p237 = scmp.le.s32.totalorder 1, %s13
    %p238 = scmp.lt.s32.totalorder %s13, 3
    %p239 = pnand %p237, %p238
    %p240 = pneg %p239
    // Predicated region
    $region45: #{tpu_custom_call.1} parent=5 // pred_check
      _
    $region46: #{tpu_custom_call.1} parent=5 // pred_check_branch
      %242 = sbr.rel (%p239) target = $region48
    $region47: #{tpu_custom_call.1} parent=5 // pred_region
      %s243 = ssub.s32 %s13, 1
      %s244 = smul.u32 128, %s18
      %p245 = scmp.lt.s32.totalorder %s244, 255
      %s246 = scalar_select %p245, %s244, 255
      %s247 = smul.addr %s246, 8
      %s248 = scalar_lea.vmem %s0, %s247
      %p249 = pneg %p39
      %p250 = pneg %p36
      %p251 = pneg %p60
      %p252 = pneg %p57
      %p253 = pneg %p81
      %p254 = pneg %p78
      %p255 = pneg %p102
      %p256 = pneg %p99
      %p257 = pneg %p123
      %p258 = pneg %p120
      %p259 = pneg %p144
      %p260 = pneg %p141
      %p261 = pneg %p165
      %p262 = pneg %p162
      %p263 = pneg %p191
      %p264 = pneg %p188
      %s265 = smul.u32 128, %s18
      %p266 = scmp.lt.s32.totalorder %s265, 255
      %s267 = scalar_select %p266, %s265, 255
      %s268 = smul.addr %s267, 8
      %s269 = scalar_lea.vmem %s7, %s268
      %s270 = smul.u32 128, %s18
      %p271 = scmp.lt.s32.totalorder %s270, 255
      %s272 = scalar_select %p271, %s270, 255
      %s273 = smul.addr %s272, 8
      %s274 = scalar_lea.vmem %s0, %s273
      %s275 = smul.u32 128, %s18
      %s276 = smul.u32 128, %s18
      %p277 = scmp.lt.s32.totalorder %s276, 255
      %s278 = scalar_select %p277, %s276, 255
      %s279 = smul.addr %s278, 8
      %s280 = scalar_lea.vmem %s7, %s279
      %s281 = smul.u32 128, %s18
      %v283 = vld [vmem:[%s274] sm:$0xff]
      %v284 = vld [vmem:[%s274 + $0x8] sm:$0xff]
      %v285 = vld [vmem:[%s274 + $0x10] sm:$0xff]
      %v286 = vld [vmem:[%s274 + $0x18] sm:$0xff]
      %v287 = vld [vmem:[%s274 + $0x20] sm:$0xff]
      %v288 = vld [vmem:[%s274 + $0x28] sm:$0xff]
      %v289 = vld [vmem:[%s274 + $0x30] sm:$0xff]
      %v290 = vld [vmem:[%s274 + $0x38] sm:$0xff]
      %v291 = vld [vmem:[%s274 + $0x40] sm:$0xff]
      %v292 = vld [vmem:[%s274 + $0x48] sm:$0xff]
      %v293 = vld [vmem:[%s274 + $0x50] sm:$0xff]
      %v294 = vld [vmem:[%s274 + $0x58] sm:$0xff]
      %v295 = vld [vmem:[%s274 + $0x60] sm:$0xff]
      %v296 = vld [vmem:[%s274 + $0x68] sm:$0xff]
      %v297 = vld [vmem:[%s274 + $0x70] sm:$0xff]
      %v298 = vld [vmem:[%s274 + $0x78] sm:$0xff]
      %v299 = vld [vmem:[%s274 + $0x80] sm:$0xff]
      %v300 = vld [vmem:[%s274 + $0x88] sm:$0xff]
      %v301 = vld [vmem:[%s274 + $0x90] sm:$0xff]
      %v302 = vld [vmem:[%s274 + $0x98] sm:$0xff]
      %v303 = vld [vmem:[%s274 + $0xa0] sm:$0xff]
      %v304 = vld [vmem:[%s274 + $0xa8] sm:$0xff]
      %v305 = vld [vmem:[%s274 + $0xb0] sm:$0xff]
      %v306 = vld [vmem:[%s274 + $0xb8] sm:$0xff]
      %v307 = vld [vmem:[%s274 + $0xc0] sm:$0xff]
      %v308 = vld [vmem:[%s274 + $0xc8] sm:$0xff]
      %v309 = vld [vmem:[%s274 + $0xd0] sm:$0xff]
      %v310 = vld [vmem:[%s274 + $0xd8] sm:$0xff]
      %v311 = vld [vmem:[%s274 + $0xe0] sm:$0xff]
      %v312 = vld [vmem:[%s274 + $0xe8] sm:$0xff]
      %v313 = vld [vmem:[%s274 + $0xf0] sm:$0xff]
      %v314 = vld [vmem:[%s274 + $0xf8] sm:$0xff]
      %v315 = vld [vmem:[%s274 + $0x100] sm:$0xff]
      %v316 = vld [vmem:[%s274 + $0x108] sm:$0xff]
      %v317 = vld [vmem:[%s274 + $0x110] sm:$0xff]
      %v318 = vld [vmem:[%s274 + $0x118] sm:$0xff]
      %v319 = vld [vmem:[%s274 + $0x120] sm:$0xff]
      %v320 = vld [vmem:[%s274 + $0x128] sm:$0xff]
      %v321 = vld [vmem:[%s274 + $0x130] sm:$0xff]
      %v322 = vld [vmem:[%s274 + $0x138] sm:$0xff]
      %v323 = vld [vmem:[%s274 + $0x140] sm:$0xff]
      %v324 = vld [vmem:[%s274 + $0x148] sm:$0xff]
      %v325 = vld [vmem:[%s274 + $0x150] sm:$0xff]
      %v326 = vld [vmem:[%s274 + $0x158] sm:$0xff]
      %v327 = vld [vmem:[%s274 + $0x160] sm:$0xff]
      %v328 = vld [vmem:[%s274 + $0x168] sm:$0xff]
      %v329 = vld [vmem:[%s274 + $0x170] sm:$0xff]
      %v330 = vld [vmem:[%s274 + $0x178] sm:$0xff]
      %v331 = vld [vmem:[%s274 + $0x180] sm:$0xff]
      %v332 = vld [vmem:[%s274 + $0x188] sm:$0xff]
      %v333 = vld [vmem:[%s274 + $0x190] sm:$0xff]
      %v334 = vld [vmem:[%s274 + $0x198] sm:$0xff]
      %v335 = vld [vmem:[%s274 + $0x1a0] sm:$0xff]
      %v336 = vld [vmem:[%s274 + $0x1a8] sm:$0xff]
      %v337 = vld [vmem:[%s274 + $0x1b0] sm:$0xff]
      %v338 = vld [vmem:[%s274 + $0x1b8] sm:$0xff]
      %v339 = vld [vmem:[%s274 + $0x1c0] sm:$0xff]
      %v340 = vld [vmem:[%s274 + $0x1c8] sm:$0xff]
      %v341 = vld [vmem:[%s274 + $0x1d0] sm:$0xff]
      %v342 = vld [vmem:[%s274 + $0x1d8] sm:$0xff]
      %v343 = vld [vmem:[%s274 + $0x1e0] sm:$0xff]
      %v344 = vld [vmem:[%s274 + $0x1e8] sm:$0xff]
      %v345 = vld [vmem:[%s274 + $0x1f0] sm:$0xff]
      %v346 = vld [vmem:[%s274 + $0x1f8] sm:$0xff]
      %v347 = vld [vmem:[%s274 + $0x200] sm:$0xff]
      %v348 = vld [vmem:[%s274 + $0x208] sm:$0xff]
      %v349 = vld [vmem:[%s274 + $0x210] sm:$0xff]
      %v350 = vld [vmem:[%s274 + $0x218] sm:$0xff]
      %v351 = vld [vmem:[%s274 + $0x220] sm:$0xff]
      %v352 = vld [vmem:[%s274 + $0x228] sm:$0xff]
      %v353 = vld [vmem:[%s274 + $0x230] sm:$0xff]
      %v354 = vld [vmem:[%s274 + $0x238] sm:$0xff]
      %v355 = vld [vmem:[%s274 + $0x240] sm:$0xff]
      %v356 = vld [vmem:[%s274 + $0x248] sm:$0xff]
      %v357 = vld [vmem:[%s274 + $0x250] sm:$0xff]
      %v358 = vld [vmem:[%s274 + $0x258] sm:$0xff]
      %v359 = vld [vmem:[%s274 + $0x260] sm:$0xff]
      %v360 = vld [vmem:[%s274 + $0x268] sm:$0xff]
      %v361 = vld [vmem:[%s274 + $0x270] sm:$0xff]
      %v362 = vld [vmem:[%s274 + $0x278] sm:$0xff]
      %v363 = vld [vmem:[%s274 + $0x280] sm:$0xff]
      %v364 = vld [vmem:[%s274 + $0x288] sm:$0xff]
      %v365 = vld [vmem:[%s274 + $0x290] sm:$0xff]
      %v366 = vld [vmem:[%s274 + $0x298] sm:$0xff]
      %v367 = vld [vmem:[%s274 + $0x2a0] sm:$0xff]
      %v368 = vld [vmem:[%s274 + $0x2a8] sm:$0xff]
      %v369 = vld [vmem:[%s274 + $0x2b0] sm:$0xff]
      %v370 = vld [vmem:[%s274 + $0x2b8] sm:$0xff]
      %v371 = vld [vmem:[%s274 + $0x2c0] sm:$0xff]
      %v372 = vld [vmem:[%s274 + $0x2c8] sm:$0xff]
      %v373 = vld [vmem:[%s274 + $0x2d0] sm:$0xff]
      %v374 = vld [vmem:[%s274 + $0x2d8] sm:$0xff]
      %v375 = vld [vmem:[%s274 + $0x2e0] sm:$0xff]
      %v376 = vld [vmem:[%s274 + $0x2e8] sm:$0xff]
      %v377 = vld [vmem:[%s274 + $0x2f0] sm:$0xff]
      %v378 = vld [vmem:[%s274 + $0x2f8] sm:$0xff]
      %v379 = vld [vmem:[%s274 + $0x300] sm:$0xff]
      %v380 = vld [vmem:[%s274 + $0x308] sm:$0xff]
      %v381 = vld [vmem:[%s274 + $0x310] sm:$0xff]
      %v382 = vld [vmem:[%s274 + $0x318] sm:$0xff]
      %v383 = vld [vmem:[%s274 + $0x320] sm:$0xff]
      %v384 = vld [vmem:[%s274 + $0x328] sm:$0xff]
      %v385 = vld [vmem:[%s274 + $0x330] sm:$0xff]
      %v386 = vld [vmem:[%s274 + $0x338] sm:$0xff]
      %v387 = vld [vmem:[%s274 + $0x340] sm:$0xff]
      %v388 = vld [vmem:[%s274 + $0x348] sm:$0xff]
      %v389 = vld [vmem:[%s274 + $0x350] sm:$0xff]
      %v390 = vld [vmem:[%s274 + $0x358] sm:$0xff]
      %v391 = vld [vmem:[%s274 + $0x360] sm:$0xff]
      %v392 = vld [vmem:[%s274 + $0x368] sm:$0xff]
      %v393 = vld [vmem:[%s274 + $0x370] sm:$0xff]
      %v394 = vld [vmem:[%s274 + $0x378] sm:$0xff]
      %v395 = vld [vmem:[%s274 + $0x380] sm:$0xff]
      %v396 = vld [vmem:[%s274 + $0x388] sm:$0xff]
      %v397 = vld [vmem:[%s274 + $0x390] sm:$0xff]
      %v398 = vld [vmem:[%s274 + $0x398] sm:$0xff]
      %v399 = vld [vmem:[%s274 + $0x3a0] sm:$0xff]
      %v400 = vld [vmem:[%s274 + $0x3a8] sm:$0xff]
      %v401 = vld [vmem:[%s274 + $0x3b0] sm:$0xff]
      %v402 = vld [vmem:[%s274 + $0x3b8] sm:$0xff]
      %v403 = vld [vmem:[%s274 + $0x3c0] sm:$0xff]
      %v404 = vld [vmem:[%s274 + $0x3c8] sm:$0xff]
      %v405 = vld [vmem:[%s274 + $0x3d0] sm:$0xff]
      %v406 = vld [vmem:[%s274 + $0x3d8] sm:$0xff]
      %v407 = vld [vmem:[%s274 + $0x3e0] sm:$0xff]
      %v408 = vld [vmem:[%s274 + $0x3e8] sm:$0xff]
      %v409 = vld [vmem:[%s274 + $0x3f0] sm:$0xff]
      %v410 = vld [vmem:[%s274 + $0x3f8] sm:$0xff]
      %v411 = vpack.c.bf16 %v284, %v283
      %v412 = vpack.c.bf16 %v286, %v285
      %v413 = vpack.c.bf16 %v288, %v287
      %v414 = vpack.c.bf16 %v290, %v289
      %v415 = vpack.c.bf16 %v292, %v291
      %v416 = vpack.c.bf16 %v294, %v293
      %v417 = vpack.c.bf16 %v296, %v295
      %v418 = vpack.c.bf16 %v298, %v297
      %v419 = vpack.c.bf16 %v300, %v299
      %v420 = vpack.c.bf16 %v302, %v301
      %v421 = vpack.c.bf16 %v304, %v303
      %v422 = vpack.c.bf16 %v306, %v305
      %v423 = vpack.c.bf16 %v308, %v307
      %v424 = vpack.c.bf16 %v310, %v309
      %v425 = vpack.c.bf16 %v312, %v311
      %v426 = vpack.c.bf16 %v314, %v313
      %v427 = vpack.c.bf16 %v316, %v315
      %v428 = vpack.c.bf16 %v318, %v317
      %v429 = vpack.c.bf16 %v320, %v319
      %v430 = vpack.c.bf16 %v322, %v321
      %v431 = vpack.c.bf16 %v324, %v323
      %v432 = vpack.c.bf16 %v326, %v325
      %v433 = vpack.c.bf16 %v328, %v327
      %v434 = vpack.c.bf16 %v330, %v329
      %v435 = vpack.c.bf16 %v332, %v331
      %v436 = vpack.c.bf16 %v334, %v333
      %v437 = vpack.c.bf16 %v336, %v335
      %v438 = vpack.c.bf16 %v338, %v337
      %v439 = vpack.c.bf16 %v340, %v339
      %v440 = vpack.c.bf16 %v342, %v341
      %v441 = vpack.c.bf16 %v344, %v343
      %v442 = vpack.c.bf16 %v346, %v345
      %v443 = vpack.c.bf16 %v348, %v347
      %v444 = vpack.c.bf16 %v350, %v349
      %v445 = vpack.c.bf16 %v352, %v351
      %v446 = vpack.c.bf16 %v354, %v353
      %v447 = vpack.c.bf16 %v356, %v355
      %v448 = vpack.c.bf16 %v358, %v357
      %v449 = vpack.c.bf16 %v360, %v359
      %v450 = vpack.c.bf16 %v362, %v361
      %v451 = vpack.c.bf16 %v364, %v363
      %v452 = vpack.c.bf16 %v366, %v365
      %v453 = vpack.c.bf16 %v368, %v367
      %v454 = vpack.c.bf16 %v370, %v369
      %v455 = vpack.c.bf16 %v372, %v371
      %v456 = vpack.c.bf16 %v374, %v373
      %v457 = vpack.c.bf16 %v376, %v375
      %v458 = vpack.c.bf16 %v378, %v377
      %v459 = vpack.c.bf16 %v380, %v379
      %v460 = vpack.c.bf16 %v382, %v381
      %v461 = vpack.c.bf16 %v384, %v383
      %v462 = vpack.c.bf16 %v386, %v385
      %v463 = vpack.c.bf16 %v388, %v387
      %v464 = vpack.c.bf16 %v390, %v389
      %v465 = vpack.c.bf16 %v392, %v391
      %v466 = vpack.c.bf16 %v394, %v393
      %v467 = vpack.c.bf16 %v396, %v395
      %v468 = vpack.c.bf16 %v398, %v397
      %v469 = vpack.c.bf16 %v400, %v399
      %v470 = vpack.c.bf16 %v402, %v401
      %v471 = vpack.c.bf16 %v404, %v403
      %v472 = vpack.c.bf16 %v406, %v405
      %v473 = vpack.c.bf16 %v408, %v407
      %v474 = vpack.c.bf16 %v410, %v409
      %v475 = vld [vmem:[%s1] sm:$0xf]
      %v476 = vld [vmem:[%s1 + $0x4] sm:$0xf]
      %v477 = vld [vmem:[%s1 + $0x8] sm:$0xf]
      %v478 = vld [vmem:[%s2] sm:$0x1]
      %v480 = vlaneseq
      %v481 = vshrl.u32 %v480, 7
      %v482 = vsub.s32 0, %v481
      %v483 = vrot.slane %v478, %v482
      %v488 = vunpack.c.l.b16 %v475
      %v489 = vunpack.c.l.b16 %v476
      %v490 = vunpack.c.l.b16 %v477
      %v491 = vpack.c.b16 %v489, %v488
      %v492 = vpack.c.b16 %v490, %v490
      %vm494 = vcmask 195584
      %v496 = vsel %vm494, %v411, 0
      %v499 = vsel %vm494, %v412, 0
      %v502 = vsel %vm494, %v413, 0
      %v505 = vsel %vm494, %v414, 0
      %v508 = vsel %vm494, %v415, 0
      %v511 = vsel %vm494, %v416, 0
      %v514 = vsel %vm494, %v417, 0
      %v517 = vsel %vm494, %v418, 0
      %v520 = vsel %vm494, %v419, 0
      %v523 = vsel %vm494, %v420, 0
      %v526 = vsel %vm494, %v421, 0
      %v529 = vsel %vm494, %v422, 0
      %v532 = vsel %vm494, %v423, 0
      %v535 = vsel %vm494, %v424, 0
      %v538 = vsel %vm494, %v425, 0
      %v541 = vsel %vm494, %v426, 0
      %v544 = vsel %vm494, %v427, 0
      %v547 = vsel %vm494, %v428, 0
      %v550 = vsel %vm494, %v429, 0
      %v553 = vsel %vm494, %v430, 0
      %v556 = vsel %vm494, %v431, 0
      %v559 = vsel %vm494, %v432, 0
      %v562 = vsel %vm494, %v433, 0
      %v565 = vsel %vm494, %v434, 0
      %v568 = vsel %vm494, %v435, 0
      %v571 = vsel %vm494, %v436, 0
      %v574 = vsel %vm494, %v437, 0
      %v577 = vsel %vm494, %v438, 0
      %v580 = vsel %vm494, %v439, 0
      %v583 = vsel %vm494, %v440, 0
      %v586 = vsel %vm494, %v441, 0
      %v589 = vsel %vm494, %v442, 0
      %v592 = vsel %vm494, %v443, 0
      %v595 = vsel %vm494, %v444, 0
      %v598 = vsel %vm494, %v445, 0
      %v601 = vsel %vm494, %v446, 0
      %v604 = vsel %vm494, %v447, 0
      %v607 = vsel %vm494, %v448, 0
      %v610 = vsel %vm494, %v449, 0
      %v613 = vsel %vm494, %v450, 0
      %v616 = vsel %vm494, %v451, 0
      %v619 = vsel %vm494, %v452, 0
      %v622 = vsel %vm494, %v453, 0
      %v625 = vsel %vm494, %v454, 0
      %v628 = vsel %vm494, %v455, 0
      %v631 = vsel %vm494, %v456, 0
      %v634 = vsel %vm494, %v457, 0
      %v637 = vsel %vm494, %v458, 0
      %v640 = vsel %vm494, %v459, 0
      %v643 = vsel %vm494, %v460, 0
      %v646 = vsel %vm494, %v461, 0
      %v649 = vsel %vm494, %v462, 0
      %v652 = vsel %vm494, %v463, 0
      %v655 = vsel %vm494, %v464, 0
      %v658 = vsel %vm494, %v465, 0
      %v661 = vsel %vm494, %v466, 0
      %v664 = vsel %vm494, %v467, 0
      %v667 = vsel %vm494, %v468, 0
      %v670 = vsel %vm494, %v469, 0
      %v673 = vsel %vm494, %v470, 0
      %v676 = vsel %vm494, %v471, 0
      %v679 = vsel %vm494, %v472, 0
      %v682 = vsel %vm494, %v473, 0
      %v685 = vsel %vm494, %v474, 0
      %vm687 = vcmask 1043456
      %v689 = vsel %vm687, %v492, 0
      %691 = vmatprep.subr.bf16.mxu0 0
      %692 = vmatpush1.bf16.msra.mxu0 %v491
      %693 = vmatprep.subr.bf16.mxu0 0
      %694 = vmatpush1.bf16.msra.mxu0 %v689
      %695 = vmatprep.subr.bf16.mxu0 0
      %696 = vmatpush1.bf16.msra.mxu0 0
      %697 = vmatprep.subr.bf16.mxu0 0
      %698 = vmatpush1.bf16.msra.mxu0 0
      %699 = vmatprep.subr.bf16.mxu0 0
      %700 = vmatpush1.bf16.msra.mxu0 0
      %701 = vmatprep.subr.bf16.mxu0 0
      %702 = vmatpush1.bf16.msra.mxu0 0
      %703 = vmatprep.subr.bf16.mxu0 0
      %704 = vmatpush1.bf16.msra.mxu0 0
      %705 = vmatprep.subr.bf16.mxu0 0
      %706 = vmatpush1.bf16.msra.mxu0 0
      %707 = vmatprep.subr.bf16.mxu0 0
      %708 = vmatpush1.bf16.msra.mxu0 0
      %709 = vmatprep.subr.bf16.mxu0 0
      %710 = vmatpush1.bf16.msra.mxu0 0
      %711 = vmatprep.subr.bf16.mxu0 0
      %712 = vmatpush1.bf16.msra.mxu0 0
      %713 = vmatprep.subr.bf16.mxu0 0
      %714 = vmatpush1.bf16.msra.mxu0 0
      %715 = vmatprep.subr.bf16.mxu0 0
      %716 = vmatpush1.bf16.msra.mxu0 0
      %717 = vmatprep.subr.bf16.mxu0 0
      %718 = vmatpush1.bf16.msra.mxu0 0
      %719 = vmatprep.subr.bf16.mxu0 0
      %720 = vmatpush1.bf16.msra.mxu0 0
      %721 = vmatprep.subr.bf16.mxu0 0
      %722 = vmatpush1.bf16.msra.mxu0 0
      %723 = vmatprep.mubr.bf16.mxu0 0
      %724 = vmatmul.mubr.bf16.gmra.mrb[0].mxu0 %v496
      %v725 = vpop.f32.mrb[0].mxu0
      %v726 = vadd.f32 %v483, %v725
      %v727 = vpop.f32.mrb[0].mxu0
      %v728 = vpop.f32.mrb[0].mxu0
      %v729 = vadd.f32 %v483, %v728
      %v730 = vpop.f32.mrb[0].mxu0
      %731 = vmatprep.mubr.bf16.mxu0 0
      %732 = vmatmul.mubr.bf16.gmra.mrb[0].mxu0 %v499
      %v733 = vpop.f32.mrb[0].mxu0
      %v734 = vadd.f32 %v483, %v733
      %v735 = vpop.f32.mrb[0].mxu0
      %v736 = vpop.f32.mrb[0].mxu0
      %v737 = vadd.f32 %v483, %v736
      %v738 = vpop.f32.mrb[0].mxu0
      %739 = vmatprep.mubr.bf16.mxu0 0
      %740 = vmatmul.mubr.bf16.gmra.mrb[0].mxu0 %v502
      %v741 = vpop.f32.mrb[0].mxu0
      %v742 = vadd.f32 %v483, %v741
      %v743 = vpop.f32.mrb[0].mxu0
      %v744 = vpop.f32.mrb[0].mxu0
      %v745 = vadd.f32 %v483, %v744
      %v746 = vpop.f32.mrb[0].mxu0
      %747 = vmatprep.mubr.bf16.mxu0 0
      %748 = vmatmul.mubr.bf16.gmra.mrb[0].mxu0 %v505
      %v749 = vpop.f32.mrb[0].mxu0
      %v750 = vadd.f32 %v483, %v749
      %v751 = vpop.f32.mrb[0].mxu0
      %v752 = vpop.f32.mrb[0].mxu0
      %v753 = vadd.f32 %v483, %v752
      %v754 = vpop.f32.mrb[0].mxu0
      %755 = vmatprep.mubr.bf16.mxu0 0
      %756 = vmatmul.mubr.bf16.gmra.mrb[0].mxu0 %v508
      %v757 = vpop.f32.mrb[0].mxu0
      %v758 = vadd.f32 %v483, %v757
      %v759 = vpop.f32.mrb[0].mxu0
      %v760 = vpop.f32.mrb[0].mxu0
      %v761 = vadd.f32 %v483, %v760
      %v762 = vpop.f32.mrb[0].mxu0
      %763 = vmatprep.mubr.bf16.mxu0 0
      %764 = vmatmul.mubr.bf16.gmra.mrb[0].mxu0 %v511
      %v765 = vpop.f32.mrb[0].mxu0
      %v766 = vadd.f32 %v483, %v765
      %v767 = vpop.f32.mrb[0].mxu0
      %v768 = vpop.f32.mrb[0].mxu0
      %v769 = vadd.f32 %v483, %v768
      %v770 = vpop.f32.mrb[0].mxu0
      %771 = vmatprep.mubr.bf16.mxu0 0
      %772 = vmatmul.mubr.bf16.gmra.mrb[0].mxu0 %v514
      %v773 = vpop.f32.mrb[0].mxu0
      %v774 = vadd.f32 %v483, %v773
      %v775 = vpop.f32.mrb[0].mxu0
      %v776 = vpop.f32.mrb[0].mxu0
      %v777 = vadd.f32 %v483, %v776
      %v778 = vpop.f32.mrb[0].mxu0
      %779 = vmatprep.mubr.bf16.mxu0 0
      %780 = vmatmul.mubr.bf16.gmra.mrb[0].mxu0 %v517
      %v781 = vpop.f32.mrb[0].mxu0
      %v782 = vadd.f32 %v483, %v781
      %v783 = vpop.f32.mrb[0].mxu0
      %v784 = vpop.f32.mrb[0].mxu0
      %v785 = vadd.f32 %v483, %v784
      %v786 = vpop.f32.mrb[0].mxu0
      %787 = vmatprep.mubr.bf16.mxu0 0
      %788 = vmatmul.mubr.bf16.gmra.mrb[0].mxu0 %v520
      %v789 = vpop.f32.mrb[0].mxu0
      %v790 = vadd.f32 %v483, %v789
      %v791 = vpop.f32.mrb[0].mxu0
      %v792 = vpop.f32.mrb[0].mxu0
      %v793 = vadd.f32 %v483, %v792
      %v794 = vpop.f32.mrb[0].mxu0
      %795 = vmatprep.mubr.bf16.mxu0 0
      %796 = vmatmul.mubr.bf16.gmra.mrb[0].mxu0 %v523
      %v797 = vpop.f32.mrb[0].mxu0
      %v798 = vadd.f32 %v483, %v797
      %v799 = vpop.f32.mrb[0].mxu0
      %v800 = vpop.f32.mrb[0].mxu0
      %v801 = vadd.f32 %v483, %v800
      %v802 = vpop.f32.mrb[0].mxu0
      %803 = vmatprep.mubr.bf16.mxu0 0
      %804 = vmatmul.mubr.bf16.gmra.mrb[0].mxu0 %v526
      %v805 = vpop.f32.mrb[0].mxu0
      %v806 = vadd.f32 %v483, %v805
      %v807 = vpop.f32.mrb[0].mxu0
      %v808 = vpop.f32.mrb[0].mxu0
      %v809 = vadd.f32 %v483, %v808
      %v810 = vpop.f32.mrb[0].mxu0
      %811 = vmatprep.mubr.bf16.mxu0 0
      %812 = vmatmul.mubr.bf16.gmra.mrb[0].mxu0 %v529
      %v813 = vpop.f32.mrb[0].mxu0
      %v814 = vadd.f32 %v483, %v813
      %v815 = vpop.f32.mrb[0].mxu0
      %v816 = vpop.f32.mrb[0].mxu0
      %v817 = vadd.f32 %v483, %v816
      %v818 = vpop.f32.mrb[0].mxu0
      %819 = vmatprep.mubr.bf16.mxu0 0
      %820 = vmatmul.mubr.bf16.gmra.mrb[0].mxu0 %v532
      %v821 = vpop.f32.mrb[0].mxu0
      %v822 = vadd.f32 %v483, %v821
      %v823 = vpop.f32.mrb[0].mxu0
      %v824 = vpop.f32.mrb[0].mxu0
      %v825 = vadd.f32 %v483, %v824
      %v826 = vpop.f32.mrb[0].mxu0
      %827 = vmatprep.mubr.bf16.mxu0 0
      %828 = vmatmul.mubr.bf16.gmra.mrb[0].mxu0 %v535
      %v829 = vpop.f32.mrb[0].mxu0
      %v830 = vadd.f32 %v483, %v829
      %v831 = vpop.f32.mrb[0].mxu0
      %v832 = vpop.f32.mrb[0].mxu0
      %v833 = vadd.f32 %v483, %v832
      %v834 = vpop.f32.mrb[0].mxu0
      %835 = vmatprep.mubr.bf16.mxu0 0
      %836 = vmatmul.mubr.bf16.gmra.mrb[0].mxu0 %v538
      %v837 = vpop.f32.mrb[0].mxu0
      %v838 = vadd.f32 %v483, %v837
      %v839 = vpop.f32.mrb[0].mxu0
      %v840 = vpop.f32.mrb[0].mxu0
      %v841 = vadd.f32 %v483, %v840
      %v842 = vpop.f32.mrb[0].mxu0
      %843 = vmatprep.mubr.bf16.mxu0 0
      %844 = vmatmul.mubr.bf16.gmra.mrb[0].mxu0 %v541
      %v845 = vpop.f32.mrb[0].mxu0
      %v846 = vadd.f32 %v483, %v845
      %v847 = vpop.f32.mrb[0].mxu0
      %v848 = vpop.f32.mrb[0].mxu0
      %v849 = vadd.f32 %v483, %v848
      %v850 = vpop.f32.mrb[0].mxu0
      %851 = vmatprep.mubr.bf16.mxu0 0
      %852 = vmatmul.mubr.bf16.gmra.mrb[0].mxu0 %v544
      %v853 = vpop.f32.mrb[0].mxu0
      %v854 = vadd.f32 %v483, %v853
      %v855 = vpop.f32.mrb[0].mxu0
      %v856 = vpop.f32.mrb[0].mxu0
      %v857 = vadd.f32 %v483, %v856
      %v858 = vpop.f32.mrb[0].mxu0
      %859 = vmatprep.mubr.bf16.mxu0 0
      %860 = vmatmul.mubr.bf16.gmra.mrb[0].mxu0 %v547
      %v861 = vpop.f32.mrb[0].mxu0
      %v862 = vadd.f32 %v483, %v861
      %v863 = vpop.f32.mrb[0].mxu0
      %v864 = vpop.f32.mrb[0].mxu0
      %v865 = vadd.f32 %v483, %v864
      %v866 = vpop.f32.mrb[0].mxu0
      %867 = vmatprep.mubr.bf16.mxu0 0
      %868 = vmatmul.mubr.bf16.gmra.mrb[0].mxu0 %v550
      %v869 = vpop.f32.mrb[0].mxu0
      %v870 = vadd.f32 %v483, %v869
      %v871 = vpop.f32.mrb[0].mxu0
      %v872 = vpop.f32.mrb[0].mxu0
      %v873 = vadd.f32 %v483, %v872
      %v874 = vpop.f32.mrb[0].mxu0
      %875 = vmatprep.mubr.bf16.mxu0 0
      %876 = vmatmul.mubr.bf16.gmra.mrb[0].mxu0 %v553
      %v877 = vpop.f32.mrb[0].mxu0
      %v878 = vadd.f32 %v483, %v877
      %v879 = vpop.f32.mrb[0].mxu0
      %v880 = vpop.f32.mrb[0].mxu0
      %v881 = vadd.f32 %v483, %v880
      %v882 = vpop.f32.mrb[0].mxu0
      %883 = vmatprep.mubr.bf16.mxu0 0
      %884 = vmatmul.mubr.bf16.gmra.mrb[0].mxu0 %v556
      %v885 = vpop.f32.mrb[0].mxu0
      %v886 = vadd.f32 %v483, %v885
      %v887 = vpop.f32.mrb[0].mxu0
      %v888 = vpop.f32.mrb[0].mxu0
      %v889 = vadd.f32 %v483, %v888
      %v890 = vpop.f32.mrb[0].mxu0
      %891 = vmatprep.mubr.bf16.mxu0 0
      %892 = vmatmul.mubr.bf16.gmra.mrb[0].mxu0 %v559
      %v893 = vpop.f32.mrb[0].mxu0
      %v894 = vadd.f32 %v483, %v893
      %v895 = vpop.f32.mrb[0].mxu0
      %v896 = vpop.f32.mrb[0].mxu0
      %v897 = vadd.f32 %v483, %v896
      %v898 = vpop.f32.mrb[0].mxu0
      %899 = vmatprep.mubr.bf16.mxu0 0
      %900 = vmatmul.mubr.bf16.gmra.mrb[0].mxu0 %v562
      %v901 = vpop.f32.mrb[0].mxu0
      %v902 = vadd.f32 %v483, %v901
      %v903 = vpop.f32.mrb[0].mxu0
      %v904 = vpop.f32.mrb[0].mxu0
      %v905 = vadd.f32 %v483, %v904
      %v906 = vpop.f32.mrb[0].mxu0
      %907 = vmatprep.mubr.bf16.mxu0 0
      %908 = vmatmul.mubr.bf16.gmra.mrb[0].mxu0 %v565
      %v909 = vpop.f32.mrb[0].mxu0
      %v910 = vadd.f32 %v483, %v909
      %v911 = vpop.f32.mrb[0].mxu0
      %v912 = vpop.f32.mrb[0].mxu0
      %v913 = vadd.f32 %v483, %v912
      %v914 = vpop.f32.mrb[0].mxu0
      %915 = vmatprep.mubr.bf16.mxu0 0
      %916 = vmatmul.mubr.bf16.gmra.mrb[0].mxu0 %v568
      %v917 = vpop.f32.mrb[0].mxu0
      %v918 = vadd.f32 %v483, %v917
      %v919 = vpop.f32.mrb[0].mxu0
      %v920 = vpop.f32.mrb[0].mxu0
      %v921 = vadd.f32 %v483, %v920
      %v922 = vpop.f32.mrb[0].mxu0
      %923 = vmatprep.mubr.bf16.mxu0 0
      %924 = vmatmul.mubr.bf16.gmra.mrb[0].mxu0 %v571
      %v925 = vpop.f32.mrb[0].mxu0
      %v926 = vadd.f32 %v483, %v925
      %v927 = vpop.f32.mrb[0].mxu0
      %v928 = vpop.f32.mrb[0].mxu0
      %v929 = vadd.f32 %v483, %v928
      %v930 = vpop.f32.mrb[0].mxu0
      %931 = vmatprep.mubr.bf16.mxu0 0
      %932 = vmatmul.mubr.bf16.gmra.mrb[0].mxu0 %v574
      %v933 = vpop.f32.mrb[0].mxu0
      %v934 = vadd.f32 %v483, %v933
      %v935 = vpop.f32.mrb[0].mxu0
      %v936 = vpop.f32.mrb[0].mxu0
      %v937 = vadd.f32 %v483, %v936
      %v938 = vpop.f32.mrb[0].mxu0
      %939 = vmatprep.mubr.bf16.mxu0 0
      %940 = vmatmul.mubr.bf16.gmra.mrb[0].mxu0 %v577
      %v941 = vpop.f32.mrb[0].mxu0
      %v942 = vadd.f32 %v483, %v941
      %v943 = vpop.f32.mrb[0].mxu0
      %v944 = vpop.f32.mrb[0].mxu0
      %v945 = vadd.f32 %v483, %v944
      %v946 = vpop.f32.mrb[0].mxu0
      %947 = vmatprep.mubr.bf16.mxu0 0
      %948 = vmatmul.mubr.bf16.gmra.mrb[0].mxu0 %v580
      %v949 = vpop.f32.mrb[0].mxu0
      %v950 = vadd.f32 %v483, %v949
      %v951 = vpop.f32.mrb[0].mxu0
      %v952 = vpop.f32.mrb[0].mxu0
      %v953 = vadd.f32 %v483, %v952
      %v954 = vpop.f32.mrb[0].mxu0
      %955 = vmatprep.mubr.bf16.mxu0 0
      %956 = vmatmul.mubr.bf16.gmra.mrb[0].mxu0 %v583
      %v957 = vpop.f32.mrb[0].mxu0
      %v958 = vadd.f32 %v483, %v957
      %v959 = vpop.f32.mrb[0].mxu0
      %v960 = vpop.f32.mrb[0].mxu0
      %v961 = vadd.f32 %v483, %v960
      %v962 = vpop.f32.mrb[0].mxu0
      %963 = vmatprep.mubr.bf16.mxu0 0
      %964 = vmatmul.mubr.bf16.gmra.mrb[0].mxu0 %v586
      %v965 = vpop.f32.mrb[0].mxu0
      %v966 = vadd.f32 %v483, %v965
      %v967 = vpop.f32.mrb[0].mxu0
      %v968 = vpop.f32.mrb[0].mxu0
      %v969 = vadd.f32 %v483, %v968
      %v970 = vpop.f32.mrb[0].mxu0
      %971 = vmatprep.mubr.bf16.mxu0 0
      %972 = vmatmul.mubr.bf16.gmra.mrb[0].mxu0 %v589
      %v973 = vpop.f32.mrb[0].mxu0
      %v974 = vadd.f32 %v483, %v973
      %v975 = vpop.f32.mrb[0].mxu0
      %v976 = vpop.f32.mrb[0].mxu0
      %v977 = vadd.f32 %v483, %v976
      %v978 = vpop.f32.mrb[0].mxu0
      %979 = vmatprep.mubr.bf16.mxu0 0
      %980 = vmatmul.mubr.bf16.gmra.mrb[0].mxu0 %v592
      %v981 = vpop.f32.mrb[0].mxu0
      %v982 = vadd.f32 %v483, %v981
      %v983 = vpop.f32.mrb[0].mxu0
      %v984 = vpop.f32.mrb[0].mxu0
      %v985 = vadd.f32 %v483, %v984
      %v986 = vpop.f32.mrb[0].mxu0
      %987 = vmatprep.mubr.bf16.mxu0 0
      %988 = vmatmul.mubr.bf16.gmra.mrb[0].mxu0 %v595
      %v989 = vpop.f32.mrb[0].mxu0
      %v990 = vadd.f32 %v483, %v989
      %v991 = vpop.f32.mrb[0].mxu0
      %v992 = vpop.f32.mrb[0].mxu0
      %v993 = vadd.f32 %v483, %v992
      %v994 = vpop.f32.mrb[0].mxu0
      %995 = vmatprep.mubr.bf16.mxu0 0
      %996 = vmatmul.mubr.bf16.gmra.mrb[0].mxu0 %v598
      %v997 = vpop.f32.mrb[0].mxu0
      %v998 = vadd.f32 %v483, %v997
      %v999 = vpop.f32.mrb[0].mxu0
      %v1000 = vpop.f32.mrb[0].mxu0
      %v1001 = vadd.f32 %v483, %v1000
      %v1002 = vpop.f32.mrb[0].mxu0
      %1003 = vmatprep.mubr.bf16.mxu0 0
      %1004 = vmatmul.mubr.bf16.gmra.mrb[0].mxu0 %v601
      %v1005 = vpop.f32.mrb[0].mxu0
      %v1006 = vadd.f32 %v483, %v1005
      %v1007 = vpop.f32.mrb[0].mxu0
      %v1008 = vpop.f32.mrb[0].mxu0
      %v1009 = vadd.f32 %v483, %v1008
      %v1010 = vpop.f32.mrb[0].mxu0
      %1011 = vmatprep.mubr.bf16.mxu0 0
      %1012 = vmatmul.mubr.bf16.gmra.mrb[0].mxu0 %v604
      %v1013 = vpop.f32.mrb[0].mxu0
      %v1014 = vadd.f32 %v483, %v1013
      %v1015 = vpop.f32.mrb[0].mxu0
      %v1016 = vpop.f32.mrb[0].mxu0
      %v1017 = vadd.f32 %v483, %v1016
      %v1018 = vpop.f32.mrb[0].mxu0
      %1019 = vmatprep.mubr.bf16.mxu0 0
      %1020 = vmatmul.mubr.bf16.gmra.mrb[0].mxu0 %v607
      %v1021 = vpop.f32.mrb[0].mxu0
      %v1022 = vadd.f32 %v483, %v1021
      %v1023 = vpop.f32.mrb[0].mxu0
      %v1024 = vpop.f32.mrb[0].mxu0
      %v1025 = vadd.f32 %v483, %v1024
      %v1026 = vpop.f32.mrb[0].mxu0
      %1027 = vmatprep.mubr.bf16.mxu0 0
      %1028 = vmatmul.mubr.bf16.gmra.mrb[0].mxu0 %v610
      %v1029 = vpop.f32.mrb[0].mxu0
      %v1030 = vadd.f32 %v483, %v1029
      %v1031 = vpop.f32.mrb[0].mxu0
      %v1032 = vpop.f32.mrb[0].mxu0
      %v1033 = vadd.f32 %v483, %v1032
      %v1034 = vpop.f32.mrb[0].mxu0
      %1035 = vmatprep.mubr.bf16.mxu0 0
      %1036 = vmatmul.mubr.bf16.gmra.mrb[0].mxu0 %v613
      %v1037 = vpop.f32.mrb[0].mxu0
      %v1038 = vadd.f32 %v483, %v1037
      %v1039 = vpop.f32.mrb[0].mxu0
      %v1040 = vpop.f32.mrb[0].mxu0
      %v1041 = vadd.f32 %v483, %v1040
      %v1042 = vpop.f32.mrb[0].mxu0
      %1043 = vmatprep.mubr.bf16.mxu0 0
      %1044 = vmatmul.mubr.bf16.gmra.mrb[0].mxu0 %v616
      %v1045 = vpop.f32.mrb[0].mxu0
      %v1046 = vadd.f32 %v483, %v1045
      %v1047 = vpop.f32.mrb[0].mxu0
      %v1048 = vpop.f32.mrb[0].mxu0
      %v1049 = vadd.f32 %v483, %v1048
      %v1050 = vpop.f32.mrb[0].mxu0
      %1051 = vmatprep.mubr.bf16.mxu0 0
      %1052 = vmatmul.mubr.bf16.gmra.mrb[0].mxu0 %v619
      %v1053 = vpop.f32.mrb[0].mxu0
      %v1054 = vadd.f32 %v483, %v1053
      %v1055 = vpop.f32.mrb[0].mxu0
      %v1056 = vpop.f32.mrb[0].mxu0
      %v1057 = vadd.f32 %v483, %v1056
      %v1058 = vpop.f32.mrb[0].mxu0
      %1059 = vmatprep.mubr.bf16.mxu0 0
      %1060 = vmatmul.mubr.bf16.gmra.mrb[0].mxu0 %v622
      %v1061 = vpop.f32.mrb[0].mxu0
      %v1062 = vadd.f32 %v483, %v1061
      %v1063 = vpop.f32.mrb[0].mxu0
      %v1064 = vpop.f32.mrb[0].mxu0
      %v1065 = vadd.f32 %v483, %v1064
      %v1066 = vpop.f32.mrb[0].mxu0
      %1067 = vmatprep.mubr.bf16.mxu0 0
      %1068 = vmatmul.mubr.bf16.gmra.mrb[0].mxu0 %v625
      %v1069 = vpop.f32.mrb[0].mxu0
      %v1070 = vadd.f32 %v483, %v1069
      %v1071 = vpop.f32.mrb[0].mxu0
      %v1072 = vpop.f32.mrb[0].mxu0
      %v1073 = vadd.f32 %v483, %v1072
      %v1074 = vpop.f32.mrb[0].mxu0
      %1075 = vmatprep.mubr.bf16.mxu0 0
      %1076 = vmatmul.mubr.bf16.gmra.mrb[0].mxu0 %v628
      %v1077 = vpop.f32.mrb[0].mxu0
      %v1078 = vadd.f32 %v483, %v1077
      %v1079 = vpop.f32.mrb[0].mxu0
      %v1080 = vpop.f32.mrb[0].mxu0
      %v1081 = vadd.f32 %v483, %v1080
      %v1082 = vpop.f32.mrb[0].mxu0
      %1083 = vmatprep.mubr.bf16.mxu0 0
      %1084 = vmatmul.mubr.bf16.gmra.mrb[0].mxu0 %v631
      %v1085 = vpop.f32.mrb[0].mxu0
      %v1086 = vadd.f32 %v483, %v1085
      %v1087 = vpop.f32.mrb[0].mxu0
      %v1088 = vpop.f32.mrb[0].mxu0
      %v1089 = vadd.f32 %v483, %v1088
      %v1090 = vpop.f32.mrb[0].mxu0
      %1091 = vmatprep.mubr.bf16.mxu0 0
      %1092 = vmatmul.mubr.bf16.gmra.mrb[0].mxu0 %v634
      %v1093 = vpop.f32.mrb[0].mxu0
      %v1094 = vadd.f32 %v483, %v1093
      %v1095 = vpop.f32.mrb[0].mxu0
      %v1096 = vpop.f32.mrb[0].mxu0
      %v1097 = vadd.f32 %v483, %v1096
      %v1098 = vpop.f32.mrb[0].mxu0
      %1099 = vmatprep.mubr.bf16.mxu0 0
      %1100 = vmatmul.mubr.bf16.gmra.mrb[0].mxu0 %v637
      %v1101 = vpop.f32.mrb[0].mxu0
      %v1102 = vadd.f32 %v483, %v1101
      %v1103 = vpop.f32.mrb[0].mxu0
      %v1104 = vpop.f32.mrb[0].mxu0
      %v1105 = vadd.f32 %v483, %v1104
      %v1106 = vpop.f32.mrb[0].mxu0
      %1107 = vmatprep.mubr.bf16.mxu0 0
      %1108 = vmatmul.mubr.bf16.gmra.mrb[0].mxu0 %v640
      %v1109 = vpop.f32.mrb[0].mxu0
      %v1110 = vadd.f32 %v483, %v1109
      %v1111 = vpop.f32.mrb[0].mxu0
      %v1112 = vpop.f32.mrb[0].mxu0
      %v1113 = vadd.f32 %v483, %v1112
      %v1114 = vpop.f32.mrb[0].mxu0
      %1115 = vmatprep.mubr.bf16.mxu0 0
      %1116 = vmatmul.mubr.bf16.gmra.mrb[0].mxu0 %v643
      %v1117 = vpop.f32.mrb[0].mxu0
      %v1118 = vadd.f32 %v483, %v1117
      %v1119 = vpop.f32.mrb[0].mxu0
      %v1120 = vpop.f32.mrb[0].mxu0
      %v1121 = vadd.f32 %v483, %v1120
      %v1122 = vpop.f32.mrb[0].mxu0
      %1123 = vmatprep.mubr.bf16.mxu0 0
      %1124 = vmatmul.mubr.bf16.gmra.mrb[0].mxu0 %v646
      %v1125 = vpop.f32.mrb[0].mxu0
      %v1126 = vadd.f32 %v483, %v1125
      %v1127 = vpop.f32.mrb[0].mxu0
      %v1128 = vpop.f32.mrb[0].mxu0
      %v1129 = vadd.f32 %v483, %v1128
      %v1130 = vpop.f32.mrb[0].mxu0
      %1131 = vmatprep.mubr.bf16.mxu0 0
      %1132 = vmatmul.mubr.bf16.gmra.mrb[0].mxu0 %v649
      %v1133 = vpop.f32.mrb[0].mxu0
      %v1134 = vadd.f32 %v483, %v1133
      %v1135 = vpop.f32.mrb[0].mxu0
      %v1136 = vpop.f32.mrb[0].mxu0
      %v1137 = vadd.f32 %v483, %v1136
      %v1138 = vpop.f32.mrb[0].mxu0
      %1139 = vmatprep.mubr.bf16.mxu0 0
      %1140 = vmatmul.mubr.bf16.gmra.mrb[0].mxu0 %v652
      %v1141 = vpop.f32.mrb[0].mxu0
      %v1142 = vadd.f32 %v483, %v1141
      %v1143 = vpop.f32.mrb[0].mxu0
      %v1144 = vpop.f32.mrb[0].mxu0
      %v1145 = vadd.f32 %v483, %v1144
      %v1146 = vpop.f32.mrb[0].mxu0
      %1147 = vmatprep.mubr.bf16.mxu0 0
      %1148 = vmatmul.mubr.bf16.gmra.mrb[0].mxu0 %v655
      %v1149 = vpop.f32.mrb[0].mxu0
      %v1150 = vadd.f32 %v483, %v1149
      %v1151 = vpop.f32.mrb[0].mxu0
      %v1152 = vpop.f32.mrb[0].mxu0
      %v1153 = vadd.f32 %v483, %v1152
      %v1154 = vpop.f32.mrb[0].mxu0
      %1155 = vmatprep.mubr.bf16.mxu0 0
      %1156 = vmatmul.mubr.bf16.gmra.mrb[0].mxu0 %v658
      %v1157 = vpop.f32.mrb[0].mxu0
      %v1158 = vadd.f32 %v483, %v1157
      %v1159 = vpop.f32.mrb[0].mxu0
      %v1160 = vpop.f32.mrb[0].mxu0
      %v1161 = vadd.f32 %v483, %v1160
      %v1162 = vpop.f32.mrb[0].mxu0
      %1163 = vmatprep.mubr.bf16.mxu0 0
      %1164 = vmatmul.mubr.bf16.gmra.mrb[0].mxu0 %v661
      %v1165 = vpop.f32.mrb[0].mxu0
      %v1166 = vadd.f32 %v483, %v1165
      %v1167 = vpop.f32.mrb[0].mxu0
      %v1168 = vpop.f32.mrb[0].mxu0
      %v1169 = vadd.f32 %v483, %v1168
      %v1170 = vpop.f32.mrb[0].mxu0
      %1171 = vmatprep.mubr.bf16.mxu0 0
      %1172 = vmatmul.mubr.bf16.gmra.mrb[0].mxu0 %v664
      %v1173 = vpop.f32.mrb[0].mxu0
      %v1174 = vadd.f32 %v483, %v1173
      %v1175 = vpop.f32.mrb[0].mxu0
      %v1176 = vpop.f32.mrb[0].mxu0
      %v1177 = vadd.f32 %v483, %v1176
      %v1178 = vpop.f32.mrb[0].mxu0
      %1179 = vmatprep.mubr.bf16.mxu0 0
      %1180 = vmatmul.mubr.bf16.gmra.mrb[0].mxu0 %v667
      %v1181 = vpop.f32.mrb[0].mxu0
      %v1182 = vadd.f32 %v483, %v1181
      %v1183 = vpop.f32.mrb[0].mxu0
      %v1184 = vpop.f32.mrb[0].mxu0
      %v1185 = vadd.f32 %v483, %v1184
      %v1186 = vpop.f32.mrb[0].mxu0
      %1187 = vmatprep.mubr.bf16.mxu0 0
      %1188 = vmatmul.mubr.bf16.gmra.mrb[0].mxu0 %v670
      %v1189 = vpop.f32.mrb[0].mxu0
      %v1190 = vadd.f32 %v483, %v1189
      %v1191 = vpop.f32.mrb[0].mxu0
      %v1192 = vpop.f32.mrb[0].mxu0
      %v1193 = vadd.f32 %v483, %v1192
      %v1194 = vpop.f32.mrb[0].mxu0
      %1195 = vmatprep.mubr.bf16.mxu0 0
      %1196 = vmatmul.mubr.bf16.gmra.mrb[0].mxu0 %v673
      %v1197 = vpop.f32.mrb[0].mxu0
      %v1198 = vadd.f32 %v483, %v1197
      %v1199 = vpop.f32.mrb[0].mxu0
      %v1200 = vpop.f32.mrb[0].mxu0
      %v1201 = vadd.f32 %v483, %v1200
      %v1202 = vpop.f32.mrb[0].mxu0
      %1203 = vmatprep.mubr.bf16.mxu0 0
      %1204 = vmatmul.mubr.bf16.gmra.mrb[0].mxu0 %v676
      %v1205 = vpop.f32.mrb[0].mxu0
      %v1206 = vadd.f32 %v483, %v1205
      %v1207 = vpop.f32.mrb[0].mxu0
      %v1208 = vpop.f32.mrb[0].mxu0
      %v1209 = vadd.f32 %v483, %v1208
      %v1210 = vpop.f32.mrb[0].mxu0
      %1211 = vmatprep.mubr.bf16.mxu0 0
      %1212 = vmatmul.mubr.bf16.gmra.mrb[0].mxu0 %v679
      %v1213 = vpop.f32.mrb[0].mxu0
      %v1214 = vadd.f32 %v483, %v1213
      %v1215 = vpop.f32.mrb[0].mxu0
      %v1216 = vpop.f32.mrb[0].mxu0
      %v1217 = vadd.f32 %v483, %v1216
      %v1218 = vpop.f32.mrb[0].mxu0
      %1219 = vmatprep.mubr.bf16.mxu0 0
      %1220 = vmatmul.mubr.bf16.gmra.mrb[0].mxu0 %v682
      %v1221 = vpop.f32.mrb[0].mxu0
      %v1222 = vadd.f32 %v483, %v1221
      %v1223 = vpop.f32.mrb[0].mxu0
      %v1224 = vpop.f32.mrb[0].mxu0
      %v1225 = vadd.f32 %v483, %v1224
      %v1226 = vpop.f32.mrb[0].mxu0
      %1227 = vmatprep.mubr.bf16.mxu0 0
      %1228 = vmatmul.mubr.bf16.gmra.mrb[0].mxu0 %v685
      %v1229 = vpop.f32.mrb[0].mxu0
      %v1230 = vadd.f32 %v483, %v1229
      %v1231 = vpop.f32.mrb[0].mxu0
      %v1232 = vpop.f32.mrb[0].mxu0
      %v1233 = vadd.f32 %v483, %v1232
      %v1234 = vpop.f32.mrb[0].mxu0
      %1235 = vdwg.mxu0
      %v1236 = vmax.f32 %v726, 0.0
      %v1237 = vmax.f32 %v729, 0.0
      %v1238 = vmax.f32 %v734, 0.0
      %v1239 = vmax.f32 %v737, 0.0
      %v1240 = vmax.f32 %v742, 0.0
      %v1241 = vmax.f32 %v745, 0.0
      %v1242 = vmax.f32 %v750, 0.0
      %v1243 = vmax.f32 %v753, 0.0
      %v1244 = vmax.f32 %v758, 0.0
      %v1245 = vmax.f32 %v761, 0.0
      %v1246 = vmax.f32 %v766, 0.0
      %v1247 = vmax.f32 %v769, 0.0
      %v1248 = vmax.f32 %v774, 0.0
      %v1249 = vmax.f32 %v777, 0.0
      %v1250 = vmax.f32 %v782, 0.0
      %v1251 = vmax.f32 %v785, 0.0
      %v1252 = vmax.f32 %v790, 0.0
      %v1253 = vmax.f32 %v793, 0.0
      %v1254 = vmax.f32 %v798, 0.0
      %v1255 = vmax.f32 %v801, 0.0
      %v1256 = vmax.f32 %v806, 0.0
      %v1257 = vmax.f32 %v809, 0.0
      %v1258 = vmax.f32 %v814, 0.0
      %v1259 = vmax.f32 %v817, 0.0
      %v1260 = vmax.f32 %v822, 0.0
      %v1261 = vmax.f32 %v825, 0.0
      %v1262 = vmax.f32 %v830, 0.0
      %v1263 = vmax.f32 %v833, 0.0
      %v1264 = vmax.f32 %v838, 0.0
      %v1265 = vmax.f32 %v841, 0.0
      %v1266 = vmax.f32 %v846, 0.0
      %v1267 = vmax.f32 %v849, 0.0
      %v1268 = vmax.f32 %v854, 0.0
      %v1269 = vmax.f32 %v857, 0.0
      %v1270 = vmax.f32 %v862, 0.0
      %v1271 = vmax.f32 %v865, 0.0
      %v1272 = vmax.f32 %v870, 0.0
      %v1273 = vmax.f32 %v873, 0.0
      %v1274 = vmax.f32 %v878, 0.0
      %v1275 = vmax.f32 %v881, 0.0
      %v1276 = vmax.f32 %v886, 0.0
      %v1277 = vmax.f32 %v889, 0.0
      %v1278 = vmax.f32 %v894, 0.0
      %v1279 = vmax.f32 %v897, 0.0
      %v1280 = vmax.f32 %v902, 0.0
      %v1281 = vmax.f32 %v905, 0.0
      %v1282 = vmax.f32 %v910, 0.0
      %v1283 = vmax.f32 %v913, 0.0
      %v1284 = vmax.f32 %v918, 0.0
      %v1285 = vmax.f32 %v921, 0.0
      %v1286 = vmax.f32 %v926, 0.0
      %v1287 = vmax.f32 %v929, 0.0
      %v1288 = vmax.f32 %v934, 0.0
      %v1289 = vmax.f32 %v937, 0.0
      %v1290 = vmax.f32 %v942, 0.0
      %v1291 = vmax.f32 %v945, 0.0
      %v1292 = vmax.f32 %v950, 0.0
      %v1293 = vmax.f32 %v953, 0.0
      %v1294 = vmax.f32 %v958, 0.0
      %v1295 = vmax.f32 %v961, 0.0
      %v1296 = vmax.f32 %v966, 0.0
      %v1297 = vmax.f32 %v969, 0.0
      %v1298 = vmax.f32 %v974, 0.0
      %v1299 = vmax.f32 %v977, 0.0
      %v1300 = vmax.f32 %v982, 0.0
      %v1301 = vmax.f32 %v985, 0.0
      %v1302 = vmax.f32 %v990, 0.0
      %v1303 = vmax.f32 %v993, 0.0
      %v1304 = vmax.f32 %v998, 0.0
      %v1305 = vmax.f32 %v1001, 0.0
      %v1306 = vmax.f32 %v1006, 0.0
      %v1307 = vmax.f32 %v1009, 0.0
      %v1308 = vmax.f32 %v1014, 0.0
      %v1309 = vmax.f32 %v1017, 0.0
      %v1310 = vmax.f32 %v1022, 0.0
      %v1311 = vmax.f32 %v1025, 0.0
      %v1312 = vmax.f32 %v1030, 0.0
      %v1313 = vmax.f32 %v1033, 0.0
      %v1314 = vmax.f32 %v1038, 0.0
      %v1315 = vmax.f32 %v1041, 0.0
      %v1316 = vmax.f32 %v1046, 0.0
      %v1317 = vmax.f32 %v1049, 0.0
      %v1318 = vmax.f32 %v1054, 0.0
      %v1319 = vmax.f32 %v1057, 0.0
      %v1320 = vmax.f32 %v1062, 0.0
      %v1321 = vmax.f32 %v1065, 0.0
      %v1322 = vmax.f32 %v1070, 0.0
      %v1323 = vmax.f32 %v1073, 0.0
      %v1324 = vmax.f32 %v1078, 0.0
      %v1325 = vmax.f32 %v1081, 0.0
      %v1326 = vmax.f32 %v1086, 0.0
      %v1327 = vmax.f32 %v1089, 0.0
      %v1328 = vmax.f32 %v1094, 0.0
      %v1329 = vmax.f32 %v1097, 0.0
      %v1330 = vmax.f32 %v1102, 0.0
      %v1331 = vmax.f32 %v1105, 0.0
      %v1332 = vmax.f32 %v1110, 0.0
      %v1333 = vmax.f32 %v1113, 0.0
      %v1334 = vmax.f32 %v1118, 0.0
      %v1335 = vmax.f32 %v1121, 0.0
      %v1336 = vmax.f32 %v1126, 0.0
      %v1337 = vmax.f32 %v1129, 0.0
      %v1338 = vmax.f32 %v1134, 0.0
      %v1339 = vmax.f32 %v1137, 0.0
      %v1340 = vmax.f32 %v1142, 0.0
      %v1341 = vmax.f32 %v1145, 0.0
      %v1342 = vmax.f32 %v1150, 0.0
      %v1343 = vmax.f32 %v1153, 0.0
      %v1344 = vmax.f32 %v1158, 0.0
      %v1345 = vmax.f32 %v1161, 0.0
      %v1346 = vmax.f32 %v1166, 0.0
      %v1347 = vmax.f32 %v1169, 0.0
      %v1348 = vmax.f32 %v1174, 0.0
      %v1349 = vmax.f32 %v1177, 0.0
      %v1350 = vmax.f32 %v1182, 0.0
      %v1351 = vmax.f32 %v1185, 0.0
      %v1352 = vmax.f32 %v1190, 0.0
      %v1353 = vmax.f32 %v1193, 0.0
      %v1354 = vmax.f32 %v1198, 0.0
      %v1355 = vmax.f32 %v1201, 0.0
      %v1356 = vmax.f32 %v1206, 0.0
      %v1357 = vmax.f32 %v1209, 0.0
      %v1358 = vmax.f32 %v1214, 0.0
      %v1359 = vmax.f32 %v1217, 0.0
      %v1360 = vmax.f32 %v1222, 0.0
      %v1361 = vmax.f32 %v1225, 0.0
      %v1362 = vmax.f32 %v1230, 0.0
      %v1363 = vmax.f32 %v1233, 0.0
      %v1364 = vpack.c.bf16 %v1237, %v1236
      %v1365 = vpack.c.bf16 %v1239, %v1238
      %v1366 = vpack.c.bf16 %v1241, %v1240
      %v1367 = vpack.c.bf16 %v1243, %v1242
      %v1368 = vpack.c.bf16 %v1245, %v1244
      %v1369 = vpack.c.bf16 %v1247, %v1246
      %v1370 = vpack.c.bf16 %v1249, %v1248
      %v1371 = vpack.c.bf16 %v1251, %v1250
      %v1372 = vpack.c.bf16 %v1253, %v1252
      %v1373 = vpack.c.bf16 %v1255, %v1254
      %v1374 = vpack.c.bf16 %v1257, %v1256
      %v1375 = vpack.c.bf16 %v1259, %v1258
      %v1376 = vpack.c.bf16 %v1261, %v1260
      %v1377 = vpack.c.bf16 %v1263, %v1262
      %v1378 = vpack.c.bf16 %v1265, %v1264
      %v1379 = vpack.c.bf16 %v1267, %v1266
      %v1380 = vpack.c.bf16 %v1269, %v1268
      %v1381 = vpack.c.bf16 %v1271, %v1270
      %v1382 = vpack.c.bf16 %v1273, %v1272
      %v1383 = vpack.c.bf16 %v1275, %v1274
      %v1384 = vpack.c.bf16 %v1277, %v1276
      %v1385 = vpack.c.bf16 %v1279, %v1278
      %v1386 = vpack.c.bf16 %v1281, %v1280
      %v1387 = vpack.c.bf16 %v1283, %v1282
      %v1388 = vpack.c.bf16 %v1285, %v1284
      %v1389 = vpack.c.bf16 %v1287, %v1286
      %v1390 = vpack.c.bf16 %v1289, %v1288
      %v1391 = vpack.c.bf16 %v1291, %v1290
      %v1392 = vpack.c.bf16 %v1293, %v1292
      %v1393 = vpack.c.bf16 %v1295, %v1294
      %v1394 = vpack.c.bf16 %v1297, %v1296
      %v1395 = vpack.c.bf16 %v1299, %v1298
      %v1396 = vpack.c.bf16 %v1301, %v1300
      %v1397 = vpack.c.bf16 %v1303, %v1302
      %v1398 = vpack.c.bf16 %v1305, %v1304
      %v1399 = vpack.c.bf16 %v1307, %v1306
      %v1400 = vpack.c.bf16 %v1309, %v1308
      %v1401 = vpack.c.bf16 %v1311, %v1310
      %v1402 = vpack.c.bf16 %v1313, %v1312
      %v1403 = vpack.c.bf16 %v1315, %v1314
      %v1404 = vpack.c.bf16 %v1317, %v1316
      %v1405 = vpack.c.bf16 %v1319, %v1318
      %v1406 = vpack.c.bf16 %v1321, %v1320
      %v1407 = vpack.c.bf16 %v1323, %v1322
      %v1408 = vpack.c.bf16 %v1325, %v1324
      %v1409 = vpack.c.bf16 %v1327, %v1326
      %v1410 = vpack.c.bf16 %v1329, %v1328
      %v1411 = vpack.c.bf16 %v1331, %v1330
      %v1412 = vpack.c.bf16 %v1333, %v1332
      %v1413 = vpack.c.bf16 %v1335, %v1334
      %v1414 = vpack.c.bf16 %v1337, %v1336
      %v1415 = vpack.c.bf16 %v1339, %v1338
      %v1416 = vpack.c.bf16 %v1341, %v1340
      %v1417 = vpack.c.bf16 %v1343, %v1342
      %v1418 = vpack.c.bf16 %v1345, %v1344
      %v1419 = vpack.c.bf16 %v1347, %v1346
      %v1420 = vpack.c.bf16 %v1349, %v1348
      %v1421 = vpack.c.bf16 %v1351, %v1350
      %v1422 = vpack.c.bf16 %v1353, %v1352
      %v1423 = vpack.c.bf16 %v1355, %v1354
      %v1424 = vpack.c.bf16 %v1357, %v1356
      %v1425 = vpack.c.bf16 %v1359, %v1358
      %v1426 = vpack.c.bf16 %v1361, %v1360
      %v1427 = vpack.c.bf16 %v1363, %v1362
      %v1428 = vld [vmem:[%s3] sm:$0xf]
      %v1429 = vld [vmem:[%s3 + $0x4] sm:$0xf]
      %v1430 = vld [vmem:[%s3 + $0x8] sm:$0xf]
      %v1431 = vld [vmem:[%s4] sm:$0x1]
      %v1433 = vlaneseq
      %v1434 = vshrl.u32 %v1433, 7
      %v1435 = vsub.s32 0, %v1434
      %v1436 = vrot.slane %v1431, %v1435
      %v1441 = vunpack.c.l.b16 %v1428
      %v1442 = vunpack.c.l.b16 %v1429
      %v1443 = vunpack.c.l.b16 %v1430
      %v1444 = vpack.c.b16 %v1442, %v1441
      %v1445 = vpack.c.b16 %v1443, %v1443
      %v1448 = vsel %vm494, %v1364, 0
      %v1451 = vsel %vm494, %v1365, 0
      %v1454 = vsel %vm494, %v1366, 0
      %v1457 = vsel %vm494, %v1367, 0
      %v1460 = vsel %vm494, %v1368, 0
      %v1463 = vsel %vm494, %v1369, 0
      %v1466 = vsel %vm494, %v1370, 0
      %v1469 = vsel %vm494, %v1371, 0
      %v1472 = vsel %vm494, %v1372, 0
      %v1475 = vsel %vm494, %v1373, 0
      %v1478 = vsel %vm494, %v1374, 0
      %v1481 = vsel %vm494, %v1375, 0
      %v1484 = vsel %vm494, %v1376, 0
      %v1487 = vsel %vm494, %v1377, 0
      %v1490 = vsel %vm494, %v1378, 0
      %v1493 = vsel %vm494, %v1379, 0
      %v1496 = vsel %vm494, %v1380, 0
      %v1499 = vsel %vm494, %v1381, 0
      %v1502 = vsel %vm494, %v1382, 0
      %v1505 = vsel %vm494, %v1383, 0
      %v1508 = vsel %vm494, %v1384, 0
      %v1511 = vsel %vm494, %v1385, 0
      %v1514 = vsel %vm494, %v1386, 0
      %v1517 = vsel %vm494, %v1387, 0
      %v1520 = vsel %vm494, %v1388, 0
      %v1523 = vsel %vm494, %v1389, 0
      %v1526 = vsel %vm494, %v1390, 0
      %v1529 = vsel %vm494, %v1391, 0
      %v1532 = vsel %vm494, %v1392, 0
      %v1535 = vsel %vm494, %v1393, 0
      %v1538 = vsel %vm494, %v1394, 0
      %v1541 = vsel %vm494, %v1395, 0
      %v1544 = vsel %vm494, %v1396, 0
      %v1547 = vsel %vm494, %v1397, 0
      %v1550 = vsel %vm494, %v1398, 0
      %v1553 = vsel %vm494, %v1399, 0
      %v1556 = vsel %vm494, %v1400, 0
      %v1559 = vsel %vm494, %v1401, 0
      %v1562 = vsel %vm494, %v1402, 0
      %v1565 = vsel %vm494, %v1403, 0
      %v1568 = vsel %vm494, %v1404, 0
      %v1571 = vsel %vm494, %v1405, 0
      %v1574 = vsel %vm494, %v1406, 0
      %v1577 = vsel %vm494, %v1407, 0
      %v1580 = vsel %vm494, %v1408, 0
      %v1583 = vsel %vm494, %v1409, 0
      %v1586 = vsel %vm494, %v1410, 0
      %v1589 = vsel %vm494, %v1411, 0
      %v1592 = vsel %vm494, %v1412, 0
      %v1595 = vsel %vm494, %v1413, 0
      %v1598 = vsel %vm494, %v1414, 0
      %v1601 = vsel %vm494, %v1415, 0
      %v1604 = vsel %vm494, %v1416, 0
      %v1607 = vsel %vm494, %v1417, 0
      %v1610 = vsel %vm494, %v1418, 0
      %v1613 = vsel %vm494, %v1419, 0
      %v1616 = vsel %vm494, %v1420, 0
      %v1619 = vsel %vm494, %v1421, 0
      %v1622 = vsel %vm494, %v1422, 0
      %v1625 = vsel %vm494, %v1423, 0
      %v1628 = vsel %vm494, %v1424, 0
      %v1631 = vsel %vm494, %v1425, 0
      %v1634 = vsel %vm494, %v1426, 0
      %v1637 = vsel %vm494, %v1427, 0
      %v1640 = vsel %vm687, %v1445, 0
      %1642 = vmatprep.subr.bf16.mxu0 0
      %1643 = vmatpush1.bf16.msra.mxu0 %v1444
      %1644 = vmatprep.subr.bf16.mxu0 0
      %1645 = vmatpush1.bf16.msra.mxu0 %v1640
      %1646 = vmatprep.subr.bf16.mxu0 0
      %1647 = vmatpush1.bf16.msra.mxu0 0
      %1648 = vmatprep.subr.bf16.mxu0 0
      %1649 = vmatpush1.bf16.msra.mxu0 0
      %1650 = vmatprep.subr.bf16.mxu0 0
      %1651 = vmatpush1.bf16.msra.mxu0 0
      %1652 = vmatprep.subr.bf16.mxu0 0
      %1653 = vmatpush1.bf16.msra.mxu0 0
      %1654 = vmatprep.subr.bf16.mxu0 0
      %1655 = vmatpush1.bf16.msra.mxu0 0
      %1656 = vmatprep.subr.bf16.mxu0 0
      %1657 = vmatpush1.bf16.msra.mxu0 0
      %1658 = vmatprep.subr.bf16.mxu0 0
      %1659 = vmatpush1.bf16.msra.mxu0 0
      %1660 = vmatprep.subr.bf16.mxu0 0
      %1661 = vmatpush1.bf16.msra.mxu0 0
      %1662 = vmatprep.subr.bf16.mxu0 0
      %1663 = vmatpush1.bf16.msra.mxu0 0
      %1664 = vmatprep.subr.bf16.mxu0 0
      %1665 = vmatpush1.bf16.msra.mxu0 0
      %1666 = vmatprep.subr.bf16.mxu0 0
      %1667 = vmatpush1.bf16.msra.mxu0 0
      %1668 = vmatprep.subr.bf16.mxu0 0
      %1669 = vmatpush1.bf16.msra.mxu0 0
      %1670 = vmatprep.subr.bf16.mxu0 0
      %1671 = vmatpush1.bf16.msra.mxu0 0
      %1672 = vmatprep.subr.bf16.mxu0 0
      %1673 = vmatpush1.bf16.msra.mxu0 0
      %1674 = vmatprep.mubr.bf16.mxu0 0
      %1675 = vmatmul.mubr.bf16.gmra.mrb[0].mxu0 %v1448
      %v1676 = vpop.f32.mrb[0].mxu0
      %v1677 = vadd.f32 %v1436, %v1676
      %v1678 = vpop.f32.mrb[0].mxu0
      %v1679 = vpop.f32.mrb[0].mxu0
      %v1680 = vadd.f32 %v1436, %v1679
      %v1681 = vpop.f32.mrb[0].mxu0
      %1682 = vmatprep.mubr.bf16.mxu0 0
      %1683 = vmatmul.mubr.bf16.gmra.mrb[0].mxu0 %v1451
      %v1684 = vpop.f32.mrb[0].mxu0
      %v1685 = vadd.f32 %v1436, %v1684
      %v1686 = vpop.f32.mrb[0].mxu0
      %v1687 = vpop.f32.mrb[0].mxu0
      %v1688 = vadd.f32 %v1436, %v1687
      %v1689 = vpop.f32.mrb[0].mxu0
      %1690 = vmatprep.mubr.bf16.mxu0 0
      %1691 = vmatmul.mubr.bf16.gmra.mrb[0].mxu0 %v1454
      %v1692 = vpop.f32.mrb[0].mxu0
      %v1693 = vadd.f32 %v1436, %v1692
      %v1694 = vpop.f32.mrb[0].mxu0
      %v1695 = vpop.f32.mrb[0].mxu0
      %v1696 = vadd.f32 %v1436, %v1695
      %v1697 = vpop.f32.mrb[0].mxu0
      %1698 = vmatprep.mubr.bf16.mxu0 0
      %1699 = vmatmul.mubr.bf16.gmra.mrb[0].mxu0 %v1457
      %v1700 = vpop.f32.mrb[0].mxu0
      %v1701 = vadd.f32 %v1436, %v1700
      %v1702 = vpop.f32.mrb[0].mxu0
      %v1703 = vpop.f32.mrb[0].mxu0
      %v1704 = vadd.f32 %v1436, %v1703
      %v1705 = vpop.f32.mrb[0].mxu0
      %1706 = vmatprep.mubr.bf16.mxu0 0
      %1707 = vmatmul.mubr.bf16.gmra.mrb[0].mxu0 %v1460
      %v1708 = vpop.f32.mrb[0].mxu0
      %v1709 = vadd.f32 %v1436, %v1708
      %v1710 = vpop.f32.mrb[0].mxu0
      %v1711 = vpop.f32.mrb[0].mxu0
      %v1712 = vadd.f32 %v1436, %v1711
      %v1713 = vpop.f32.mrb[0].mxu0
      %1714 = vmatprep.mubr.bf16.mxu0 0
      %1715 = vmatmul.mubr.bf16.gmra.mrb[0].mxu0 %v1463
      %v1716 = vpop.f32.mrb[0].mxu0
      %v1717 = vadd.f32 %v1436, %v1716
      %v1718 = vpop.f32.mrb[0].mxu0
      %v1719 = vpop.f32.mrb[0].mxu0
      %v1720 = vadd.f32 %v1436, %v1719
      %v1721 = vpop.f32.mrb[0].mxu0
      %1722 = vmatprep.mubr.bf16.mxu0 0
      %1723 = vmatmul.mubr.bf16.gmra.mrb[0].mxu0 %v1466
      %v1724 = vpop.f32.mrb[0].mxu0
      %v1725 = vadd.f32 %v1436, %v1724
      %v1726 = vpop.f32.mrb[0].mxu0
      %v1727 = vpop.f32.mrb[0].mxu0
      %v1728 = vadd.f32 %v1436, %v1727
      %v1729 = vpop.f32.mrb[0].mxu0
      %1730 = vmatprep.mubr.bf16.mxu0 0
      %1731 = vmatmul.mubr.bf16.gmra.mrb[0].mxu0 %v1469
      %v1732 = vpop.f32.mrb[0].mxu0
      %v1733 = vadd.f32 %v1436, %v1732
      %v1734 = vpop.f32.mrb[0].mxu0
      %v1735 = vpop.f32.mrb[0].mxu0
      %v1736 = vadd.f32 %v1436, %v1735
      %v1737 = vpop.f32.mrb[0].mxu0
      %1738 = vmatprep.mubr.bf16.mxu0 0
      %1739 = vmatmul.mubr.bf16.gmra.mrb[0].mxu0 %v1472
      %v1740 = vpop.f32.mrb[0].mxu0
      %v1741 = vadd.f32 %v1436, %v1740
      %v1742 = vpop.f32.mrb[0].mxu0
      %v1743 = vpop.f32.mrb[0].mxu0
      %v1744 = vadd.f32 %v1436, %v1743
      %v1745 = vpop.f32.mrb[0].mxu0
      %1746 = vmatprep.mubr.bf16.mxu0 0
      %1747 = vmatmul.mubr.bf16.gmra.mrb[0].mxu0 %v1475
      %v1748 = vpop.f32.mrb[0].mxu0
      %v1749 = vadd.f32 %v1436, %v1748
      %v1750 = vpop.f32.mrb[0].mxu0
      %v1751 = vpop.f32.mrb[0].mxu0
      %v1752 = vadd.f32 %v1436, %v1751
      %v1753 = vpop.f32.mrb[0].mxu0
      %1754 = vmatprep.mubr.bf16.mxu0 0
      %1755 = vmatmul.mubr.bf16.gmra.mrb[0].mxu0 %v1478
      %v1756 = vpop.f32.mrb[0].mxu0
      %v1757 = vadd.f32 %v1436, %v1756
      %v1758 = vpop.f32.mrb[0].mxu0
      %v1759 = vpop.f32.mrb[0].mxu0
      %v1760 = vadd.f32 %v1436, %v1759
      %v1761 = vpop.f32.mrb[0].mxu0
      %1762 = vmatprep.mubr.bf16.mxu0 0
      %1763 = vmatmul.mubr.bf16.gmra.mrb[0].mxu0 %v1481
      %v1764 = vpop.f32.mrb[0].mxu0
      %v1765 = vadd.f32 %v1436, %v1764
      %v1766 = vpop.f32.mrb[0].mxu0
      %v1767 = vpop.f32.mrb[0].mxu0
      %v1768 = vadd.f32 %v1436, %v1767
      %v1769 = vpop.f32.mrb[0].mxu0
      %1770 = vmatprep.mubr.bf16.mxu0 0
      %1771 = vmatmul.mubr.bf16.gmra.mrb[0].mxu0 %v1484
      %v1772 = vpop.f32.mrb[0].mxu0
      %v1773 = vadd.f32 %v1436, %v1772
      %v1774 = vpop.f32.mrb[0].mxu0
      %v1775 = vpop.f32.mrb[0].mxu0
      %v1776 = vadd.f32 %v1436, %v1775
      %v1777 = vpop.f32.mrb[0].mxu0
      %1778 = vmatprep.mubr.bf16.mxu0 0
      %1779 = vmatmul.mubr.bf16.gmra.mrb[0].mxu0 %v1487
      %v1780 = vpop.f32.mrb[0].mxu0
      %v1781 = vadd.f32 %v1436, %v1780
      %v1782 = vpop.f32.mrb[0].mxu0
      %v1783 = vpop.f32.mrb[0].mxu0
      %v1784 = vadd.f32 %v1436, %v1783
      %v1785 = vpop.f32.mrb[0].mxu0
      %1786 = vmatprep.mubr.bf16.mxu0 0
      %1787 = vmatmul.mubr.bf16.gmra.mrb[0].mxu0 %v1490
      %v1788 = vpop.f32.mrb[0].mxu0
      %v1789 = vadd.f32 %v1436, %v1788
      %v1790 = vpop.f32.mrb[0].mxu0
      %v1791 = vpop.f32.mrb[0].mxu0
      %v1792 = vadd.f32 %v1436, %v1791
      %v1793 = vpop.f32.mrb[0].mxu0
      %1794 = vmatprep.mubr.bf16.mxu0 0
      %1795 = vmatmul.mubr.bf16.gmra.mrb[0].mxu0 %v1493
      %v1796 = vpop.f32.mrb[0].mxu0
      %v1797 = vadd.f32 %v1436, %v1796
      %v1798 = vpop.f32.mrb[0].mxu0
      %v1799 = vpop.f32.mrb[0].mxu0
      %v1800 = vadd.f32 %v1436, %v1799
      %v1801 = vpop.f32.mrb[0].mxu0
      %1802 = vmatprep.mubr.bf16.mxu0 0
      %1803 = vmatmul.mubr.bf16.gmra.mrb[0].mxu0 %v1496
      %v1804 = vpop.f32.mrb[0].mxu0
      %v1805 = vadd.f32 %v1436, %v1804
      %v1806 = vpop.f32.mrb[0].mxu0
      %v1807 = vpop.f32.mrb[0].mxu0
      %v1808 = vadd.f32 %v1436, %v1807
      %v1809 = vpop.f32.mrb[0].mxu0
      %1810 = vmatprep.mubr.bf16.mxu0 0
      %1811 = vmatmul.mubr.bf16.gmra.mrb[0].mxu0 %v1499
      %v1812 = vpop.f32.mrb[0].mxu0
      %v1813 = vadd.f32 %v1436, %v1812
      %v1814 = vpop.f32.mrb[0].mxu0
      %v1815 = vpop.f32.mrb[0].mxu0
      %v1816 = vadd.f32 %v1436, %v1815
      %v1817 = vpop.f32.mrb[0].mxu0
      %1818 = vmatprep.mubr.bf16.mxu0 0
      %1819 = vmatmul.mubr.bf16.gmra.mrb[0].mxu0 %v1502
      %v1820 = vpop.f32.mrb[0].mxu0
      %v1821 = vadd.f32 %v1436, %v1820
      %v1822 = vpop.f32.mrb[0].mxu0
      %v1823 = vpop.f32.mrb[0].mxu0
      %v1824 = vadd.f32 %v1436, %v1823
      %v1825 = vpop.f32.mrb[0].mxu0
      %1826 = vmatprep.mubr.bf16.mxu0 0
      %1827 = vmatmul.mubr.bf16.gmra.mrb[0].mxu0 %v1505
      %v1828 = vpop.f32.mrb[0].mxu0
      %v1829 = vadd.f32 %v1436, %v1828
      %v1830 = vpop.f32.mrb[0].mxu0
      %v1831 = vpop.f32.mrb[0].mxu0
      %v1832 = vadd.f32 %v1436, %v1831
      %v1833 = vpop.f32.mrb[0].mxu0
      %1834 = vmatprep.mubr.bf16.mxu0 0
      %1835 = vmatmul.mubr.bf16.gmra.mrb[0].mxu0 %v1508
      %v1836 = vpop.f32.mrb[0].mxu0
      %v1837 = vadd.f32 %v1436, %v1836
      %v1838 = vpop.f32.mrb[0].mxu0
      %v1839 = vpop.f32.mrb[0].mxu0
      %v1840 = vadd.f32 %v1436, %v1839
      %v1841 = vpop.f32.mrb[0].mxu0
      %1842 = vmatprep.mubr.bf16.mxu0 0
      %1843 = vmatmul.mubr.bf16.gmra.mrb[0].mxu0 %v1511
      %v1844 = vpop.f32.mrb[0].mxu0
      %v1845 = vadd.f32 %v1436, %v1844
      %v1846 = vpop.f32.mrb[0].mxu0
      %v1847 = vpop.f32.mrb[0].mxu0
      %v1848 = vadd.f32 %v1436, %v1847
      %v1849 = vpop.f32.mrb[0].mxu0
      %1850 = vmatprep.mubr.bf16.mxu0 0
      %1851 = vmatmul.mubr.bf16.gmra.mrb[0].mxu0 %v1514
      %v1852 = vpop.f32.mrb[0].mxu0
      %v1853 = vadd.f32 %v1436, %v1852
      %v1854 = vpop.f32.mrb[0].mxu0
      %v1855 = vpop.f32.mrb[0].mxu0
      %v1856 = vadd.f32 %v1436, %v1855
      %v1857 = vpop.f32.mrb[0].mxu0
      %1858 = vmatprep.mubr.bf16.mxu0 0
      %1859 = vmatmul.mubr.bf16.gmra.mrb[0].mxu0 %v1517
      %v1860 = vpop.f32.mrb[0].mxu0
      %v1861 = vadd.f32 %v1436, %v1860
      %v1862 = vpop.f32.mrb[0].mxu0
      %v1863 = vpop.f32.mrb[0].mxu0
      %v1864 = vadd.f32 %v1436, %v1863
      %v1865 = vpop.f32.mrb[0].mxu0
      %1866 = vmatprep.mubr.bf16.mxu0 0
      %1867 = vmatmul.mubr.bf16.gmra.mrb[0].mxu0 %v1520
      %v1868 = vpop.f32.mrb[0].mxu0
      %v1869 = vadd.f32 %v1436, %v1868
      %v1870 = vpop.f32.mrb[0].mxu0
      %v1871 = vpop.f32.mrb[0].mxu0
      %v1872 = vadd.f32 %v1436, %v1871
      %v1873 = vpop.f32.mrb[0].mxu0
      %1874 = vmatprep.mubr.bf16.mxu0 0
      %1875 = vmatmul.mubr.bf16.gmra.mrb[0].mxu0 %v1523
      %v1876 = vpop.f32.mrb[0].mxu0
      %v1877 = vadd.f32 %v1436, %v1876
      %v1878 = vpop.f32.mrb[0].mxu0
      %v1879 = vpop.f32.mrb[0].mxu0
      %v1880 = vadd.f32 %v1436, %v1879
      %v1881 = vpop.f32.mrb[0].mxu0
      %1882 = vmatprep.mubr.bf16.mxu0 0
      %1883 = vmatmul.mubr.bf16.gmra.mrb[0].mxu0 %v1526
      %v1884 = vpop.f32.mrb[0].mxu0
      %v1885 = vadd.f32 %v1436, %v1884
      %v1886 = vpop.f32.mrb[0].mxu0
      %v1887 = vpop.f32.mrb[0].mxu0
      %v1888 = vadd.f32 %v1436, %v1887
      %v1889 = vpop.f32.mrb[0].mxu0
      %1890 = vmatprep.mubr.bf16.mxu0 0
      %1891 = vmatmul.mubr.bf16.gmra.mrb[0].mxu0 %v1529
      %v1892 = vpop.f32.mrb[0].mxu0
      %v1893 = vadd.f32 %v1436, %v1892
      %v1894 = vpop.f32.mrb[0].mxu0
      %v1895 = vpop.f32.mrb[0].mxu0
      %v1896 = vadd.f32 %v1436, %v1895
      %v1897 = vpop.f32.mrb[0].mxu0
      %1898 = vmatprep.mubr.bf16.mxu0 0
      %1899 = vmatmul.mubr.bf16.gmra.mrb[0].mxu0 %v1532
      %v1900 = vpop.f32.mrb[0].mxu0
      %v1901 = vadd.f32 %v1436, %v1900
      %v1902 = vpop.f32.mrb[0].mxu0
      %v1903 = vpop.f32.mrb[0].mxu0
      %v1904 = vadd.f32 %v1436, %v1903
      %v1905 = vpop.f32.mrb[0].mxu0
      %1906 = vmatprep.mubr.bf16.mxu0 0
      %1907 = vmatmul.mubr.bf16.gmra.mrb[0].mxu0 %v1535
      %v1908 = vpop.f32.mrb[0].mxu0
      %v1909 = vadd.f32 %v1436, %v1908
      %v1910 = vpop.f32.mrb[0].mxu0
      %v1911 = vpop.f32.mrb[0].mxu0
      %v1912 = vadd.f32 %v1436, %v1911
      %v1913 = vpop.f32.mrb[0].mxu0
      %1914 = vmatprep.mubr.bf16.mxu0 0
      %1915 = vmatmul.mubr.bf16.gmra.mrb[0].mxu0 %v1538
      %v1916 = vpop.f32.mrb[0].mxu0
      %v1917 = vadd.f32 %v1436, %v1916
      %v1918 = vpop.f32.mrb[0].mxu0
      %v1919 = vpop.f32.mrb[0].mxu0
      %v1920 = vadd.f32 %v1436, %v1919
      %v1921 = vpop.f32.mrb[0].mxu0
      %1922 = vmatprep.mubr.bf16.mxu0 0
      %1923 = vmatmul.mubr.bf16.gmra.mrb[0].mxu0 %v1541
      %v1924 = vpop.f32.mrb[0].mxu0
      %v1925 = vadd.f32 %v1436, %v1924
      %v1926 = vpop.f32.mrb[0].mxu0
      %v1927 = vpop.f32.mrb[0].mxu0
      %v1928 = vadd.f32 %v1436, %v1927
      %v1929 = vpop.f32.mrb[0].mxu0
      %1930 = vmatprep.mubr.bf16.mxu0 0
      %1931 = vmatmul.mubr.bf16.gmra.mrb[0].mxu0 %v1544
      %v1932 = vpop.f32.mrb[0].mxu0
      %v1933 = vadd.f32 %v1436, %v1932
      %v1934 = vpop.f32.mrb[0].mxu0
      %v1935 = vpop.f32.mrb[0].mxu0
      %v1936 = vadd.f32 %v1436, %v1935
      %v1937 = vpop.f32.mrb[0].mxu0
      %1938 = vmatprep.mubr.bf16.mxu0 0
      %1939 = vmatmul.mubr.bf16.gmra.mrb[0].mxu0 %v1547
      %v1940 = vpop.f32.mrb[0].mxu0
      %v1941 = vadd.f32 %v1436, %v1940
      %v1942 = vpop.f32.mrb[0].mxu0
      %v1943 = vpop.f32.mrb[0].mxu0
      %v1944 = vadd.f32 %v1436, %v1943
      %v1945 = vpop.f32.mrb[0].mxu0
      %1946 = vmatprep.mubr.bf16.mxu0 0
      %1947 = vmatmul.mubr.bf16.gmra.mrb[0].mxu0 %v1550
      %v1948 = vpop.f32.mrb[0].mxu0
      %v1949 = vadd.f32 %v1436, %v1948
      %v1950 = vpop.f32.mrb[0].mxu0
      %v1951 = vpop.f32.mrb[0].mxu0
      %v1952 = vadd.f32 %v1436, %v1951
      %v1953 = vpop.f32.mrb[0].mxu0
      %1954 = vmatprep.mubr.bf16.mxu0 0
      %1955 = vmatmul.mubr.bf16.gmra.mrb[0].mxu0 %v1553
      %v1956 = vpop.f32.mrb[0].mxu0
      %v1957 = vadd.f32 %v1436, %v1956
      %v1958 = vpop.f32.mrb[0].mxu0
      %v1959 = vpop.f32.mrb[0].mxu0
      %v1960 = vadd.f32 %v1436, %v1959
      %v1961 = vpop.f32.mrb[0].mxu0
      %1962 = vmatprep.mubr.bf16.mxu0 0
      %1963 = vmatmul.mubr.bf16.gmra.mrb[0].mxu0 %v1556
      %v1964 = vpop.f32.mrb[0].mxu0
      %v1965 = vadd.f32 %v1436, %v1964
      %v1966 = vpop.f32.mrb[0].mxu0
      %v1967 = vpop.f32.mrb[0].mxu0
      %v1968 = vadd.f32 %v1436, %v1967
      %v1969 = vpop.f32.mrb[0].mxu0
      %1970 = vmatprep.mubr.bf16.mxu0 0
      %1971 = vmatmul.mubr.bf16.gmra.mrb[0].mxu0 %v1559
      %v1972 = vpop.f32.mrb[0].mxu0
      %v1973 = vadd.f32 %v1436, %v1972
      %v1974 = vpop.f32.mrb[0].mxu0
      %v1975 = vpop.f32.mrb[0].mxu0
      %v1976 = vadd.f32 %v1436, %v1975
      %v1977 = vpop.f32.mrb[0].mxu0
      %1978 = vmatprep.mubr.bf16.mxu0 0
      %1979 = vmatmul.mubr.bf16.gmra.mrb[0].mxu0 %v1562
      %v1980 = vpop.f32.mrb[0].mxu0
      %v1981 = vadd.f32 %v1436, %v1980
      %v1982 = vpop.f32.mrb[0].mxu0
      %v1983 = vpop.f32.mrb[0].mxu0
      %v1984 = vadd.f32 %v1436, %v1983
      %v1985 = vpop.f32.mrb[0].mxu0
      %1986 = vmatprep.mubr.bf16.mxu0 0
      %1987 = vmatmul.mubr.bf16.gmra.mrb[0].mxu0 %v1565
      %v1988 = vpop.f32.mrb[0].mxu0
      %v1989 = vadd.f32 %v1436, %v1988
      %v1990 = vpop.f32.mrb[0].mxu0
      %v1991 = vpop.f32.mrb[0].mxu0
      %v1992 = vadd.f32 %v1436, %v1991
      %v1993 = vpop.f32.mrb[0].mxu0
      %1994 = vmatprep.mubr.bf16.mxu0 0
      %1995 = vmatmul.mubr.bf16.gmra.mrb[0].mxu0 %v1568
      %v1996 = vpop.f32.mrb[0].mxu0
      %v1997 = vadd.f32 %v1436, %v1996
      %v1998 = vpop.f32.mrb[0].mxu0
      %v1999 = vpop.f32.mrb[0].mxu0
      %v2000 = vadd.f32 %v1436, %v1999
      %v2001 = vpop.f32.mrb[0].mxu0
      %2002 = vmatprep.mubr.bf16.mxu0 0
      %2003 = vmatmul.mubr.bf16.gmra.mrb[0].mxu0 %v1571
      %v2004 = vpop.f32.mrb[0].mxu0
      %v2005 = vadd.f32 %v1436, %v2004
      %v2006 = vpop.f32.mrb[0].mxu0
      %v2007 = vpop.f32.mrb[0].mxu0
      %v2008 = vadd.f32 %v1436, %v2007
      %v2009 = vpop.f32.mrb[0].mxu0
      %2010 = vmatprep.mubr.bf16.mxu0 0
      %2011 = vmatmul.mubr.bf16.gmra.mrb[0].mxu0 %v1574
      %v2012 = vpop.f32.mrb[0].mxu0
      %v2013 = vadd.f32 %v1436, %v2012
      %v2014 = vpop.f32.mrb[0].mxu0
      %v2015 = vpop.f32.mrb[0].mxu0
      %v2016 = vadd.f32 %v1436, %v2015
      %v2017 = vpop.f32.mrb[0].mxu0
      %2018 = vmatprep.mubr.bf16.mxu0 0
      %2019 = vmatmul.mubr.bf16.gmra.mrb[0].mxu0 %v1577
      %v2020 = vpop.f32.mrb[0].mxu0
      %v2021 = vadd.f32 %v1436, %v2020
      %v2022 = vpop.f32.mrb[0].mxu0
      %v2023 = vpop.f32.mrb[0].mxu0
      %v2024 = vadd.f32 %v1436, %v2023
      %v2025 = vpop.f32.mrb[0].mxu0
      %2026 = vmatprep.mubr.bf16.mxu0 0
      %2027 = vmatmul.mubr.bf16.gmra.mrb[0].mxu0 %v1580
      %v2028 = vpop.f32.mrb[0].mxu0
      %v2029 = vadd.f32 %v1436, %v2028
      %v2030 = vpop.f32.mrb[0].mxu0
      %v2031 = vpop.f32.mrb[0].mxu0
      %v2032 = vadd.f32 %v1436, %v2031
      %v2033 = vpop.f32.mrb[0].mxu0
      %2034 = vmatprep.mubr.bf16.mxu0 0
      %2035 = vmatmul.mubr.bf16.gmra.mrb[0].mxu0 %v1583
      %v2036 = vpop.f32.mrb[0].mxu0
      %v2037 = vadd.f32 %v1436, %v2036
      %v2038 = vpop.f32.mrb[0].mxu0
      %v2039 = vpop.f32.mrb[0].mxu0
      %v2040 = vadd.f32 %v1436, %v2039
      %v2041 = vpop.f32.mrb[0].mxu0
      %2042 = vmatprep.mubr.bf16.mxu0 0
      %2043 = vmatmul.mubr.bf16.gmra.mrb[0].mxu0 %v1586
      %v2044 = vpop.f32.mrb[0].mxu0
      %v2045 = vadd.f32 %v1436, %v2044
      %v2046 = vpop.f32.mrb[0].mxu0
      %v2047 = vpop.f32.mrb[0].mxu0
      %v2048 = vadd.f32 %v1436, %v2047
      %v2049 = vpop.f32.mrb[0].mxu0
      %2050 = vmatprep.mubr.bf16.mxu0 0
      %2051 = vmatmul.mubr.bf16.gmra.mrb[0].mxu0 %v1589
      %v2052 = vpop.f32.mrb[0].mxu0
      %v2053 = vadd.f32 %v1436, %v2052
      %v2054 = vpop.f32.mrb[0].mxu0
      %v2055 = vpop.f32.mrb[0].mxu0
      %v2056 = vadd.f32 %v1436, %v2055
      %v2057 = vpop.f32.mrb[0].mxu0
      %2058 = vmatprep.mubr.bf16.mxu0 0
      %2059 = vmatmul.mubr.bf16.gmra.mrb[0].mxu0 %v1592
      %v2060 = vpop.f32.mrb[0].mxu0
      %v2061 = vadd.f32 %v1436, %v2060
      %v2062 = vpop.f32.mrb[0].mxu0
      %v2063 = vpop.f32.mrb[0].mxu0
      %v2064 = vadd.f32 %v1436, %v2063
      %v2065 = vpop.f32.mrb[0].mxu0
      %2066 = vmatprep.mubr.bf16.mxu0 0
      %2067 = vmatmul.mubr.bf16.gmra.mrb[0].mxu0 %v1595
      %v2068 = vpop.f32.mrb[0].mxu0
      %v2069 = vadd.f32 %v1436, %v2068
      %v2070 = vpop.f32.mrb[0].mxu0
      %v2071 = vpop.f32.mrb[0].mxu0
      %v2072 = vadd.f32 %v1436, %v2071
      %v2073 = vpop.f32.mrb[0].mxu0
      %2074 = vmatprep.mubr.bf16.mxu0 0
      %2075 = vmatmul.mubr.bf16.gmra.mrb[0].mxu0 %v1598
      %v2076 = vpop.f32.mrb[0].mxu0
      %v2077 = vadd.f32 %v1436, %v2076
      %v2078 = vpop.f32.mrb[0].mxu0
      %v2079 = vpop.f32.mrb[0].mxu0
      %v2080 = vadd.f32 %v1436, %v2079
      %v2081 = vpop.f32.mrb[0].mxu0
      %2082 = vmatprep.mubr.bf16.mxu0 0
      %2083 = vmatmul.mubr.bf16.gmra.mrb[0].mxu0 %v1601
      %v2084 = vpop.f32.mrb[0].mxu0
      %v2085 = vadd.f32 %v1436, %v2084
      %v2086 = vpop.f32.mrb[0].mxu0
      %v2087 = vpop.f32.mrb[0].mxu0
      %v2088 = vadd.f32 %v1436, %v2087
      %v2089 = vpop.f32.mrb[0].mxu0
      %2090 = vmatprep.mubr.bf16.mxu0 0
      %2091 = vmatmul.mubr.bf16.gmra.mrb[0].mxu0 %v1604
      %v2092 = vpop.f32.mrb[0].mxu0
      %v2093 = vadd.f32 %v1436, %v2092
      %v2094 = vpop.f32.mrb[0].mxu0
      %v2095 = vpop.f32.mrb[0].mxu0
      %v2096 = vadd.f32 %v1436, %v2095
      %v2097 = vpop.f32.mrb[0].mxu0
      %2098 = vmatprep.mubr.bf16.mxu0 0
      %2099 = vmatmul.mubr.bf16.gmra.mrb[0].mxu0 %v1607
      %v2100 = vpop.f32.mrb[0].mxu0
      %v2101 = vadd.f32 %v1436, %v2100
      %v2102 = vpop.f32.mrb[0].mxu0
      %v2103 = vpop.f32.mrb[0].mxu0
      %v2104 = vadd.f32 %v1436, %v2103
      %v2105 = vpop.f32.mrb[0].mxu0
      %2106 = vmatprep.mubr.bf16.mxu0 0
      %2107 = vmatmul.mubr.bf16.gmra.mrb[0].mxu0 %v1610
      %v2108 = vpop.f32.mrb[0].mxu0
      %v2109 = vadd.f32 %v1436, %v2108
      %v2110 = vpop.f32.mrb[0].mxu0
      %v2111 = vpop.f32.mrb[0].mxu0
      %v2112 = vadd.f32 %v1436, %v2111
      %v2113 = vpop.f32.mrb[0].mxu0
      %2114 = vmatprep.mubr.bf16.mxu0 0
      %2115 = vmatmul.mubr.bf16.gmra.mrb[0].mxu0 %v1613
      %v2116 = vpop.f32.mrb[0].mxu0
      %v2117 = vadd.f32 %v1436, %v2116
      %v2118 = vpop.f32.mrb[0].mxu0
      %v2119 = vpop.f32.mrb[0].mxu0
      %v2120 = vadd.f32 %v1436, %v2119
      %v2121 = vpop.f32.mrb[0].mxu0
      %2122 = vmatprep.mubr.bf16.mxu0 0
      %2123 = vmatmul.mubr.bf16.gmra.mrb[0].mxu0 %v1616
      %v2124 = vpop.f32.mrb[0].mxu0
      %v2125 = vadd.f32 %v1436, %v2124
      %v2126 = vpop.f32.mrb[0].mxu0
      %v2127 = vpop.f32.mrb[0].mxu0
      %v2128 = vadd.f32 %v1436, %v2127
      %v2129 = vpop.f32.mrb[0].mxu0
      %2130 = vmatprep.mubr.bf16.mxu0 0
      %2131 = vmatmul.mubr.bf16.gmra.mrb[0].mxu0 %v1619
      %v2132 = vpop.f32.mrb[0].mxu0
      %v2133 = vadd.f32 %v1436, %v2132
      %v2134 = vpop.f32.mrb[0].mxu0
      %v2135 = vpop.f32.mrb[0].mxu0
      %v2136 = vadd.f32 %v1436, %v2135
      %v2137 = vpop.f32.mrb[0].mxu0
      %2138 = vmatprep.mubr.bf16.mxu0 0
      %2139 = vmatmul.mubr.bf16.gmra.mrb[0].mxu0 %v1622
      %v2140 = vpop.f32.mrb[0].mxu0
      %v2141 = vadd.f32 %v1436, %v2140
      %v2142 = vpop.f32.mrb[0].mxu0
      %v2143 = vpop.f32.mrb[0].mxu0
      %v2144 = vadd.f32 %v1436, %v2143
      %v2145 = vpop.f32.mrb[0].mxu0
      %2146 = vmatprep.mubr.bf16.mxu0 0
      %2147 = vmatmul.mubr.bf16.gmra.mrb[0].mxu0 %v1625
      %v2148 = vpop.f32.mrb[0].mxu0
      %v2149 = vadd.f32 %v1436, %v2148
      %v2150 = vpop.f32.mrb[0].mxu0
      %v2151 = vpop.f32.mrb[0].mxu0
      %v2152 = vadd.f32 %v1436, %v2151
      %v2153 = vpop.f32.mrb[0].mxu0
      %2154 = vmatprep.mubr.bf16.mxu0 0
      %2155 = vmatmul.mubr.bf16.gmra.mrb[0].mxu0 %v1628
      %v2156 = vpop.f32.mrb[0].mxu0
      %v2157 = vadd.f32 %v1436, %v2156
      %v2158 = vpop.f32.mrb[0].mxu0
      %v2159 = vpop.f32.mrb[0].mxu0
      %v2160 = vadd.f32 %v1436, %v2159
      %v2161 = vpop.f32.mrb[0].mxu0
      %2162 = vmatprep.mubr.bf16.mxu0 0
      %2163 = vmatmul.mubr.bf16.gmra.mrb[0].mxu0 %v1631
      %v2164 = vpop.f32.mrb[0].mxu0
      %v2165 = vadd.f32 %v1436, %v2164
      %v2166 = vpop.f32.mrb[0].mxu0
      %v2167 = vpop.f32.mrb[0].mxu0
      %v2168 = vadd.f32 %v1436, %v2167
      %v2169 = vpop.f32.mrb[0].mxu0
      %2170 = vmatprep.mubr.bf16.mxu0 0
      %2171 = vmatmul.mubr.bf16.gmra.mrb[0].mxu0 %v1634
      %v2172 = vpop.f32.mrb[0].mxu0
      %v2173 = vadd.f32 %v1436, %v2172
      %v2174 = vpop.f32.mrb[0].mxu0
      %v2175 = vpop.f32.mrb[0].mxu0
      %v2176 = vadd.f32 %v1436, %v2175
      %v2177 = vpop.f32.mrb[0].mxu0
      %2178 = vmatprep.mubr.bf16.mxu0 0
      %2179 = vmatmul.mubr.bf16.gmra.mrb[0].mxu0 %v1637
      %v2180 = vpop.f32.mrb[0].mxu0
      %v2181 = vadd.f32 %v1436, %v2180
      %v2182 = vpop.f32.mrb[0].mxu0
      %v2183 = vpop.f32.mrb[0].mxu0
      %v2184 = vadd.f32 %v1436, %v2183
      %v2185 = vpop.f32.mrb[0].mxu0
      %2186 = vdwg.mxu0
      %v2187 = vmax.f32 %v1677, 0.0
      %v2188 = vmax.f32 %v1680, 0.0
      %v2189 = vmax.f32 %v1685, 0.0
      %v2190 = vmax.f32 %v1688, 0.0
      %v2191 = vmax.f32 %v1693, 0.0
      %v2192 = vmax.f32 %v1696, 0.0
      %v2193 = vmax.f32 %v1701, 0.0
      %v2194 = vmax.f32 %v1704, 0.0
      %v2195 = vmax.f32 %v1709, 0.0
      %v2196 = vmax.f32 %v1712, 0.0
      %v2197 = vmax.f32 %v1717, 0.0
      %v2198 = vmax.f32 %v1720, 0.0
      %v2199 = vmax.f32 %v1725, 0.0
      %v2200 = vmax.f32 %v1728, 0.0
      %v2201 = vmax.f32 %v1733, 0.0
      %v2202 = vmax.f32 %v1736, 0.0
      %v2203 = vmax.f32 %v1741, 0.0
      %v2204 = vmax.f32 %v1744, 0.0
      %v2205 = vmax.f32 %v1749, 0.0
      %v2206 = vmax.f32 %v1752, 0.0
      %v2207 = vmax.f32 %v1757, 0.0
      %v2208 = vmax.f32 %v1760, 0.0
      %v2209 = vmax.f32 %v1765, 0.0
      %v2210 = vmax.f32 %v1768, 0.0
      %v2211 = vmax.f32 %v1773, 0.0
      %v2212 = vmax.f32 %v1776, 0.0
      %v2213 = vmax.f32 %v1781, 0.0
      %v2214 = vmax.f32 %v1784, 0.0
      %v2215 = vmax.f32 %v1789, 0.0
      %v2216 = vmax.f32 %v1792, 0.0
      %v2217 = vmax.f32 %v1797, 0.0
      %v2218 = vmax.f32 %v1800, 0.0
      %v2219 = vmax.f32 %v1805, 0.0
      %v2220 = vmax.f32 %v1808, 0.0
      %v2221 = vmax.f32 %v1813, 0.0
      %v2222 = vmax.f32 %v1816, 0.0
      %v2223 = vmax.f32 %v1821, 0.0
      %v2224 = vmax.f32 %v1824, 0.0
      %v2225 = vmax.f32 %v1829, 0.0
      %v2226 = vmax.f32 %v1832, 0.0
      %v2227 = vmax.f32 %v1837, 0.0
      %v2228 = vmax.f32 %v1840, 0.0
      %v2229 = vmax.f32 %v1845, 0.0
      %v2230 = vmax.f32 %v1848, 0.0
      %v2231 = vmax.f32 %v1853, 0.0
      %v2232 = vmax.f32 %v1856, 0.0
      %v2233 = vmax.f32 %v1861, 0.0
      %v2234 = vmax.f32 %v1864, 0.0
      %v2235 = vmax.f32 %v1869, 0.0
      %v2236 = vmax.f32 %v1872, 0.0
      %v2237 = vmax.f32 %v1877, 0.0
      %v2238 = vmax.f32 %v1880, 0.0
      %v2239 = vmax.f32 %v1885, 0.0
      %v2240 = vmax.f32 %v1888, 0.0
      %v2241 = vmax.f32 %v1893, 0.0
      %v2242 = vmax.f32 %v1896, 0.0
      %v2243 = vmax.f32 %v1901, 0.0
      %v2244 = vmax.f32 %v1904, 0.0
      %v2245 = vmax.f32 %v1909, 0.0
      %v2246 = vmax.f32 %v1912, 0.0
      %v2247 = vmax.f32 %v1917, 0.0
      %v2248 = vmax.f32 %v1920, 0.0
      %v2249 = vmax.f32 %v1925, 0.0
      %v2250 = vmax.f32 %v1928, 0.0
      %v2251 = vmax.f32 %v1933, 0.0
      %v2252 = vmax.f32 %v1936, 0.0
      %v2253 = vmax.f32 %v1941, 0.0
      %v2254 = vmax.f32 %v1944, 0.0
      %v2255 = vmax.f32 %v1949, 0.0
      %v2256 = vmax.f32 %v1952, 0.0
      %v2257 = vmax.f32 %v1957, 0.0
      %v2258 = vmax.f32 %v1960, 0.0
      %v2259 = vmax.f32 %v1965, 0.0
      %v2260 = vmax.f32 %v1968, 0.0
      %v2261 = vmax.f32 %v1973, 0.0
      %v2262 = vmax.f32 %v1976, 0.0
      %v2263 = vmax.f32 %v1981, 0.0
      %v2264 = vmax.f32 %v1984, 0.0
      %v2265 = vmax.f32 %v1989, 0.0
      %v2266 = vmax.f32 %v1992, 0.0
      %v2267 = vmax.f32 %v1997, 0.0
      %v2268 = vmax.f32 %v2000, 0.0
      %v2269 = vmax.f32 %v2005, 0.0
      %v2270 = vmax.f32 %v2008, 0.0
      %v2271 = vmax.f32 %v2013, 0.0
      %v2272 = vmax.f32 %v2016, 0.0
      %v2273 = vmax.f32 %v2021, 0.0
      %v2274 = vmax.f32 %v2024, 0.0
      %v2275 = vmax.f32 %v2029, 0.0
      %v2276 = vmax.f32 %v2032, 0.0
      %v2277 = vmax.f32 %v2037, 0.0
      %v2278 = vmax.f32 %v2040, 0.0
      %v2279 = vmax.f32 %v2045, 0.0
      %v2280 = vmax.f32 %v2048, 0.0
      %v2281 = vmax.f32 %v2053, 0.0
      %v2282 = vmax.f32 %v2056, 0.0
      %v2283 = vmax.f32 %v2061, 0.0
      %v2284 = vmax.f32 %v2064, 0.0
      %v2285 = vmax.f32 %v2069, 0.0
      %v2286 = vmax.f32 %v2072, 0.0
      %v2287 = vmax.f32 %v2077, 0.0
      %v2288 = vmax.f32 %v2080, 0.0
      %v2289 = vmax.f32 %v2085, 0.0
      %v2290 = vmax.f32 %v2088, 0.0
      %v2291 = vmax.f32 %v2093, 0.0
      %v2292 = vmax.f32 %v2096, 0.0
      %v2293 = vmax.f32 %v2101, 0.0
      %v2294 = vmax.f32 %v2104, 0.0
      %v2295 = vmax.f32 %v2109, 0.0
      %v2296 = vmax.f32 %v2112, 0.0
      %v2297 = vmax.f32 %v2117, 0.0
      %v2298 = vmax.f32 %v2120, 0.0
      %v2299 = vmax.f32 %v2125, 0.0
      %v2300 = vmax.f32 %v2128, 0.0
      %v2301 = vmax.f32 %v2133, 0.0
      %v2302 = vmax.f32 %v2136, 0.0
      %v2303 = vmax.f32 %v2141, 0.0
      %v2304 = vmax.f32 %v2144, 0.0
      %v2305 = vmax.f32 %v2149, 0.0
      %v2306 = vmax.f32 %v2152, 0.0
      %v2307 = vmax.f32 %v2157, 0.0
      %v2308 = vmax.f32 %v2160, 0.0
      %v2309 = vmax.f32 %v2165, 0.0
      %v2310 = vmax.f32 %v2168, 0.0
      %v2311 = vmax.f32 %v2173, 0.0
      %v2312 = vmax.f32 %v2176, 0.0
      %v2313 = vmax.f32 %v2181, 0.0
      %v2314 = vmax.f32 %v2184, 0.0
      %v2315 = vpack.c.bf16 %v2188, %v2187
      %v2316 = vpack.c.bf16 %v2190, %v2189
      %v2317 = vpack.c.bf16 %v2192, %v2191
      %v2318 = vpack.c.bf16 %v2194, %v2193
      %v2319 = vpack.c.bf16 %v2196, %v2195
      %v2320 = vpack.c.bf16 %v2198, %v2197
      %v2321 = vpack.c.bf16 %v2200, %v2199
      %v2322 = vpack.c.bf16 %v2202, %v2201
      %v2323 = vpack.c.bf16 %v2204, %v2203
      %v2324 = vpack.c.bf16 %v2206, %v2205
      %v2325 = vpack.c.bf16 %v2208, %v2207
      %v2326 = vpack.c.bf16 %v2210, %v2209
      %v2327 = vpack.c.bf16 %v2212, %v2211
      %v2328 = vpack.c.bf16 %v2214, %v2213
      %v2329 = vpack.c.bf16 %v2216, %v2215
      %v2330 = vpack.c.bf16 %v2218, %v2217
      %v2331 = vpack.c.bf16 %v2220, %v2219
      %v2332 = vpack.c.bf16 %v2222, %v2221
      %v2333 = vpack.c.bf16 %v2224, %v2223
      %v2334 = vpack.c.bf16 %v2226, %v2225
      %v2335 = vpack.c.bf16 %v2228, %v2227
      %v2336 = vpack.c.bf16 %v2230, %v2229
      %v2337 = vpack.c.bf16 %v2232, %v2231
      %v2338 = vpack.c.bf16 %v2234, %v2233
      %v2339 = vpack.c.bf16 %v2236, %v2235
      %v2340 = vpack.c.bf16 %v2238, %v2237
      %v2341 = vpack.c.bf16 %v2240, %v2239
      %v2342 = vpack.c.bf16 %v2242, %v2241
      %v2343 = vpack.c.bf16 %v2244, %v2243
      %v2344 = vpack.c.bf16 %v2246, %v2245
      %v2345 = vpack.c.bf16 %v2248, %v2247
      %v2346 = vpack.c.bf16 %v2250, %v2249
      %v2347 = vpack.c.bf16 %v2252, %v2251
      %v2348 = vpack.c.bf16 %v2254, %v2253
      %v2349 = vpack.c.bf16 %v2256, %v2255
      %v2350 = vpack.c.bf16 %v2258, %v2257
      %v2351 = vpack.c.bf16 %v2260, %v2259
      %v2352 = vpack.c.bf16 %v2262, %v2261
      %v2353 = vpack.c.bf16 %v2264, %v2263
      %v2354 = vpack.c.bf16 %v2266, %v2265
      %v2355 = vpack.c.bf16 %v2268, %v2267
      %v2356 = vpack.c.bf16 %v2270, %v2269
      %v2357 = vpack.c.bf16 %v2272, %v2271
      %v2358 = vpack.c.bf16 %v2274, %v2273
      %v2359 = vpack.c.bf16 %v2276, %v2275
      %v2360 = vpack.c.bf16 %v2278, %v2277
      %v2361 = vpack.c.bf16 %v2280, %v2279
      %v2362 = vpack.c.bf16 %v2282, %v2281
      %v2363 = vpack.c.bf16 %v2284, %v2283
      %v2364 = vpack.c.bf16 %v2286, %v2285
      %v2365 = vpack.c.bf16 %v2288, %v2287
      %v2366 = vpack.c.bf16 %v2290, %v2289
      %v2367 = vpack.c.bf16 %v2292, %v2291
      %v2368 = vpack.c.bf16 %v2294, %v2293
      %v2369 = vpack.c.bf16 %v2296, %v2295
      %v2370 = vpack.c.bf16 %v2298, %v2297
      %v2371 = vpack.c.bf16 %v2300, %v2299
      %v2372 = vpack.c.bf16 %v2302, %v2301
      %v2373 = vpack.c.bf16 %v2304, %v2303
      %v2374 = vpack.c.bf16 %v2306, %v2305
      %v2375 = vpack.c.bf16 %v2308, %v2307
      %v2376 = vpack.c.bf16 %v2310, %v2309
      %v2377 = vpack.c.bf16 %v2312, %v2311
      %v2378 = vpack.c.bf16 %v2314, %v2313
      %v2379 = vld [vmem:[%s5] sm:$0xf]
      %v2380 = vld [vmem:[%s5 + $0x4] sm:$0xf]
      %v2381 = vld [vmem:[%s5 + $0x8] sm:$0xf]
      %v2382 = vld [vmem:[%s6] sm:$0x1]
      %v2384 = vlaneseq
      %v2385 = vshrl.u32 %v2384, 7
      %v2386 = vsub.s32 0, %v2385
      %v2387 = vrot.slane %v2382, %v2386
      %v2392 = vunpack.c.l.b16 %v2379
      %v2393 = vunpack.c.l.b16 %v2380
      %v2394 = vunpack.c.l.b16 %v2381
      %v2395 = vpack.c.b16 %v2393, %v2392
      %v2396 = vpack.c.b16 %v2394, %v2394
      %v2399 = vsel %vm494, %v2315, 0
      %v2402 = vsel %vm494, %v2316, 0
      %v2405 = vsel %vm494, %v2317, 0
      %v2408 = vsel %vm494, %v2318, 0
      %v2411 = vsel %vm494, %v2319, 0
      %v2414 = vsel %vm494, %v2320, 0
      %v2417 = vsel %vm494, %v2321, 0
      %v2420 = vsel %vm494, %v2322, 0
      %v2423 = vsel %vm494, %v2323, 0
      %v2426 = vsel %vm494, %v2324, 0
      %v2429 = vsel %vm494, %v2325, 0
      %v2432 = vsel %vm494, %v2326, 0
      %v2435 = vsel %vm494, %v2327, 0
      %v2438 = vsel %vm494, %v2328, 0
      %v2441 = vsel %vm494, %v2329, 0
      %v2444 = vsel %vm494, %v2330, 0
      %v2447 = vsel %vm494, %v2331, 0
      %v2450 = vsel %vm494, %v2332, 0
      %v2453 = vsel %vm494, %v2333, 0
      %v2456 = vsel %vm494, %v2334, 0
      %v2459 = vsel %vm494, %v2335, 0
      %v2462 = vsel %vm494, %v2336, 0
      %v2465 = vsel %vm494, %v2337, 0
      %v2468 = vsel %vm494, %v2338, 0
      %v2471 = vsel %vm494, %v2339, 0
      %v2474 = vsel %vm494, %v2340, 0
      %v2477 = vsel %vm494, %v2341, 0
      %v2480 = vsel %vm494, %v2342, 0
      %v2483 = vsel %vm494, %v2343, 0
      %v2486 = vsel %vm494, %v2344, 0
      %v2489 = vsel %vm494, %v2345, 0
      %v2492 = vsel %vm494, %v2346, 0
      %v2495 = vsel %vm494, %v2347, 0
      %v2498 = vsel %vm494, %v2348, 0
      %v2501 = vsel %vm494, %v2349, 0
      %v2504 = vsel %vm494, %v2350, 0
      %v2507 = vsel %vm494, %v2351, 0
      %v2510 = vsel %vm494, %v2352, 0
      %v2513 = vsel %vm494, %v2353, 0
      %v2516 = vsel %vm494, %v2354, 0
      %v2519 = vsel %vm494, %v2355, 0
      %v2522 = vsel %vm494, %v2356, 0
      %v2525 = vsel %vm494, %v2357, 0
      %v2528 = vsel %vm494, %v2358, 0
      %v2531 = vsel %vm494, %v2359, 0
      %v2534 = vsel %vm494, %v2360, 0
      %v2537 = vsel %vm494, %v2361, 0
      %v2540 = vsel %vm494, %v2362, 0
      %v2543 = vsel %vm494, %v2363, 0
      %v2546 = vsel %vm494, %v2364, 0
      %v2549 = vsel %vm494, %v2365, 0
      %v2552 = vsel %vm494, %v2366, 0
      %v2555 = vsel %vm494, %v2367, 0
      %v2558 = vsel %vm494, %v2368, 0
      %v2561 = vsel %vm494, %v2369, 0
      %v2564 = vsel %vm494, %v2370, 0
      %v2567 = vsel %vm494, %v2371, 0
      %v2570 = vsel %vm494, %v2372, 0
      %v2573 = vsel %vm494, %v2373, 0
      %v2576 = vsel %vm494, %v2374, 0
      %v2579 = vsel %vm494, %v2375, 0
      %v2582 = vsel %vm494, %v2376, 0
      %v2585 = vsel %vm494, %v2377, 0
      %v2588 = vsel %vm494, %v2378, 0
      %v2591 = vsel %vm687, %v2396, 0
      %2593 = vmatprep.subr.bf16.mxu0 0
      %2594 = vmatpush1.bf16.msra.mxu0 %v2395
      %2595 = vmatprep.subr.bf16.mxu0 0
      %2596 = vmatpush1.bf16.msra.mxu0 %v2591
      %2597 = vmatprep.subr.bf16.mxu0 0
      %2598 = vmatpush1.bf16.msra.mxu0 0
      %2599 = vmatprep.subr.bf16.mxu0 0
      %2600 = vmatpush1.bf16.msra.mxu0 0
      %2601 = vmatprep.subr.bf16.mxu0 0
      %2602 = vmatpush1.bf16.msra.mxu0 0
      %2603 = vmatprep.subr.bf16.mxu0 0
      %2604 = vmatpush1.bf16.msra.mxu0 0
      %2605 = vmatprep.subr.bf16.mxu0 0
      %2606 = vmatpush1.bf16.msra.mxu0 0
      %2607 = vmatprep.subr.bf16.mxu0 0
      %2608 = vmatpush1.bf16.msra.mxu0 0
      %2609 = vmatprep.subr.bf16.mxu0 0
      %2610 = vmatpush1.bf16.msra.mxu0 0
      %2611 = vmatprep.subr.bf16.mxu0 0
      %2612 = vmatpush1.bf16.msra.mxu0 0
      %2613 = vmatprep.subr.bf16.mxu0 0
      %2614 = vmatpush1.bf16.msra.mxu0 0
      %2615 = vmatprep.subr.bf16.mxu0 0
      %2616 = vmatpush1.bf16.msra.mxu0 0
      %2617 = vmatprep.subr.bf16.mxu0 0
      %2618 = vmatpush1.bf16.msra.mxu0 0
      %2619 = vmatprep.subr.bf16.mxu0 0
      %2620 = vmatpush1.bf16.msra.mxu0 0
      %2621 = vmatprep.subr.bf16.mxu0 0
      %2622 = vmatpush1.bf16.msra.mxu0 0
      %2623 = vmatprep.subr.bf16.mxu0 0
      %2624 = vmatpush1.bf16.msra.mxu0 0
      %2625 = vmatprep.mubr.bf16.mxu0 0
      %2626 = vmatmul.mubr.bf16.gmra.mrb[0].mxu0 %v2399
      %v2627 = vpop.f32.mrb[0].mxu0
      %v2628 = vadd.f32 %v2387, %v2627
      %v2629 = vpop.f32.mrb[0].mxu0
      %v2630 = vpop.f32.mrb[0].mxu0
      %v2631 = vadd.f32 %v2387, %v2630
      %v2632 = vpop.f32.mrb[0].mxu0
      %2633 = vmatprep.mubr.bf16.mxu0 0
      %2634 = vmatmul.mubr.bf16.gmra.mrb[0].mxu0 %v2402
      %v2635 = vpop.f32.mrb[0].mxu0
      %v2636 = vadd.f32 %v2387, %v2635
      %v2637 = vpop.f32.mrb[0].mxu0
      %v2638 = vpop.f32.mrb[0].mxu0
      %v2639 = vadd.f32 %v2387, %v2638
      %v2640 = vpop.f32.mrb[0].mxu0
      %2641 = vmatprep.mubr.bf16.mxu0 0
      %2642 = vmatmul.mubr.bf16.gmra.mrb[0].mxu0 %v2405
      %v2643 = vpop.f32.mrb[0].mxu0
      %v2644 = vadd.f32 %v2387, %v2643
      %v2645 = vpop.f32.mrb[0].mxu0
      %v2646 = vpop.f32.mrb[0].mxu0
      %v2647 = vadd.f32 %v2387, %v2646
      %v2648 = vpop.f32.mrb[0].mxu0
      %2649 = vmatprep.mubr.bf16.mxu0 0
      %2650 = vmatmul.mubr.bf16.gmra.mrb[0].mxu0 %v2408
      %v2651 = vpop.f32.mrb[0].mxu0
      %v2652 = vadd.f32 %v2387, %v2651
      %v2653 = vpop.f32.mrb[0].mxu0
      %v2654 = vpop.f32.mrb[0].mxu0
      %v2655 = vadd.f32 %v2387, %v2654
      %v2656 = vpop.f32.mrb[0].mxu0
      %2657 = vmatprep.mubr.bf16.mxu0 0
      %2658 = vmatmul.mubr.bf16.gmra.mrb[0].mxu0 %v2411
      %v2659 = vpop.f32.mrb[0].mxu0
      %v2660 = vadd.f32 %v2387, %v2659
      %v2661 = vpop.f32.mrb[0].mxu0
      %v2662 = vpop.f32.mrb[0].mxu0
      %v2663 = vadd.f32 %v2387, %v2662
      %v2664 = vpop.f32.mrb[0].mxu0
      %2665 = vmatprep.mubr.bf16.mxu0 0
      %2666 = vmatmul.mubr.bf16.gmra.mrb[0].mxu0 %v2414
      %v2667 = vpop.f32.mrb[0].mxu0
      %v2668 = vadd.f32 %v2387, %v2667
      %v2669 = vpop.f32.mrb[0].mxu0
      %v2670 = vpop.f32.mrb[0].mxu0
      %v2671 = vadd.f32 %v2387, %v2670
      %v2672 = vpop.f32.mrb[0].mxu0
      %2673 = vmatprep.mubr.bf16.mxu0 0
      %2674 = vmatmul.mubr.bf16.gmra.mrb[0].mxu0 %v2417
      %v2675 = vpop.f32.mrb[0].mxu0
      %v2676 = vadd.f32 %v2387, %v2675
      %v2677 = vpop.f32.mrb[0].mxu0
      %v2678 = vpop.f32.mrb[0].mxu0
      %v2679 = vadd.f32 %v2387, %v2678
      %v2680 = vpop.f32.mrb[0].mxu0
      %2681 = vmatprep.mubr.bf16.mxu0 0
      %2682 = vmatmul.mubr.bf16.gmra.mrb[0].mxu0 %v2420
      %v2683 = vpop.f32.mrb[0].mxu0
      %v2684 = vadd.f32 %v2387, %v2683
      %v2685 = vpop.f32.mrb[0].mxu0
      %v2686 = vpop.f32.mrb[0].mxu0
      %v2687 = vadd.f32 %v2387, %v2686
      %v2688 = vpop.f32.mrb[0].mxu0
      %2689 = vmatprep.mubr.bf16.mxu0 0
      %2690 = vmatmul.mubr.bf16.gmra.mrb[0].mxu0 %v2423
      %v2691 = vpop.f32.mrb[0].mxu0
      %v2692 = vadd.f32 %v2387, %v2691
      %v2693 = vpop.f32.mrb[0].mxu0
      %v2694 = vpop.f32.mrb[0].mxu0
      %v2695 = vadd.f32 %v2387, %v2694
      %v2696 = vpop.f32.mrb[0].mxu0
      %2697 = vmatprep.mubr.bf16.mxu0 0
      %2698 = vmatmul.mubr.bf16.gmra.mrb[0].mxu0 %v2426
      %v2699 = vpop.f32.mrb[0].mxu0
      %v2700 = vadd.f32 %v2387, %v2699
      %v2701 = vpop.f32.mrb[0].mxu0
      %v2702 = vpop.f32.mrb[0].mxu0
      %v2703 = vadd.f32 %v2387, %v2702
      %v2704 = vpop.f32.mrb[0].mxu0
      %2705 = vmatprep.mubr.bf16.mxu0 0
      %2706 = vmatmul.mubr.bf16.gmra.mrb[0].mxu0 %v2429
      %v2707 = vpop.f32.mrb[0].mxu0
      %v2708 = vadd.f32 %v2387, %v2707
      %v2709 = vpop.f32.mrb[0].mxu0
      %v2710 = vpop.f32.mrb[0].mxu0
      %v2711 = vadd.f32 %v2387, %v2710
      %v2712 = vpop.f32.mrb[0].mxu0
      %2713 = vmatprep.mubr.bf16.mxu0 0
      %2714 = vmatmul.mubr.bf16.gmra.mrb[0].mxu0 %v2432
      %v2715 = vpop.f32.mrb[0].mxu0
      %v2716 = vadd.f32 %v2387, %v2715
      %v2717 = vpop.f32.mrb[0].mxu0
      %v2718 = vpop.f32.mrb[0].mxu0
      %v2719 = vadd.f32 %v2387, %v2718
      %v2720 = vpop.f32.mrb[0].mxu0
      %2721 = vmatprep.mubr.bf16.mxu0 0
      %2722 = vmatmul.mubr.bf16.gmra.mrb[0].mxu0 %v2435
      %v2723 = vpop.f32.mrb[0].mxu0
      %v2724 = vadd.f32 %v2387, %v2723
      %v2725 = vpop.f32.mrb[0].mxu0
      %v2726 = vpop.f32.mrb[0].mxu0
      %v2727 = vadd.f32 %v2387, %v2726
      %v2728 = vpop.f32.mrb[0].mxu0
      %2729 = vmatprep.mubr.bf16.mxu0 0
      %2730 = vmatmul.mubr.bf16.gmra.mrb[0].mxu0 %v2438
      %v2731 = vpop.f32.mrb[0].mxu0
      %v2732 = vadd.f32 %v2387, %v2731
      %v2733 = vpop.f32.mrb[0].mxu0
      %v2734 = vpop.f32.mrb[0].mxu0
      %v2735 = vadd.f32 %v2387, %v2734
      %v2736 = vpop.f32.mrb[0].mxu0
      %2737 = vmatprep.mubr.bf16.mxu0 0
      %2738 = vmatmul.mubr.bf16.gmra.mrb[0].mxu0 %v2441
      %v2739 = vpop.f32.mrb[0].mxu0
      %v2740 = vadd.f32 %v2387, %v2739
      %v2741 = vpop.f32.mrb[0].mxu0
      %v2742 = vpop.f32.mrb[0].mxu0
      %v2743 = vadd.f32 %v2387, %v2742
      %v2744 = vpop.f32.mrb[0].mxu0
      %2745 = vmatprep.mubr.bf16.mxu0 0
      %2746 = vmatmul.mubr.bf16.gmra.mrb[0].mxu0 %v2444
      %v2747 = vpop.f32.mrb[0].mxu0
      %v2748 = vadd.f32 %v2387, %v2747
      %v2749 = vpop.f32.mrb[0].mxu0
      %v2750 = vpop.f32.mrb[0].mxu0
      %v2751 = vadd.f32 %v2387, %v2750
      %v2752 = vpop.f32.mrb[0].mxu0
      %2753 = vmatprep.mubr.bf16.mxu0 0
      %2754 = vmatmul.mubr.bf16.gmra.mrb[0].mxu0 %v2447
      %v2755 = vpop.f32.mrb[0].mxu0
      %v2756 = vadd.f32 %v2387, %v2755
      %v2757 = vpop.f32.mrb[0].mxu0
      %v2758 = vpop.f32.mrb[0].mxu0
      %v2759 = vadd.f32 %v2387, %v2758
      %v2760 = vpop.f32.mrb[0].mxu0
      %2761 = vmatprep.mubr.bf16.mxu0 0
      %2762 = vmatmul.mubr.bf16.gmra.mrb[0].mxu0 %v2450
      %v2763 = vpop.f32.mrb[0].mxu0
      %v2764 = vadd.f32 %v2387, %v2763
      %v2765 = vpop.f32.mrb[0].mxu0
      %v2766 = vpop.f32.mrb[0].mxu0
      %v2767 = vadd.f32 %v2387, %v2766
      %v2768 = vpop.f32.mrb[0].mxu0
      %2769 = vmatprep.mubr.bf16.mxu0 0
      %2770 = vmatmul.mubr.bf16.gmra.mrb[0].mxu0 %v2453
      %v2771 = vpop.f32.mrb[0].mxu0
      %v2772 = vadd.f32 %v2387, %v2771
      %v2773 = vpop.f32.mrb[0].mxu0
      %v2774 = vpop.f32.mrb[0].mxu0
      %v2775 = vadd.f32 %v2387, %v2774
      %v2776 = vpop.f32.mrb[0].mxu0
      %2777 = vmatprep.mubr.bf16.mxu0 0
      %2778 = vmatmul.mubr.bf16.gmra.mrb[0].mxu0 %v2456
      %v2779 = vpop.f32.mrb[0].mxu0
      %v2780 = vadd.f32 %v2387, %v2779
      %v2781 = vpop.f32.mrb[0].mxu0
      %v2782 = vpop.f32.mrb[0].mxu0
      %v2783 = vadd.f32 %v2387, %v2782
      %v2784 = vpop.f32.mrb[0].mxu0
      %2785 = vmatprep.mubr.bf16.mxu0 0
      %2786 = vmatmul.mubr.bf16.gmra.mrb[0].mxu0 %v2459
      %v2787 = vpop.f32.mrb[0].mxu0
      %v2788 = vadd.f32 %v2387, %v2787
      %v2789 = vpop.f32.mrb[0].mxu0
      %v2790 = vpop.f32.mrb[0].mxu0
      %v2791 = vadd.f32 %v2387, %v2790
      %v2792 = vpop.f32.mrb[0].mxu0
      %2793 = vmatprep.mubr.bf16.mxu0 0
      %2794 = vmatmul.mubr.bf16.gmra.mrb[0].mxu0 %v2462
      %v2795 = vpop.f32.mrb[0].mxu0
      %v2796 = vadd.f32 %v2387, %v2795
      %v2797 = vpop.f32.mrb[0].mxu0
      %v2798 = vpop.f32.mrb[0].mxu0
      %v2799 = vadd.f32 %v2387, %v2798
      %v2800 = vpop.f32.mrb[0].mxu0
      %2801 = vmatprep.mubr.bf16.mxu0 0
      %2802 = vmatmul.mubr.bf16.gmra.mrb[0].mxu0 %v2465
      %v2803 = vpop.f32.mrb[0].mxu0
      %v2804 = vadd.f32 %v2387, %v2803
      %v2805 = vpop.f32.mrb[0].mxu0
      %v2806 = vpop.f32.mrb[0].mxu0
      %v2807 = vadd.f32 %v2387, %v2806
      %v2808 = vpop.f32.mrb[0].mxu0
      %2809 = vmatprep.mubr.bf16.mxu0 0
      %2810 = vmatmul.mubr.bf16.gmra.mrb[0].mxu0 %v2468
      %v2811 = vpop.f32.mrb[0].mxu0
      %v2812 = vadd.f32 %v2387, %v2811
      %v2813 = vpop.f32.mrb[0].mxu0
      %v2814 = vpop.f32.mrb[0].mxu0
      %v2815 = vadd.f32 %v2387, %v2814
      %v2816 = vpop.f32.mrb[0].mxu0
      %2817 = vmatprep.mubr.bf16.mxu0 0
      %2818 = vmatmul.mubr.bf16.gmra.mrb[0].mxu0 %v2471
      %v2819 = vpop.f32.mrb[0].mxu0
      %v2820 = vadd.f32 %v2387, %v2819
      %v2821 = vpop.f32.mrb[0].mxu0
      %v2822 = vpop.f32.mrb[0].mxu0
      %v2823 = vadd.f32 %v2387, %v2822
      %v2824 = vpop.f32.mrb[0].mxu0
      %2825 = vmatprep.mubr.bf16.mxu0 0
      %2826 = vmatmul.mubr.bf16.gmra.mrb[0].mxu0 %v2474
      %v2827 = vpop.f32.mrb[0].mxu0
      %v2828 = vadd.f32 %v2387, %v2827
      %v2829 = vpop.f32.mrb[0].mxu0
      %v2830 = vpop.f32.mrb[0].mxu0
      %v2831 = vadd.f32 %v2387, %v2830
      %v2832 = vpop.f32.mrb[0].mxu0
      %2833 = vmatprep.mubr.bf16.mxu0 0
      %2834 = vmatmul.mubr.bf16.gmra.mrb[0].mxu0 %v2477
      %v2835 = vpop.f32.mrb[0].mxu0
      %v2836 = vadd.f32 %v2387, %v2835
      %v2837 = vpop.f32.mrb[0].mxu0
      %v2838 = vpop.f32.mrb[0].mxu0
      %v2839 = vadd.f32 %v2387, %v2838
      %v2840 = vpop.f32.mrb[0].mxu0
      %2841 = vmatprep.mubr.bf16.mxu0 0
      %2842 = vmatmul.mubr.bf16.gmra.mrb[0].mxu0 %v2480
      %v2843 = vpop.f32.mrb[0].mxu0
      %v2844 = vadd.f32 %v2387, %v2843
      %v2845 = vpop.f32.mrb[0].mxu0
      %v2846 = vpop.f32.mrb[0].mxu0
      %v2847 = vadd.f32 %v2387, %v2846
      %v2848 = vpop.f32.mrb[0].mxu0
      %2849 = vmatprep.mubr.bf16.mxu0 0
      %2850 = vmatmul.mubr.bf16.gmra.mrb[0].mxu0 %v2483
      %v2851 = vpop.f32.mrb[0].mxu0
      %v2852 = vadd.f32 %v2387, %v2851
      %v2853 = vpop.f32.mrb[0].mxu0
      %v2854 = vpop.f32.mrb[0].mxu0
      %v2855 = vadd.f32 %v2387, %v2854
      %v2856 = vpop.f32.mrb[0].mxu0
      %2857 = vmatprep.mubr.bf16.mxu0 0
      %2858 = vmatmul.mubr.bf16.gmra.mrb[0].mxu0 %v2486
      %v2859 = vpop.f32.mrb[0].mxu0
      %v2860 = vadd.f32 %v2387, %v2859
      %v2861 = vpop.f32.mrb[0].mxu0
      %v2862 = vpop.f32.mrb[0].mxu0
      %v2863 = vadd.f32 %v2387, %v2862
      %v2864 = vpop.f32.mrb[0].mxu0
      %2865 = vmatprep.mubr.bf16.mxu0 0
      %2866 = vmatmul.mubr.bf16.gmra.mrb[0].mxu0 %v2489
      %v2867 = vpop.f32.mrb[0].mxu0
      %v2868 = vadd.f32 %v2387, %v2867
      %v2869 = vpop.f32.mrb[0].mxu0
      %v2870 = vpop.f32.mrb[0].mxu0
      %v2871 = vadd.f32 %v2387, %v2870
      %v2872 = vpop.f32.mrb[0].mxu0
      %2873 = vmatprep.mubr.bf16.mxu0 0
      %2874 = vmatmul.mubr.bf16.gmra.mrb[0].mxu0 %v2492
      %v2875 = vpop.f32.mrb[0].mxu0
      %v2876 = vadd.f32 %v2387, %v2875
      %v2877 = vpop.f32.mrb[0].mxu0
      %v2878 = vpop.f32.mrb[0].mxu0
      %v2879 = vadd.f32 %v2387, %v2878
      %v2880 = vpop.f32.mrb[0].mxu0
      %2881 = vmatprep.mubr.bf16.mxu0 0
      %2882 = vmatmul.mubr.bf16.gmra.mrb[0].mxu0 %v2495
      %v2883 = vpop.f32.mrb[0].mxu0
      %v2884 = vadd.f32 %v2387, %v2883
      %v2885 = vpop.f32.mrb[0].mxu0
      %v2886 = vpop.f32.mrb[0].mxu0
      %v2887 = vadd.f32 %v2387, %v2886
      %v2888 = vpop.f32.mrb[0].mxu0
      %2889 = vmatprep.mubr.bf16.mxu0 0
      %2890 = vmatmul.mubr.bf16.gmra.mrb[0].mxu0 %v2498
      %v2891 = vpop.f32.mrb[0].mxu0
      %v2892 = vadd.f32 %v2387, %v2891
      %v2893 = vpop.f32.mrb[0].mxu0
      %v2894 = vpop.f32.mrb[0].mxu0
      %v2895 = vadd.f32 %v2387, %v2894
      %v2896 = vpop.f32.mrb[0].mxu0
      %2897 = vmatprep.mubr.bf16.mxu0 0
      %2898 = vmatmul.mubr.bf16.gmra.mrb[0].mxu0 %v2501
      %v2899 = vpop.f32.mrb[0].mxu0
      %v2900 = vadd.f32 %v2387, %v2899
      %v2901 = vpop.f32.mrb[0].mxu0
      %v2902 = vpop.f32.mrb[0].mxu0
      %v2903 = vadd.f32 %v2387, %v2902
      %v2904 = vpop.f32.mrb[0].mxu0
      %2905 = vmatprep.mubr.bf16.mxu0 0
      %2906 = vmatmul.mubr.bf16.gmra.mrb[0].mxu0 %v2504
      %v2907 = vpop.f32.mrb[0].mxu0
      %v2908 = vadd.f32 %v2387, %v2907
      %v2909 = vpop.f32.mrb[0].mxu0
      %v2910 = vpop.f32.mrb[0].mxu0
      %v2911 = vadd.f32 %v2387, %v2910
      %v2912 = vpop.f32.mrb[0].mxu0
      %2913 = vmatprep.mubr.bf16.mxu0 0
      %2914 = vmatmul.mubr.bf16.gmra.mrb[0].mxu0 %v2507
      %v2915 = vpop.f32.mrb[0].mxu0
      %v2916 = vadd.f32 %v2387, %v2915
      %v2917 = vpop.f32.mrb[0].mxu0
      %v2918 = vpop.f32.mrb[0].mxu0
      %v2919 = vadd.f32 %v2387, %v2918
      %v2920 = vpop.f32.mrb[0].mxu0
      %2921 = vmatprep.mubr.bf16.mxu0 0
      %2922 = vmatmul.mubr.bf16.gmra.mrb[0].mxu0 %v2510
      %v2923 = vpop.f32.mrb[0].mxu0
      %v2924 = vadd.f32 %v2387, %v2923
      %v2925 = vpop.f32.mrb[0].mxu0
      %v2926 = vpop.f32.mrb[0].mxu0
      %v2927 = vadd.f32 %v2387, %v2926
      %v2928 = vpop.f32.mrb[0].mxu0
      %2929 = vmatprep.mubr.bf16.mxu0 0
      %2930 = vmatmul.mubr.bf16.gmra.mrb[0].mxu0 %v2513
      %v2931 = vpop.f32.mrb[0].mxu0
      %v2932 = vadd.f32 %v2387, %v2931
      %v2933 = vpop.f32.mrb[0].mxu0
      %v2934 = vpop.f32.mrb[0].mxu0
      %v2935 = vadd.f32 %v2387, %v2934
      %v2936 = vpop.f32.mrb[0].mxu0
      %2937 = vmatprep.mubr.bf16.mxu0 0
      %2938 = vmatmul.mubr.bf16.gmra.mrb[0].mxu0 %v2516
      %v2939 = vpop.f32.mrb[0].mxu0
      %v2940 = vadd.f32 %v2387, %v2939
      %v2941 = vpop.f32.mrb[0].mxu0
      %v2942 = vpop.f32.mrb[0].mxu0
      %v2943 = vadd.f32 %v2387, %v2942
      %v2944 = vpop.f32.mrb[0].mxu0
      %2945 = vmatprep.mubr.bf16.mxu0 0
      %2946 = vmatmul.mubr.bf16.gmra.mrb[0].mxu0 %v2519
      %v2947 = vpop.f32.mrb[0].mxu0
      %v2948 = vadd.f32 %v2387, %v2947
      %v2949 = vpop.f32.mrb[0].mxu0
      %v2950 = vpop.f32.mrb[0].mxu0
      %v2951 = vadd.f32 %v2387, %v2950
      %v2952 = vpop.f32.mrb[0].mxu0
      %2953 = vmatprep.mubr.bf16.mxu0 0
      %2954 = vmatmul.mubr.bf16.gmra.mrb[0].mxu0 %v2522
      %v2955 = vpop.f32.mrb[0].mxu0
      %v2956 = vadd.f32 %v2387, %v2955
      %v2957 = vpop.f32.mrb[0].mxu0
      %v2958 = vpop.f32.mrb[0].mxu0
      %v2959 = vadd.f32 %v2387, %v2958
      %v2960 = vpop.f32.mrb[0].mxu0
      %2961 = vmatprep.mubr.bf16.mxu0 0
      %2962 = vmatmul.mubr.bf16.gmra.mrb[0].mxu0 %v2525
      %v2963 = vpop.f32.mrb[0].mxu0
      %v2964 = vadd.f32 %v2387, %v2963
      %v2965 = vpop.f32.mrb[0].mxu0
      %v2966 = vpop.f32.mrb[0].mxu0
      %v2967 = vadd.f32 %v2387, %v2966
      %v2968 = vpop.f32.mrb[0].mxu0
      %2969 = vmatprep.mubr.bf16.mxu0 0
      %2970 = vmatmul.mubr.bf16.gmra.mrb[0].mxu0 %v2528
      %v2971 = vpop.f32.mrb[0].mxu0
      %v2972 = vadd.f32 %v2387, %v2971
      %v2973 = vpop.f32.mrb[0].mxu0
      %v2974 = vpop.f32.mrb[0].mxu0
      %v2975 = vadd.f32 %v2387, %v2974
      %v2976 = vpop.f32.mrb[0].mxu0
      %2977 = vmatprep.mubr.bf16.mxu0 0
      %2978 = vmatmul.mubr.bf16.gmra.mrb[0].mxu0 %v2531
      %v2979 = vpop.f32.mrb[0].mxu0
      %v2980 = vadd.f32 %v2387, %v2979
      %v2981 = vpop.f32.mrb[0].mxu0
      %v2982 = vpop.f32.mrb[0].mxu0
      %v2983 = vadd.f32 %v2387, %v2982
      %v2984 = vpop.f32.mrb[0].mxu0
      %2985 = vmatprep.mubr.bf16.mxu0 0
      %2986 = vmatmul.mubr.bf16.gmra.mrb[0].mxu0 %v2534
      %v2987 = vpop.f32.mrb[0].mxu0
      %v2988 = vadd.f32 %v2387, %v2987
      %v2989 = vpop.f32.mrb[0].mxu0
      %v2990 = vpop.f32.mrb[0].mxu0
      %v2991 = vadd.f32 %v2387, %v2990
      %v2992 = vpop.f32.mrb[0].mxu0
      %2993 = vmatprep.mubr.bf16.mxu0 0
      %2994 = vmatmul.mubr.bf16.gmra.mrb[0].mxu0 %v2537
      %v2995 = vpop.f32.mrb[0].mxu0
      %v2996 = vadd.f32 %v2387, %v2995
      %v2997 = vpop.f32.mrb[0].mxu0
      %v2998 = vpop.f32.mrb[0].mxu0
      %v2999 = vadd.f32 %v2387, %v2998
      %v3000 = vpop.f32.mrb[0].mxu0
      %3001 = vmatprep.mubr.bf16.mxu0 0
      %3002 = vmatmul.mubr.bf16.gmra.mrb[0].mxu0 %v2540
      %v3003 = vpop.f32.mrb[0].mxu0
      %v3004 = vadd.f32 %v2387, %v3003
      %v3005 = vpop.f32.mrb[0].mxu0
      %v3006 = vpop.f32.mrb[0].mxu0
      %v3007 = vadd.f32 %v2387, %v3006
      %v3008 = vpop.f32.mrb[0].mxu0
      %3009 = vmatprep.mubr.bf16.mxu0 0
      %3010 = vmatmul.mubr.bf16.gmra.mrb[0].mxu0 %v2543
      %v3011 = vpop.f32.mrb[0].mxu0
      %v3012 = vadd.f32 %v2387, %v3011
      %v3013 = vpop.f32.mrb[0].mxu0
      %v3014 = vpop.f32.mrb[0].mxu0
      %v3015 = vadd.f32 %v2387, %v3014
      %v3016 = vpop.f32.mrb[0].mxu0
      %3017 = vmatprep.mubr.bf16.mxu0 0
      %3018 = vmatmul.mubr.bf16.gmra.mrb[0].mxu0 %v2546
      %v3019 = vpop.f32.mrb[0].mxu0
      %v3020 = vadd.f32 %v2387, %v3019
      %v3021 = vpop.f32.mrb[0].mxu0
      %v3022 = vpop.f32.mrb[0].mxu0
      %v3023 = vadd.f32 %v2387, %v3022
      %v3024 = vpop.f32.mrb[0].mxu0
      %3025 = vmatprep.mubr.bf16.mxu0 0
      %3026 = vmatmul.mubr.bf16.gmra.mrb[0].mxu0 %v2549
      %v3027 = vpop.f32.mrb[0].mxu0
      %v3028 = vadd.f32 %v2387, %v3027
      %v3029 = vpop.f32.mrb[0].mxu0
      %v3030 = vpop.f32.mrb[0].mxu0
      %v3031 = vadd.f32 %v2387, %v3030
      %v3032 = vpop.f32.mrb[0].mxu0
      %3033 = vmatprep.mubr.bf16.mxu0 0
      %3034 = vmatmul.mubr.bf16.gmra.mrb[0].mxu0 %v2552
      %v3035 = vpop.f32.mrb[0].mxu0
      %v3036 = vadd.f32 %v2387, %v3035
      %v3037 = vpop.f32.mrb[0].mxu0
      %v3038 = vpop.f32.mrb[0].mxu0
      %v3039 = vadd.f32 %v2387, %v3038
      %v3040 = vpop.f32.mrb[0].mxu0
      %3041 = vmatprep.mubr.bf16.mxu0 0
      %3042 = vmatmul.mubr.bf16.gmra.mrb[0].mxu0 %v2555
      %v3043 = vpop.f32.mrb[0].mxu0
      %v3044 = vadd.f32 %v2387, %v3043
      %v3045 = vpop.f32.mrb[0].mxu0
      %v3046 = vpop.f32.mrb[0].mxu0
      %v3047 = vadd.f32 %v2387, %v3046
      %v3048 = vpop.f32.mrb[0].mxu0
      %3049 = vmatprep.mubr.bf16.mxu0 0
      %3050 = vmatmul.mubr.bf16.gmra.mrb[0].mxu0 %v2558
      %v3051 = vpop.f32.mrb[0].mxu0
      %v3052 = vadd.f32 %v2387, %v3051
      %v3053 = vpop.f32.mrb[0].mxu0
      %v3054 = vpop.f32.mrb[0].mxu0
      %v3055 = vadd.f32 %v2387, %v3054
      %v3056 = vpop.f32.mrb[0].mxu0
      %3057 = vmatprep.mubr.bf16.mxu0 0
      %3058 = vmatmul.mubr.bf16.gmra.mrb[0].mxu0 %v2561
      %v3059 = vpop.f32.mrb[0].mxu0
      %v3060 = vadd.f32 %v2387, %v3059
      %v3061 = vpop.f32.mrb[0].mxu0
      %v3062 = vpop.f32.mrb[0].mxu0
      %v3063 = vadd.f32 %v2387, %v3062
      %v3064 = vpop.f32.mrb[0].mxu0
      %3065 = vmatprep.mubr.bf16.mxu0 0
      %3066 = vmatmul.mubr.bf16.gmra.mrb[0].mxu0 %v2564
      %v3067 = vpop.f32.mrb[0].mxu0
      %v3068 = vadd.f32 %v2387, %v3067
      %v3069 = vpop.f32.mrb[0].mxu0
      %v3070 = vpop.f32.mrb[0].mxu0
      %v3071 = vadd.f32 %v2387, %v3070
      %v3072 = vpop.f32.mrb[0].mxu0
      %3073 = vmatprep.mubr.bf16.mxu0 0
      %3074 = vmatmul.mubr.bf16.gmra.mrb[0].mxu0 %v2567
      %v3075 = vpop.f32.mrb[0].mxu0
      %v3076 = vadd.f32 %v2387, %v3075
      %v3077 = vpop.f32.mrb[0].mxu0
      %v3078 = vpop.f32.mrb[0].mxu0
      %v3079 = vadd.f32 %v2387, %v3078
      %v3080 = vpop.f32.mrb[0].mxu0
      %3081 = vmatprep.mubr.bf16.mxu0 0
      %3082 = vmatmul.mubr.bf16.gmra.mrb[0].mxu0 %v2570
      %v3083 = vpop.f32.mrb[0].mxu0
      %v3084 = vadd.f32 %v2387, %v3083
      %v3085 = vpop.f32.mrb[0].mxu0
      %v3086 = vpop.f32.mrb[0].mxu0
      %v3087 = vadd.f32 %v2387, %v3086
      %v3088 = vpop.f32.mrb[0].mxu0
      %3089 = vmatprep.mubr.bf16.mxu0 0
      %3090 = vmatmul.mubr.bf16.gmra.mrb[0].mxu0 %v2573
      %v3091 = vpop.f32.mrb[0].mxu0
      %v3092 = vadd.f32 %v2387, %v3091
      %v3093 = vpop.f32.mrb[0].mxu0
      %v3094 = vpop.f32.mrb[0].mxu0
      %v3095 = vadd.f32 %v2387, %v3094
      %v3096 = vpop.f32.mrb[0].mxu0
      %3097 = vmatprep.mubr.bf16.mxu0 0
      %3098 = vmatmul.mubr.bf16.gmra.mrb[0].mxu0 %v2576
      %v3099 = vpop.f32.mrb[0].mxu0
      %v3100 = vadd.f32 %v2387, %v3099
      %v3101 = vpop.f32.mrb[0].mxu0
      %v3102 = vpop.f32.mrb[0].mxu0
      %v3103 = vadd.f32 %v2387, %v3102
      %v3104 = vpop.f32.mrb[0].mxu0
      %3105 = vmatprep.mubr.bf16.mxu0 0
      %3106 = vmatmul.mubr.bf16.gmra.mrb[0].mxu0 %v2579
      %v3107 = vpop.f32.mrb[0].mxu0
      %v3108 = vadd.f32 %v2387, %v3107
      %v3109 = vpop.f32.mrb[0].mxu0
      %v3110 = vpop.f32.mrb[0].mxu0
      %v3111 = vadd.f32 %v2387, %v3110
      %v3112 = vpop.f32.mrb[0].mxu0
      %3113 = vmatprep.mubr.bf16.mxu0 0
      %3114 = vmatmul.mubr.bf16.gmra.mrb[0].mxu0 %v2582
      %v3115 = vpop.f32.mrb[0].mxu0
      %v3116 = vadd.f32 %v2387, %v3115
      %v3117 = vpop.f32.mrb[0].mxu0
      %v3118 = vpop.f32.mrb[0].mxu0
      %v3119 = vadd.f32 %v2387, %v3118
      %v3120 = vpop.f32.mrb[0].mxu0
      %3121 = vmatprep.mubr.bf16.mxu0 0
      %3122 = vmatmul.mubr.bf16.gmra.mrb[0].mxu0 %v2585
      %v3123 = vpop.f32.mrb[0].mxu0
      %v3124 = vadd.f32 %v2387, %v3123
      %v3125 = vpop.f32.mrb[0].mxu0
      %v3126 = vpop.f32.mrb[0].mxu0
      %v3127 = vadd.f32 %v2387, %v3126
      %v3128 = vpop.f32.mrb[0].mxu0
      %3129 = vmatprep.mubr.bf16.mxu0 0
      %3130 = vmatmul.mubr.bf16.gmra.mrb[0].mxu0 %v2588
      %v3131 = vpop.f32.mrb[0].mxu0
      %v3132 = vadd.f32 %v2387, %v3131
      %v3133 = vpop.f32.mrb[0].mxu0
      %v3134 = vpop.f32.mrb[0].mxu0
      %v3135 = vadd.f32 %v2387, %v3134
      %v3136 = vpop.f32.mrb[0].mxu0
      %3137 = vdwg.mxu0
      %vm3138 = vcmask 97280
      %3139 = vst.msk [vmem:[%s280] sm:$0xff] %vm3138, %v2628
      %3140 = vst.msk [vmem:[%s280 + $0x8] sm:$0xff] %vm3138, %v2631
      %3141 = vst.msk [vmem:[%s280 + $0x10] sm:$0xff] %vm3138, %v2636
      %3142 = vst.msk [vmem:[%s280 + $0x18] sm:$0xff] %vm3138, %v2639
      %3143 = vst.msk [vmem:[%s280 + $0x20] sm:$0xff] %vm3138, %v2644
      %3144 = vst.msk [vmem:[%s280 + $0x28] sm:$0xff] %vm3138, %v2647
      %3145 = vst.msk [vmem:[%s280 + $0x30] sm:$0xff] %vm3138, %v2652
      %3146 = vst.msk [vmem:[%s280 + $0x38] sm:$0xff] %vm3138, %v2655
      %3147 = vst.msk [vmem:[%s280 + $0x40] sm:$0xff] %vm3138, %v2660
      %3148 = vst.msk [vmem:[%s280 + $0x48] sm:$0xff] %vm3138, %v2663
      %3149 = vst.msk [vmem:[%s280 + $0x50] sm:$0xff] %vm3138, %v2668
      %3150 = vst.msk [vmem:[%s280 + $0x58] sm:$0xff] %vm3138, %v2671
      %3151 = vst.msk [vmem:[%s280 + $0x60] sm:$0xff] %vm3138, %v2676
      %3152 = vst.msk [vmem:[%s280 + $0x68] sm:$0xff] %vm3138, %v2679
      %3153 = vst.msk [vmem:[%s280 + $0x70] sm:$0xff] %vm3138, %v2684
      %3154 = vst.msk [vmem:[%s280 + $0x78] sm:$0xff] %vm3138, %v2687
      %3155 = vst.msk [vmem:[%s280 + $0x80] sm:$0xff] %vm3138, %v2692
      %3156 = vst.msk [vmem:[%s280 + $0x88] sm:$0xff] %vm3138, %v2695
      %3157 = vst.msk [vmem:[%s280 + $0x90] sm:$0xff] %vm3138, %v2700
      %3158 = vst.msk [vmem:[%s280 + $0x98] sm:$0xff] %vm3138, %v2703
      %3159 = vst.msk [vmem:[%s280 + $0xa0] sm:$0xff] %vm3138, %v2708
      %3160 = vst.msk [vmem:[%s280 + $0xa8] sm:$0xff] %vm3138, %v2711
      %3161 = vst.msk [vmem:[%s280 + $0xb0] sm:$0xff] %vm3138, %v2716
      %3162 = vst.msk [vmem:[%s280 + $0xb8] sm:$0xff] %vm3138, %v2719
      %3163 = vst.msk [vmem:[%s280 + $0xc0] sm:$0xff] %vm3138, %v2724
      %3164 = vst.msk [vmem:[%s280 + $0xc8] sm:$0xff] %vm3138, %v2727
      %3165 = vst.msk [vmem:[%s280 + $0xd0] sm:$0xff] %vm3138, %v2732
      %3166 = vst.msk [vmem:[%s280 + $0xd8] sm:$0xff] %vm3138, %v2735
      %3167 = vst.msk [vmem:[%s280 + $0xe0] sm:$0xff] %vm3138, %v2740
      %3168 = vst.msk [vmem:[%s280 + $0xe8] sm:$0xff] %vm3138, %v2743
      %3169 = vst.msk [vmem:[%s280 + $0xf0] sm:$0xff] %vm3138, %v2748
      %3170 = vst.msk [vmem:[%s280 + $0xf8] sm:$0xff] %vm3138, %v2751
      %3171 = vst.msk [vmem:[%s280 + $0x100] sm:$0xff] %vm3138, %v2756
      %3172 = vst.msk [vmem:[%s280 + $0x108] sm:$0xff] %vm3138, %v2759
      %3173 = vst.msk [vmem:[%s280 + $0x110] sm:$0xff] %vm3138, %v2764
      %3174 = vst.msk [vmem:[%s280 + $0x118] sm:$0xff] %vm3138, %v2767
      %3175 = vst.msk [vmem:[%s280 + $0x120] sm:$0xff] %vm3138, %v2772
      %3176 = vst.msk [vmem:[%s280 + $0x128] sm:$0xff] %vm3138, %v2775
      %3177 = vst.msk [vmem:[%s280 + $0x130] sm:$0xff] %vm3138, %v2780
      %3178 = vst.msk [vmem:[%s280 + $0x138] sm:$0xff] %vm3138, %v2783
      %3179 = vst.msk [vmem:[%s280 + $0x140] sm:$0xff] %vm3138, %v2788
      %3180 = vst.msk [vmem:[%s280 + $0x148] sm:$0xff] %vm3138, %v2791
      %3181 = vst.msk [vmem:[%s280 + $0x150] sm:$0xff] %vm3138, %v2796
      %3182 = vst.msk [vmem:[%s280 + $0x158] sm:$0xff] %vm3138, %v2799
      %3183 = vst.msk [vmem:[%s280 + $0x160] sm:$0xff] %vm3138, %v2804
      %3184 = vst.msk [vmem:[%s280 + $0x168] sm:$0xff] %vm3138, %v2807
      %3185 = vst.msk [vmem:[%s280 + $0x170] sm:$0xff] %vm3138, %v2812
      %3186 = vst.msk [vmem:[%s280 + $0x178] sm:$0xff] %vm3138, %v2815
      %3187 = vst.msk [vmem:[%s280 + $0x180] sm:$0xff] %vm3138, %v2820
      %3188 = vst.msk [vmem:[%s280 + $0x188] sm:$0xff] %vm3138, %v2823
      %3189 = vst.msk [vmem:[%s280 + $0x190] sm:$0xff] %vm3138, %v2828
      %3190 = vst.msk [vmem:[%s280 + $0x198] sm:$0xff] %vm3138, %v2831
      %3191 = vst.msk [vmem:[%s280 + $0x1a0] sm:$0xff] %vm3138, %v2836
      %3192 = vst.msk [vmem:[%s280 + $0x1a8] sm:$0xff] %vm3138, %v2839
      %3193 = vst.msk [vmem:[%s280 + $0x1b0] sm:$0xff] %vm3138, %v2844
      %3194 = vst.msk [vmem:[%s280 + $0x1b8] sm:$0xff] %vm3138, %v2847
      %3195 = vst.msk [vmem:[%s280 + $0x1c0] sm:$0xff] %vm3138, %v2852
      %3196 = vst.msk [vmem:[%s280 + $0x1c8] sm:$0xff] %vm3138, %v2855
      %3197 = vst.msk [vmem:[%s280 + $0x1d0] sm:$0xff] %vm3138, %v2860
      %3198 = vst.msk [vmem:[%s280 + $0x1d8] sm:$0xff] %vm3138, %v2863
      %3199 = vst.msk [vmem:[%s280 + $0x1e0] sm:$0xff] %vm3138, %v2868
      %3200 = vst.msk [vmem:[%s280 + $0x1e8] sm:$0xff] %vm3138, %v2871
      %3201 = vst.msk [vmem:[%s280 + $0x1f0] sm:$0xff] %vm3138, %v2876
      %3202 = vst.msk [vmem:[%s280 + $0x1f8] sm:$0xff] %vm3138, %v2879
      %3203 = vst.msk [vmem:[%s280 + $0x200] sm:$0xff] %vm3138, %v2884
      %3204 = vst.msk [vmem:[%s280 + $0x208] sm:$0xff] %vm3138, %v2887
      %3205 = vst.msk [vmem:[%s280 + $0x210] sm:$0xff] %vm3138, %v2892
      %3206 = vst.msk [vmem:[%s280 + $0x218] sm:$0xff] %vm3138, %v2895
      %3207 = vst.msk [vmem:[%s280 + $0x220] sm:$0xff] %vm3138, %v2900
      %3208 = vst.msk [vmem:[%s280 + $0x228] sm:$0xff] %vm3138, %v2903
      %3209 = vst.msk [vmem:[%s280 + $0x230] sm:$0xff] %vm3138, %v2908
      %3210 = vst.msk [vmem:[%s280 + $0x238] sm:$0xff] %vm3138, %v2911
      %3211 = vst.msk [vmem:[%s280 + $0x240] sm:$0xff] %vm3138, %v2916
      %3212 = vst.msk [vmem:[%s280 + $0x248] sm:$0xff] %vm3138, %v2919
      %3213 = vst.msk [vmem:[%s280 + $0x250] sm:$0xff] %vm3138, %v2924
      %3214 = vst.msk [vmem:[%s280 + $0x258] sm:$0xff] %vm3138, %v2927
      %3215 = vst.msk [vmem:[%s280 + $0x260] sm:$0xff] %vm3138, %v2932
      %3216 = vst.msk [vmem:[%s280 + $0x268] sm:$0xff] %vm3138, %v2935
      %3217 = vst.msk [vmem:[%s280 + $0x270] sm:$0xff] %vm3138, %v2940
      %3218 = vst.msk [vmem:[%s280 + $0x278] sm:$0xff] %vm3138, %v2943
      %3219 = vst.msk [vmem:[%s280 + $0x280] sm:$0xff] %vm3138, %v2948
      %3220 = vst.msk [vmem:[%s280 + $0x288] sm:$0xff] %vm3138, %v2951
      %3221 = vst.msk [vmem:[%s280 + $0x290] sm:$0xff] %vm3138, %v2956
      %3222 = vst.msk [vmem:[%s280 + $0x298] sm:$0xff] %vm3138, %v2959
      %3223 = vst.msk [vmem:[%s280 + $0x2a0] sm:$0xff] %vm3138, %v2964
      %3224 = vst.msk [vmem:[%s280 + $0x2a8] sm:$0xff] %vm3138, %v2967
      %3225 = vst.msk [vmem:[%s280 + $0x2b0] sm:$0xff] %vm3138, %v2972
      %3226 = vst.msk [vmem:[%s280 + $0x2b8] sm:$0xff] %vm3138, %v2975
      %3227 = vst.msk [vmem:[%s280 + $0x2c0] sm:$0xff] %vm3138, %v2980
      %3228 = vst.msk [vmem:[%s280 + $0x2c8] sm:$0xff] %vm3138, %v2983
      %3229 = vst.msk [vmem:[%s280 + $0x2d0] sm:$0xff] %vm3138, %v2988
      %3230 = vst.msk [vmem:[%s280 + $0x2d8] sm:$0xff] %vm3138, %v2991
      %3231 = vst.msk [vmem:[%s280 + $0x2e0] sm:$0xff] %vm3138, %v2996
      %3232 = vst.msk [vmem:[%s280 + $0x2e8] sm:$0xff] %vm3138, %v2999
      %3233 = vst.msk [vmem:[%s280 + $0x2f0] sm:$0xff] %vm3138, %v3004
      %3234 = vst.msk [vmem:[%s280 + $0x2f8] sm:$0xff] %vm3138, %v3007
      %3235 = vst.msk [vmem:[%s280 + $0x300] sm:$0xff] %vm3138, %v3012
      %3236 = vst.msk [vmem:[%s280 + $0x308] sm:$0xff] %vm3138, %v3015
      %3237 = vst.msk [vmem:[%s280 + $0x310] sm:$0xff] %vm3138, %v3020
      %3238 = vst.msk [vmem:[%s280 + $0x318] sm:$0xff] %vm3138, %v3023
      %3239 = vst.msk [vmem:[%s280 + $0x320] sm:$0xff] %vm3138, %v3028
      %3240 = vst.msk [vmem:[%s280 + $0x328] sm:$0xff] %vm3138, %v3031
      %3241 = vst.msk [vmem:[%s280 + $0x330] sm:$0xff] %vm3138, %v3036
      %3242 = vst.msk [vmem:[%s280 + $0x338] sm:$0xff] %vm3138, %v3039
      %3243 = vst.msk [vmem:[%s280 + $0x340] sm:$0xff] %vm3138, %v3044
      %3244 = vst.msk [vmem:[%s280 + $0x348] sm:$0xff] %vm3138, %v3047
      %3245 = vst.msk [vmem:[%s280 + $0x350] sm:$0xff] %vm3138, %v3052
      %3246 = vst.msk [vmem:[%s280 + $0x358] sm:$0xff] %vm3138, %v3055
      %3247 = vst.msk [vmem:[%s280 + $0x360] sm:$0xff] %vm3138, %v3060
      %3248 = vst.msk [vmem:[%s280 + $0x368] sm:$0xff] %vm3138, %v3063
      %3249 = vst.msk [vmem:[%s280 + $0x370] sm:$0xff] %vm3138, %v3068
      %3250 = vst.msk [vmem:[%s280 + $0x378] sm:$0xff] %vm3138, %v3071
      %3251 = vst.msk [vmem:[%s280 + $0x380] sm:$0xff] %vm3138, %v3076
      %3252 = vst.msk [vmem:[%s280 + $0x388] sm:$0xff] %vm3138, %v3079
      %3253 = vst.msk [vmem:[%s280 + $0x390] sm:$0xff] %vm3138, %v3084
      %3254 = vst.msk [vmem:[%s280 + $0x398] sm:$0xff] %vm3138, %v3087
      %3255 = vst.msk [vmem:[%s280 + $0x3a0] sm:$0xff] %vm3138, %v3092
      %3256 = vst.msk [vmem:[%s280 + $0x3a8] sm:$0xff] %vm3138, %v3095
      %3257 = vst.msk [vmem:[%s280 + $0x3b0] sm:$0xff] %vm3138, %v3100
      %3258 = vst.msk [vmem:[%s280 + $0x3b8] sm:$0xff] %vm3138, %v3103
      %3259 = vst.msk [vmem:[%s280 + $0x3c0] sm:$0xff] %vm3138, %v3108
      %3260 = vst.msk [vmem:[%s280 + $0x3c8] sm:$0xff] %vm3138, %v3111
      %3261 = vst.msk [vmem:[%s280 + $0x3d0] sm:$0xff] %vm3138, %v3116
      %3262 = vst.msk [vmem:[%s280 + $0x3d8] sm:$0xff] %vm3138, %v3119
      %3263 = vst.msk [vmem:[%s280 + $0x3e0] sm:$0xff] %vm3138, %v3124
      %3264 = vst.msk [vmem:[%s280 + $0x3e8] sm:$0xff] %vm3138, %v3127
      %3265 = vst.msk [vmem:[%s280 + $0x3f0] sm:$0xff] %vm3138, %v3132
      %3266 = vst.msk [vmem:[%s280 + $0x3f8] sm:$0xff] %vm3138, %v3135
      %s3267 = smul.u32 128, %s18
      %p3268 = scmp.lt.s32.totalorder %s3267, 255
      %s3269 = scalar_select %p3268, %s3267, 255
      %s3270 = smul.addr %s3269, 8
      %s3271 = scalar_lea.vmem %s7, %s3270
      // Predicated region
      $region49: #{tpu_custom_call.1} parent=47 // pred_check
        %p3272 = pneg %p188
      $region50: #{tpu_custom_call.1} parent=47 // pred_check_branch
        %3274 = sbr.rel (%p3272) target = $region52
      $region51: #{tpu_custom_call.1} parent=47 // pred_region
        %s3275 = smul.u32 128, %s18
      $region52: #{tpu_custom_call.1} parent=47 // pred_fallthru
        _
    $region48: #{tpu_custom_call.1} parent=5 // pred_fallthru
      _
    %p3276 = scmp.le.s32.totalorder 2, %s13
    // Predicated region
    $region53: #{tpu_custom_call.1} parent=5 // pred_check
      %p3277 = pneg %p3276
    $region54: #{tpu_custom_call.1} parent=5 // pred_check_branch
      %3279 = sbr.rel (%p3277) target = $region56
    $region55: #{tpu_custom_call.1} parent=5 // pred_region
      %s3280 = ssub.s32 %s13, 2
      // Predicated region
      $region57: #{tpu_custom_call.1} parent=55 // pred_check
        %p3281 = pneg %p194
      $region58: #{tpu_custom_call.1} parent=55 // pred_check_branch
        %3283 = sbr.rel (%p3281) target = $region60
      $region59: #{tpu_custom_call.1} parent=55 // pred_region
        %s3284 = smul.u32 128, %s19
        %p3285 = scmp.lt.s32.totalorder %s3284, 255
        %s3286 = scalar_select %p3285, %s3284, 255
        %s3287 = smul.addr %s3286, 8
        %s3288 = scalar_lea.vmem %s7, %s3287
      $region60: #{tpu_custom_call.1} parent=55 // pred_fallthru
        _
    $region56: #{tpu_custom_call.1} parent=5 // pred_fallthru
      _
  $region6: #{tpu_custom_call.1} parent=0 // loop_footer
    %s17 = sadd.s32 1, %s13
  $region7: #{tpu_custom_call.1} parent=0 // loop_footer_branch
    %12 = sbr.rel target = $region3
  $region8: #{tpu_custom_call.1} parent=0 // loop_exit
    _

</llo_original>
